<compile_context>
chip_gen: v7x
topology: tpu7x:2x2x1
jax: 0.10.0
libtpu: 0.0.40
codegen_flags: <defaults>
</compile_context>

<pallas_src>
import jax
import jax.numpy as jnp
from jax.experimental import pallas as pl
from jax.experimental.pallas import tpu as pltpu

IN_FEATURES = 359 * 5          # 1795
K_PAD = 1920                   # 15 * 128, lane-aligned contraction dim
HIDDEN = 512
OUT_FEATURES = 15
N_PAD = 128                    # lane-aligned output width


def _mlp_kernel(x_ref, w1_ref, b1_ref, w2_ref, b2_ref, o_ref):
    # Layer 1: bf16 x bf16 on the MXU, f32 accumulate; bias + relu on the VPU.
    h = jnp.dot(x_ref[...], w1_ref[...], preferred_element_type=jnp.float32)
    h = jnp.maximum(h + b1_ref[...], 0.0)
    # Layer 2: small f32 matmul into the lane-padded (TB, 128) output tile.
    y = jnp.dot(h, w2_ref[...], preferred_element_type=jnp.float32)
    o_ref[...] = (y + b2_ref[...]).astype(o_ref.dtype)


def _round_up(n, m):
    return (n + m - 1) // m * m


def fully_connected_net_gesture(x, w1, b1, w2, b2, *, batch_tile=256):
    """Forward pass of FullyConnectedNetGesture.

    x:  (B, 359, 5) or (B, 1795) float32
    w1: (1795, 512)  (== PyTorch fc1.weight.T)   b1: (512,)
    w2: (512, 15)    (== PyTorch fc2.weight.T)   b2: (15,)
    Returns (B, 15) float32.
    """
    x2d = x.reshape(x.shape[0], -1)              # torch.flatten(x, 1)
    B = x2d.shape[0]
    assert x2d.shape[1] == IN_FEATURES

    # ---- host-side padding / dtype prep (exact: all pads are zeros) -------
    B_pad = _round_up(B, 8)
    TB = batch_tile if B_pad >= batch_tile else B_pad
    B_pad = _round_up(B_pad, TB)

    x_p = jnp.pad(x2d, ((0, B_pad - B), (0, K_PAD - IN_FEATURES))).astype(jnp.bfloat16)
    w1_p = jnp.pad(w1, ((0, K_PAD - IN_FEATURES), (0, 0))).astype(jnp.bfloat16)
    b1_p = b1.reshape(1, HIDDEN).astype(jnp.float32)
    w2_p = jnp.pad(w2, ((0, 0), (0, N_PAD - OUT_FEATURES))).astype(jnp.float32)
    b2_p = jnp.pad(b2.reshape(1, OUT_FEATURES),
                   ((0, 0), (0, N_PAD - OUT_FEATURES))).astype(jnp.float32)

    grid = (B_pad // TB,)
    out_padded = pl.pallas_call(
        _mlp_kernel,
        out_shape=jax.ShapeDtypeStruct((B_pad, N_PAD), jnp.float32),
        grid_spec=pltpu.PrefetchScalarGridSpec(
            num_scalar_prefetch=0,
            grid=grid,
            in_specs=[
                pl.BlockSpec((TB, K_PAD), lambda i: (i, 0)),       # x tile
                pl.BlockSpec((K_PAD, HIDDEN), lambda i: (0, 0)),   # w1 resident
                pl.BlockSpec((1, HIDDEN), lambda i: (0, 0)),       # b1 resident
                pl.BlockSpec((HIDDEN, N_PAD), lambda i: (0, 0)),   # w2 resident
                pl.BlockSpec((1, N_PAD), lambda i: (0, 0)),        # b2 resident
            ],
            out_specs=pl.BlockSpec((TB, N_PAD), lambda i: (i, 0)),
        ),
        compiler_params=pltpu.CompilerParams(
            # Batch axis is embarrassingly parallel -> shards across the two
            # TensorCores on v7x; harmless on single-TC v5e/v6e.
            dimension_semantics=("parallel",),
        ),
    )(x_p, w1_p, b1_p, w2_p, b2_p)

    return out_padded[:B, :OUT_FEATURES]


def init_params(key):
    """Deterministic init mimicking PyTorch nn.Linear default:
    U(-1/sqrt(fan_in), 1/sqrt(fan_in)) for both weight and bias.
    Weights stored as (in, out) == PyTorch weight.T."""
    k1, k2, k3, k4 = jax.random.split(key, 4)
    bound1 = 1.0 / jnp.sqrt(jnp.float32(IN_FEATURES))
    bound2 = 1.0 / jnp.sqrt(jnp.float32(HIDDEN))
    w1 = jax.random.uniform(k1, (IN_FEATURES, HIDDEN), jnp.float32, -bound1, bound1)
    b1 = jax.random.uniform(k2, (HIDDEN,), jnp.float32, -bound1, bound1)
    w2 = jax.random.uniform(k3, (HIDDEN, OUT_FEATURES), jnp.float32, -bound2, bound2)
    b2 = jax.random.uniform(k4, (OUT_FEATURES,), jnp.float32, -bound2, bound2)
    return w1, b1, w2, b2


def _reference(x, w1, b1, w2, b2):
    # Mirrors the kernel's dtype handling: x and w1 are rounded to bf16 before
    # the first matmul (MXU bf16 inputs), accumulation and layer 2 stay f32.
    x2d = x.reshape(x.shape[0], -1)
    xb = x2d.astype(jnp.bfloat16).astype(jnp.float32)
    w1b = w1.astype(jnp.bfloat16).astype(jnp.float32)
    h = jnp.maximum(xb @ w1b + b1.reshape(1, -1), 0.0)
    return h @ w2 + b2.reshape(1, -1)


if __name__ == "__main__":
    key = jax.random.PRNGKey(0)
    kx, kp = jax.random.split(key)

    batch = 2
    # Input shaped like the gesture features: (batch, 359, 5), flattened inside.
    x = jax.random.normal(kx, (batch, 359, 5), dtype=jnp.float32)

    w1, b1, w2, b2 = init_params(kp)

    out = fully_connected_net_gesture(x, w1, b1, w2, b2)
    out = jax.block_until_ready(out)

    ref = _reference(x, w1, b1, w2, b2)
    assert out.shape == (batch, OUT_FEATURES)
    assert jnp.allclose(out, ref, atol=2e-3, rtol=2e-3), "mismatch vs JAX reference"

    print("KERNEL_OK")
</pallas_src>

<mosaic_0001>
module attributes {stable_mosaic.version = 11 : i64} {
  func.func @_mlp_kernel(%arg0: i32, %arg1: memref<8x1920xbf16, #tpu.memory_space<vmem>>, %arg2: memref<1920x512xbf16, #tpu.memory_space<vmem>>, %arg3: memref<1x512xf32, #tpu.memory_space<vmem>>, %arg4: memref<512x128xf32, #tpu.memory_space<vmem>>, %arg5: memref<1x128xf32, #tpu.memory_space<vmem>>, %arg6: memref<8x128xf32, #tpu.memory_space<vmem>>) attributes {dimension_semantics = [#tpu.dimension_semantics<parallel>], iteration_bounds = array<i64: 1>, scalar_prefetch = 0 : i64, scratch_operands = 0 : i64, tpu.core_type = #tpu.core_type<tc>, window_params = [{transform_indices = @transform_0, window_bounds = array<i64: 8, 1920>}, {pipeline_mode = #tpu.pipeline_mode<synchronous>, transform_indices = @transform_1, window_bounds = array<i64: 1920, 512>}, {pipeline_mode = #tpu.pipeline_mode<synchronous>, transform_indices = @transform_2, window_bounds = array<i64: 1, 512>}, {pipeline_mode = #tpu.pipeline_mode<synchronous>, transform_indices = @transform_3, window_bounds = array<i64: 512, 128>}, {pipeline_mode = #tpu.pipeline_mode<synchronous>, transform_indices = @transform_4, window_bounds = array<i64: 1, 128>}, {transform_indices = @transform_5, window_bounds = array<i64: 8, 128>}]} {
    %c0 = arith.constant 0 : index
    %c0_0 = arith.constant 0 : index
    %0 = vector.load %arg1[%c0, %c0_0] : memref<8x1920xbf16, #tpu.memory_space<vmem>>, vector<8x1920xbf16>
    %c0_1 = arith.constant 0 : index
    %c0_2 = arith.constant 0 : index
    %1 = vector.load %arg2[%c0_1, %c0_2] : memref<1920x512xbf16, #tpu.memory_space<vmem>>, vector<1920x512xbf16>
    %cst = arith.constant dense<0.000000e+00> : vector<8x512xf32>
    %2 = tpu.matmul %0, %1, %cst {dimension_numbers = #tpu.dot_dimension_numbers<[1], [0], [0], [1], [0, 0, 1, 1], [], []>} : vector<8x1920xbf16>, vector<1920x512xbf16>, vector<8x512xf32> -> vector<8x512xf32>
    %c0_3 = arith.constant 0 : index
    %c0_4 = arith.constant 0 : index
    %3 = vector.load %arg3[%c0_3, %c0_4] : memref<1x512xf32, #tpu.memory_space<vmem>>, vector<1x512xf32>
    %4 = vector.broadcast %3 : vector<1x512xf32> to vector<8x512xf32>
    %5 = arith.addf %2, %4 : vector<8x512xf32>
    %cst_5 = arith.constant 0.000000e+00 : f32
    %6 = vector.broadcast %cst_5 : f32 to vector<8x512xf32>
    %7 = arith.maximumf %5, %6 : vector<8x512xf32>
    %c0_6 = arith.constant 0 : index
    %c0_7 = arith.constant 0 : index
    %8 = vector.load %arg4[%c0_6, %c0_7] : memref<512x128xf32, #tpu.memory_space<vmem>>, vector<512x128xf32>
    %cst_8 = arith.constant dense<0.000000e+00> : vector<8x128xf32>
    %9 = tpu.matmul %7, %8, %cst_8 {dimension_numbers = #tpu.dot_dimension_numbers<[1], [0], [0], [1], [0, 0, 1, 1], [], []>} : vector<8x512xf32>, vector<512x128xf32>, vector<8x128xf32> -> vector<8x128xf32>
    %c0_9 = arith.constant 0 : index
    %c0_10 = arith.constant 0 : index
    %10 = vector.load %arg5[%c0_9, %c0_10] : memref<1x128xf32, #tpu.memory_space<vmem>>, vector<1x128xf32>
    %11 = vector.broadcast %10 : vector<1x128xf32> to vector<8x128xf32>
    %12 = arith.addf %9, %11 : vector<8x128xf32>
    %c0_11 = arith.constant 0 : index
    %c0_12 = arith.constant 0 : index
    %13 = vector.load %arg6[%c0_11, %c0_12] : memref<8x128xf32, #tpu.memory_space<vmem>>, vector<8x128xf32>
    tpu.vector_store %arg6[%c0_11, %c0_12], %12 {strides = array<i32>} : memref<8x128xf32, #tpu.memory_space<vmem>>, vector<8x128xf32>,
    return
  }
  func.func @transform_0(%arg0: i32) -> (i32, i32) {
    %c0_i32 = arith.constant 0 : i32
    %c0_i32_0 = arith.constant 0 : i32
    return %arg0, %c0_i32 : i32, i32
  }
  func.func @transform_1(%arg0: i32) -> (i32, i32) {
    %c0_i32 = arith.constant 0 : i32
    %c0_i32_0 = arith.constant 0 : i32
    %c0_i32_1 = arith.constant 0 : i32
    return %c0_i32, %c0_i32_0 : i32, i32
  }
  func.func @transform_2(%arg0: i32) -> (i32, i32) {
    %c0_i32 = arith.constant 0 : i32
    %c0_i32_0 = arith.constant 0 : i32
    %c0_i32_1 = arith.constant 0 : i32
    return %c0_i32, %c0_i32_0 : i32, i32
  }
  func.func @transform_3(%arg0: i32) -> (i32, i32) {
    %c0_i32 = arith.constant 0 : i32
    %c0_i32_0 = arith.constant 0 : i32
    %c0_i32_1 = arith.constant 0 : i32
    return %c0_i32, %c0_i32_0 : i32, i32
  }
  func.func @transform_4(%arg0: i32) -> (i32, i32) {
    %c0_i32 = arith.constant 0 : i32
    %c0_i32_0 = arith.constant 0 : i32
    %c0_i32_1 = arith.constant 0 : i32
    return %c0_i32, %c0_i32_0 : i32, i32
  }
  func.func @transform_5(%arg0: i32) -> (i32, i32) {
    %c0_i32 = arith.constant 0 : i32
    %c0_i32_0 = arith.constant 0 : i32
    return %arg0, %c0_i32 : i32, i32
  }
}

</mosaic_0001>

<llo_original>
// kernel: tpu_custom_call.1
$region0: #{tpu_custom_call.1}
  #allocation0 [shape = 'u32[]', space=smem, size = 0x4, offset = 0x4, fixed_abs, tag = 'smem constant byte address 0x4 - core index']
  #allocation1 [shape = 'u32[144,128]{1,0:T(1,128)}', space=vmem, size = 0x12000, scoped, tag = 'internal scratch']
  %s0 = inlined_call_operand.hbm [shape: bf16[8,1920], index: 0, kind: input, shape index: {}]
  %s1 = inlined_call_operand.hbm [shape: bf16[1920,512], index: 1, kind: input, shape index: {}]
  %s2 = inlined_call_operand.hbm [shape: f32[1,512], index: 2, kind: input, shape index: {}]
  %s3 = inlined_call_operand.hbm [shape: f32[512,128], index: 3, kind: input, shape index: {}]
  %s4 = inlined_call_operand.hbm [shape: f32[1,128], index: 4, kind: input, shape index: {}]
  %s5 = inlined_call_operand.hbm [shape: f32[8,128], index: 5, kind: output, shape index: {}]
  %s6 = sld [smem:[#allocation0]]
  $region50: #{tpu_custom_call.1} parent=0
    _
  %s8 = ssub.s32 1, %s6
  %s9 = scalar_select 0, %s8, %s6
  $region1: #{tpu_custom_call.1} parent=0
    #allocation2 [shape = 'u8[30720]{0}', space=vmem, size = 0x7800, scoped, tag = 'input window, operand 0, single buffered']
    #allocation3 [shape = 's32[1]{0}', space=sflag, size = 0x4, scoped, tag = 'scoped memory for tpu_custom_call.1']
    #allocation4 [shape = 's32[1]{0}', space=sflag, size = 0x4, scoped, tag = 'scoped memory for tpu_custom_call.1']
    #allocation5 [shape = 'u8[1966080]{0}', space=vmem, size = 0x1e0000, scoped, tag = 'input window, operand 1, single buffered']
    #allocation6 [shape = 's32[1]{0}', space=sflag, size = 0x4, scoped, tag = 'scoped memory for tpu_custom_call.1']
    #allocation7 [shape = 'u8[2048]{0}', space=vmem, size = 0x800, scoped, tag = 'input window, operand 2, single buffered']
    #allocation8 [shape = 'u8[262144]{0}', space=vmem, size = 0x40000, scoped, tag = 'input window, operand 3, single buffered']
    #allocation9 [shape = 's32[1]{0}', space=sflag, size = 0x4, scoped, tag = 'scoped memory for tpu_custom_call.1']
    #allocation10 [shape = 'u8[512]{0}', space=vmem, size = 0x400, scoped, tag = 'input window, operand 4, single buffered']
    #allocation11 [shape = 'u8[4096]{0}', space=vmem, size = 0x1000, scoped, tag = 'output window, operand 0, single buffered']
    %10 = vsyncpa [#allocation3], 0
    %11 = vsyncpa [#allocation6], 0
    %12 = vsyncpa [#allocation9], 0
    %13 = vsyncpa [#allocation4], 0
    // Predicated region
    $region2: #{tpu_custom_call.1} parent=1 // pred_check
      _
    $region3: #{tpu_custom_call.1} parent=1 // pred_check_branch
      %15 = sbr.rel (0) target = $region5
    $region4: #{tpu_custom_call.1} parent=1 // pred_region
      %s17 = ssub.s32 960, 960
      %18 = vsyncadd [#allocation3], %s17
      %s20 = sshll.u32 [#allocation2], 4
      %s21 = int_to_ptr.vmem [resolvable:$true] %s20
      %23 = dma.hbm_to_vmem [thread:$0]  %s0, 960, %s21, [#allocation3]
    $region5: #{tpu_custom_call.1} parent=1 // pred_fallthru
      _
    // Predicated region
    $region6: #{tpu_custom_call.1} parent=1 // pred_check
      _
    $region7: #{tpu_custom_call.1} parent=1 // pred_check_branch
      %25 = sbr.rel (0) target = $region9
    $region8: #{tpu_custom_call.1} parent=1 // pred_region
      %s27 = ssub.s32 61440, 61440
      %28 = vsyncadd [#allocation6], %s27
      %s29 = sshll.u32 [#allocation5], 4
      %s30 = int_to_ptr.vmem [resolvable:$true] %s29
      %35 = dma.hbm_to_vmem [thread:$0]  %s1, 61440, %s30, [#allocation6], 256, 256, 16
    $region9: #{tpu_custom_call.1} parent=1 // pred_fallthru
      _
    // Predicated region
    $region10: #{tpu_custom_call.1} parent=1 // pred_check
      _
    $region11: #{tpu_custom_call.1} parent=1 // pred_check_branch
      %37 = sbr.rel (0) target = $region13
    $region12: #{tpu_custom_call.1} parent=1 // pred_region
      %s39 = ssub.s32 64, 64
      %40 = vsyncadd [#allocation6], %s39
      %s42 = sshll.u32 [#allocation7], 4
      %s43 = int_to_ptr.vmem [resolvable:$true] %s42
      %45 = dma.hbm_to_vmem [thread:$0]  %s2, 64, %s43, [#allocation6]
    $region13: #{tpu_custom_call.1} parent=1 // pred_fallthru
      _
    // Predicated region
    $region14: #{tpu_custom_call.1} parent=1 // pred_check
      _
    $region15: #{tpu_custom_call.1} parent=1 // pred_check_branch
      %47 = sbr.rel (0) target = $region17
    $region16: #{tpu_custom_call.1} parent=1 // pred_region
      %s49 = ssub.s32 8192, 8192
      %50 = vsyncadd [#allocation9], %s49
      %s51 = sshll.u32 [#allocation8], 4
      %s52 = int_to_ptr.vmem [resolvable:$true] %s51
      %57 = dma.hbm_to_vmem [thread:$0]  %s3, 8192, %s52, [#allocation9], 128, 128, 8
    $region17: #{tpu_custom_call.1} parent=1 // pred_fallthru
      _
    // Predicated region
    $region18: #{tpu_custom_call.1} parent=1 // pred_check
      _
    $region19: #{tpu_custom_call.1} parent=1 // pred_check_branch
      %59 = sbr.rel (0) target = $region21
    $region20: #{tpu_custom_call.1} parent=1 // pred_region
      %s61 = ssub.s32 16, 16
      %62 = vsyncadd [#allocation9], %s61
      %s64 = sshll.u32 [#allocation10], 4
      %s65 = int_to_ptr.vmem [resolvable:$true] %s64
      %67 = dma.hbm_to_vmem [thread:$0]  %s4, 16, %s65, [#allocation9]
    $region21: #{tpu_custom_call.1} parent=1 // pred_fallthru
      _
    // Predicated region
    $region22: #{tpu_custom_call.1} parent=1 // pred_check
      _
    $region23: #{tpu_custom_call.1} parent=1 // pred_check_branch
      %69 = sbr.rel (0) target = $region25
    $region24: #{tpu_custom_call.1} parent=1 // pred_region
      %70 = dma.done [#allocation3], 960
    $region25: #{tpu_custom_call.1} parent=1 // pred_fallthru
      _
    // Predicated region
    $region26: #{tpu_custom_call.1} parent=1 // pred_check
      _
    $region27: #{tpu_custom_call.1} parent=1 // pred_check_branch
      %72 = sbr.rel (0) target = $region29
    $region28: #{tpu_custom_call.1} parent=1 // pred_region
      %73 = dma.done [#allocation6], 61440
    $region29: #{tpu_custom_call.1} parent=1 // pred_fallthru
      _
    // Predicated region
    $region30: #{tpu_custom_call.1} parent=1 // pred_check
      _
    $region31: #{tpu_custom_call.1} parent=1 // pred_check_branch
      %75 = sbr.rel (0) target = $region33
    $region32: #{tpu_custom_call.1} parent=1 // pred_region
      %76 = dma.done [#allocation6], 64
    $region33: #{tpu_custom_call.1} parent=1 // pred_fallthru
      _
    // Predicated region
    $region34: #{tpu_custom_call.1} parent=1 // pred_check
      _
    $region35: #{tpu_custom_call.1} parent=1 // pred_check_branch
      %78 = sbr.rel (0) target = $region37
    $region36: #{tpu_custom_call.1} parent=1 // pred_region
      %79 = dma.done [#allocation9], 8192
    $region37: #{tpu_custom_call.1} parent=1 // pred_fallthru
      _
    // Predicated region
    $region38: #{tpu_custom_call.1} parent=1 // pred_check
      _
    $region39: #{tpu_custom_call.1} parent=1 // pred_check_branch
      %81 = sbr.rel (0) target = $region41
    $region40: #{tpu_custom_call.1} parent=1 // pred_region
      %82 = dma.done [#allocation9], 16
    $region41: #{tpu_custom_call.1} parent=1 // pred_fallthru
      _
    %v84 = vld [vmem:[#allocation2] sm:$0xff]
    %v85 = vld [vmem:[#allocation2 + $0x8] sm:$0xff]
    %v86 = vld [vmem:[#allocation2 + $0x10] sm:$0xff]
    %v87 = vld [vmem:[#allocation2 + $0x18] sm:$0xff]
    %v88 = vld [vmem:[#allocation2 + $0x20] sm:$0xff]
    %v89 = vld [vmem:[#allocation2 + $0x28] sm:$0xff]
    %v90 = vld [vmem:[#allocation2 + $0x30] sm:$0xff]
    %v91 = vld [vmem:[#allocation2 + $0x38] sm:$0xf]
    %v92 = vld [vmem:[#allocation5] sm:$0xff]
    %v93 = vld [vmem:[#allocation5 + $0x8] sm:$0xff]
    %v94 = vld [vmem:[#allocation5 + $0x10] sm:$0xff]
    %v95 = vld [vmem:[#allocation5 + $0x18] sm:$0xff]
    %v96 = vld [vmem:[#allocation5 + $0x20] sm:$0xff]
    %v97 = vld [vmem:[#allocation5 + $0x28] sm:$0xff]
    %v98 = vld [vmem:[#allocation5 + $0x30] sm:$0xff]
    %v99 = vld [vmem:[#allocation5 + $0x38] sm:$0xff]
    %v100 = vld [vmem:[#allocation5 + $0x40] sm:$0xff]
    %v101 = vld [vmem:[#allocation5 + $0x48] sm:$0xff]
    %v102 = vld [vmem:[#allocation5 + $0x50] sm:$0xff]
    %v103 = vld [vmem:[#allocation5 + $0x58] sm:$0xff]
    %v104 = vld [vmem:[#allocation5 + $0x60] sm:$0xff]
    %v105 = vld [vmem:[#allocation5 + $0x68] sm:$0xff]
    %v106 = vld [vmem:[#allocation5 + $0x70] sm:$0xff]
    %v107 = vld [vmem:[#allocation5 + $0x78] sm:$0xff]
    %v108 = vld [vmem:[#allocation5 + $0x80] sm:$0xff]
    %v109 = vld [vmem:[#allocation5 + $0x88] sm:$0xff]
    %v110 = vld [vmem:[#allocation5 + $0x90] sm:$0xff]
    %v111 = vld [vmem:[#allocation5 + $0x98] sm:$0xff]
    %v112 = vld [vmem:[#allocation5 + $0xa0] sm:$0xff]
    %v113 = vld [vmem:[#allocation5 + $0xa8] sm:$0xff]
    %v114 = vld [vmem:[#allocation5 + $0xb0] sm:$0xff]
    %v115 = vld [vmem:[#allocation5 + $0xb8] sm:$0xff]
    %v116 = vld [vmem:[#allocation5 + $0xc0] sm:$0xff]
    %v117 = vld [vmem:[#allocation5 + $0xc8] sm:$0xff]
    %v118 = vld [vmem:[#allocation5 + $0xd0] sm:$0xff]
    %v119 = vld [vmem:[#allocation5 + $0xd8] sm:$0xff]
    %v120 = vld [vmem:[#allocation5 + $0xe0] sm:$0xff]
    %v121 = vld [vmem:[#allocation5 + $0xe8] sm:$0xff]
    %v122 = vld [vmem:[#allocation5 + $0xf0] sm:$0xff]
    %v123 = vld [vmem:[#allocation5 + $0xf8] sm:$0xff]
    %v124 = vld [vmem:[#allocation5 + $0x100] sm:$0xff]
    %v125 = vld [vmem:[#allocation5 + $0x108] sm:$0xff]
    %v126 = vld [vmem:[#allocation5 + $0x110] sm:$0xff]
    %v127 = vld [vmem:[#allocation5 + $0x118] sm:$0xff]
    %v128 = vld [vmem:[#allocation5 + $0x120] sm:$0xff]
    %v129 = vld [vmem:[#allocation5 + $0x128] sm:$0xff]
    %v130 = vld [vmem:[#allocation5 + $0x130] sm:$0xff]
    %v131 = vld [vmem:[#allocation5 + $0x138] sm:$0xff]
    %v132 = vld [vmem:[#allocation5 + $0x140] sm:$0xff]
    %v133 = vld [vmem:[#allocation5 + $0x148] sm:$0xff]
    %v134 = vld [vmem:[#allocation5 + $0x150] sm:$0xff]
    %v135 = vld [vmem:[#allocation5 + $0x158] sm:$0xff]
    %v136 = vld [vmem:[#allocation5 + $0x160] sm:$0xff]
    %v137 = vld [vmem:[#allocation5 + $0x168] sm:$0xff]
    %v138 = vld [vmem:[#allocation5 + $0x170] sm:$0xff]
    %v139 = vld [vmem:[#allocation5 + $0x178] sm:$0xff]
    %v140 = vld [vmem:[#allocation5 + $0x180] sm:$0xff]
    %v141 = vld [vmem:[#allocation5 + $0x188] sm:$0xff]
    %v142 = vld [vmem:[#allocation5 + $0x190] sm:$0xff]
    %v143 = vld [vmem:[#allocation5 + $0x198] sm:$0xff]
    %v144 = vld [vmem:[#allocation5 + $0x1a0] sm:$0xff]
    %v145 = vld [vmem:[#allocation5 + $0x1a8] sm:$0xff]
    %v146 = vld [vmem:[#allocation5 + $0x1b0] sm:$0xff]
    %v147 = vld [vmem:[#allocation5 + $0x1b8] sm:$0xff]
    %v148 = vld [vmem:[#allocation5 + $0x1c0] sm:$0xff]
    %v149 = vld [vmem:[#allocation5 + $0x1c8] sm:$0xff]
    %v150 = vld [vmem:[#allocation5 + $0x1d0] sm:$0xff]
    %v151 = vld [vmem:[#allocation5 + $0x1d8] sm:$0xff]
    %v152 = vld [vmem:[#allocation5 + $0x1e0] sm:$0xff]
    %v153 = vld [vmem:[#allocation5 + $0x1e8] sm:$0xff]
    %v154 = vld [vmem:[#allocation5 + $0x1f0] sm:$0xff]
    %v155 = vld [vmem:[#allocation5 + $0x1f8] sm:$0xff]
    %v156 = vld [vmem:[#allocation5 + $0x200] sm:$0xff]
    %v157 = vld [vmem:[#allocation5 + $0x208] sm:$0xff]
    %v158 = vld [vmem:[#allocation5 + $0x210] sm:$0xff]
    %v159 = vld [vmem:[#allocation5 + $0x218] sm:$0xff]
    %v160 = vld [vmem:[#allocation5 + $0x220] sm:$0xff]
    %v161 = vld [vmem:[#allocation5 + $0x228] sm:$0xff]
    %v162 = vld [vmem:[#allocation5 + $0x230] sm:$0xff]
    %v163 = vld [vmem:[#allocation5 + $0x238] sm:$0xff]
    %v164 = vld [vmem:[#allocation5 + $0x240] sm:$0xff]
    %v165 = vld [vmem:[#allocation5 + $0x248] sm:$0xff]
    %v166 = vld [vmem:[#allocation5 + $0x250] sm:$0xff]
    %v167 = vld [vmem:[#allocation5 + $0x258] sm:$0xff]
    %v168 = vld [vmem:[#allocation5 + $0x260] sm:$0xff]
    %v169 = vld [vmem:[#allocation5 + $0x268] sm:$0xff]
    %v170 = vld [vmem:[#allocation5 + $0x270] sm:$0xff]
    %v171 = vld [vmem:[#allocation5 + $0x278] sm:$0xff]
    %v172 = vld [vmem:[#allocation5 + $0x280] sm:$0xff]
    %v173 = vld [vmem:[#allocation5 + $0x288] sm:$0xff]
    %v174 = vld [vmem:[#allocation5 + $0x290] sm:$0xff]
    %v175 = vld [vmem:[#allocation5 + $0x298] sm:$0xff]
    %v176 = vld [vmem:[#allocation5 + $0x2a0] sm:$0xff]
    %v177 = vld [vmem:[#allocation5 + $0x2a8] sm:$0xff]
    %v178 = vld [vmem:[#allocation5 + $0x2b0] sm:$0xff]
    %v179 = vld [vmem:[#allocation5 + $0x2b8] sm:$0xff]
    %v180 = vld [vmem:[#allocation5 + $0x2c0] sm:$0xff]
    %v181 = vld [vmem:[#allocation5 + $0x2c8] sm:$0xff]
    %v182 = vld [vmem:[#allocation5 + $0x2d0] sm:$0xff]
    %v183 = vld [vmem:[#allocation5 + $0x2d8] sm:$0xff]
    %v184 = vld [vmem:[#allocation5 + $0x2e0] sm:$0xff]
    %v185 = vld [vmem:[#allocation5 + $0x2e8] sm:$0xff]
    %v186 = vld [vmem:[#allocation5 + $0x2f0] sm:$0xff]
    %v187 = vld [vmem:[#allocation5 + $0x2f8] sm:$0xff]
    %v188 = vld [vmem:[#allocation5 + $0x300] sm:$0xff]
    %v189 = vld [vmem:[#allocation5 + $0x308] sm:$0xff]
    %v190 = vld [vmem:[#allocation5 + $0x310] sm:$0xff]
    %v191 = vld [vmem:[#allocation5 + $0x318] sm:$0xff]
    %v192 = vld [vmem:[#allocation5 + $0x320] sm:$0xff]
    %v193 = vld [vmem:[#allocation5 + $0x328] sm:$0xff]
    %v194 = vld [vmem:[#allocation5 + $0x330] sm:$0xff]
    %v195 = vld [vmem:[#allocation5 + $0x338] sm:$0xff]
    %v196 = vld [vmem:[#allocation5 + $0x340] sm:$0xff]
    %v197 = vld [vmem:[#allocation5 + $0x348] sm:$0xff]
    %v198 = vld [vmem:[#allocation5 + $0x350] sm:$0xff]
    %v199 = vld [vmem:[#allocation5 + $0x358] sm:$0xff]
    %v200 = vld [vmem:[#allocation5 + $0x360] sm:$0xff]
    %v201 = vld [vmem:[#allocation5 + $0x368] sm:$0xff]
    %v202 = vld [vmem:[#allocation5 + $0x370] sm:$0xff]
    %v203 = vld [vmem:[#allocation5 + $0x378] sm:$0xff]
    %v204 = vld [vmem:[#allocation5 + $0x380] sm:$0xff]
    %v205 = vld [vmem:[#allocation5 + $0x388] sm:$0xff]
    %v206 = vld [vmem:[#allocation5 + $0x390] sm:$0xff]
    %v207 = vld [vmem:[#allocation5 + $0x398] sm:$0xff]
    %v208 = vld [vmem:[#allocation5 + $0x3a0] sm:$0xff]
    %v209 = vld [vmem:[#allocation5 + $0x3a8] sm:$0xff]
    %v210 = vld [vmem:[#allocation5 + $0x3b0] sm:$0xff]
    %v211 = vld [vmem:[#allocation5 + $0x3b8] sm:$0xff]
    %v212 = vld [vmem:[#allocation5 + $0x3c0] sm:$0xff]
    %v213 = vld [vmem:[#allocation5 + $0x3c8] sm:$0xff]
    %v214 = vld [vmem:[#allocation5 + $0x3d0] sm:$0xff]
    %v215 = vld [vmem:[#allocation5 + $0x3d8] sm:$0xff]
    %v216 = vld [vmem:[#allocation5 + $0x3e0] sm:$0xff]
    %v217 = vld [vmem:[#allocation5 + $0x3e8] sm:$0xff]
    %v218 = vld [vmem:[#allocation5 + $0x3f0] sm:$0xff]
    %v219 = vld [vmem:[#allocation5 + $0x3f8] sm:$0xff]
    %v220 = vld [vmem:[#allocation5 + $0x400] sm:$0xff]
    %v221 = vld [vmem:[#allocation5 + $0x408] sm:$0xff]
    %v222 = vld [vmem:[#allocation5 + $0x410] sm:$0xff]
    %v223 = vld [vmem:[#allocation5 + $0x418] sm:$0xff]
    %v224 = vld [vmem:[#allocation5 + $0x420] sm:$0xff]
    %v225 = vld [vmem:[#allocation5 + $0x428] sm:$0xff]
    %v226 = vld [vmem:[#allocation5 + $0x430] sm:$0xff]
    %v227 = vld [vmem:[#allocation5 + $0x438] sm:$0xff]
    %v228 = vld [vmem:[#allocation5 + $0x440] sm:$0xff]
    %v229 = vld [vmem:[#allocation5 + $0x448] sm:$0xff]
    %v230 = vld [vmem:[#allocation5 + $0x450] sm:$0xff]
    %v231 = vld [vmem:[#allocation5 + $0x458] sm:$0xff]
    %v232 = vld [vmem:[#allocation5 + $0x460] sm:$0xff]
    %v233 = vld [vmem:[#allocation5 + $0x468] sm:$0xff]
    %v234 = vld [vmem:[#allocation5 + $0x470] sm:$0xff]
    %v235 = vld [vmem:[#allocation5 + $0x478] sm:$0xff]
    %v236 = vld [vmem:[#allocation5 + $0x480] sm:$0xff]
    %v237 = vld [vmem:[#allocation5 + $0x488] sm:$0xff]
    %v238 = vld [vmem:[#allocation5 + $0x490] sm:$0xff]
    %v239 = vld [vmem:[#allocation5 + $0x498] sm:$0xff]
    %v240 = vld [vmem:[#allocation5 + $0x4a0] sm:$0xff]
    %v241 = vld [vmem:[#allocation5 + $0x4a8] sm:$0xff]
    %v242 = vld [vmem:[#allocation5 + $0x4b0] sm:$0xff]
    %v243 = vld [vmem:[#allocation5 + $0x4b8] sm:$0xff]
    %v244 = vld [vmem:[#allocation5 + $0x4c0] sm:$0xff]
    %v245 = vld [vmem:[#allocation5 + $0x4c8] sm:$0xff]
    %v246 = vld [vmem:[#allocation5 + $0x4d0] sm:$0xff]
    %v247 = vld [vmem:[#allocation5 + $0x4d8] sm:$0xff]
    %v248 = vld [vmem:[#allocation5 + $0x4e0] sm:$0xff]
    %v249 = vld [vmem:[#allocation5 + $0x4e8] sm:$0xff]
    %v250 = vld [vmem:[#allocation5 + $0x4f0] sm:$0xff]
    %v251 = vld [vmem:[#allocation5 + $0x4f8] sm:$0xff]
    %v252 = vld [vmem:[#allocation5 + $0x500] sm:$0xff]
    %v253 = vld [vmem:[#allocation5 + $0x508] sm:$0xff]
    %v254 = vld [vmem:[#allocation5 + $0x510] sm:$0xff]
    %v255 = vld [vmem:[#allocation5 + $0x518] sm:$0xff]
    %v256 = vld [vmem:[#allocation5 + $0x520] sm:$0xff]
    %v257 = vld [vmem:[#allocation5 + $0x528] sm:$0xff]
    %v258 = vld [vmem:[#allocation5 + $0x530] sm:$0xff]
    %v259 = vld [vmem:[#allocation5 + $0x538] sm:$0xff]
    %v260 = vld [vmem:[#allocation5 + $0x540] sm:$0xff]
    %v261 = vld [vmem:[#allocation5 + $0x548] sm:$0xff]
    %v262 = vld [vmem:[#allocation5 + $0x550] sm:$0xff]
    %v263 = vld [vmem:[#allocation5 + $0x558] sm:$0xff]
    %v264 = vld [vmem:[#allocation5 + $0x560] sm:$0xff]
    %v265 = vld [vmem:[#allocation5 + $0x568] sm:$0xff]
    %v266 = vld [vmem:[#allocation5 + $0x570] sm:$0xff]
    %v267 = vld [vmem:[#allocation5 + $0x578] sm:$0xff]
    %v268 = vld [vmem:[#allocation5 + $0x580] sm:$0xff]
    %v269 = vld [vmem:[#allocation5 + $0x588] sm:$0xff]
    %v270 = vld [vmem:[#allocation5 + $0x590] sm:$0xff]
    %v271 = vld [vmem:[#allocation5 + $0x598] sm:$0xff]
    %v272 = vld [vmem:[#allocation5 + $0x5a0] sm:$0xff]
    %v273 = vld [vmem:[#allocation5 + $0x5a8] sm:$0xff]
    %v274 = vld [vmem:[#allocation5 + $0x5b0] sm:$0xff]
    %v275 = vld [vmem:[#allocation5 + $0x5b8] sm:$0xff]
    %v276 = vld [vmem:[#allocation5 + $0x5c0] sm:$0xff]
    %v277 = vld [vmem:[#allocation5 + $0x5c8] sm:$0xff]
    %v278 = vld [vmem:[#allocation5 + $0x5d0] sm:$0xff]
    %v279 = vld [vmem:[#allocation5 + $0x5d8] sm:$0xff]
    %v280 = vld [vmem:[#allocation5 + $0x5e0] sm:$0xff]
    %v281 = vld [vmem:[#allocation5 + $0x5e8] sm:$0xff]
    %v282 = vld [vmem:[#allocation5 + $0x5f0] sm:$0xff]
    %v283 = vld [vmem:[#allocation5 + $0x5f8] sm:$0xff]
    %v284 = vld [vmem:[#allocation5 + $0x600] sm:$0xff]
    %v285 = vld [vmem:[#allocation5 + $0x608] sm:$0xff]
    %v286 = vld [vmem:[#allocation5 + $0x610] sm:$0xff]
    %v287 = vld [vmem:[#allocation5 + $0x618] sm:$0xff]
    %v288 = vld [vmem:[#allocation5 + $0x620] sm:$0xff]
    %v289 = vld [vmem:[#allocation5 + $0x628] sm:$0xff]
    %v290 = vld [vmem:[#allocation5 + $0x630] sm:$0xff]
    %v291 = vld [vmem:[#allocation5 + $0x638] sm:$0xff]
    %v292 = vld [vmem:[#allocation5 + $0x640] sm:$0xff]
    %v293 = vld [vmem:[#allocation5 + $0x648] sm:$0xff]
    %v294 = vld [vmem:[#allocation5 + $0x650] sm:$0xff]
    %v295 = vld [vmem:[#allocation5 + $0x658] sm:$0xff]
    %v296 = vld [vmem:[#allocation5 + $0x660] sm:$0xff]
    %v297 = vld [vmem:[#allocation5 + $0x668] sm:$0xff]
    %v298 = vld [vmem:[#allocation5 + $0x670] sm:$0xff]
    %v299 = vld [vmem:[#allocation5 + $0x678] sm:$0xff]
    %v300 = vld [vmem:[#allocation5 + $0x680] sm:$0xff]
    %v301 = vld [vmem:[#allocation5 + $0x688] sm:$0xff]
    %v302 = vld [vmem:[#allocation5 + $0x690] sm:$0xff]
    %v303 = vld [vmem:[#allocation5 + $0x698] sm:$0xff]
    %v304 = vld [vmem:[#allocation5 + $0x6a0] sm:$0xff]
    %v305 = vld [vmem:[#allocation5 + $0x6a8] sm:$0xff]
    %v306 = vld [vmem:[#allocation5 + $0x6b0] sm:$0xff]
    %v307 = vld [vmem:[#allocation5 + $0x6b8] sm:$0xff]
    %v308 = vld [vmem:[#allocation5 + $0x6c0] sm:$0xff]
    %v309 = vld [vmem:[#allocation5 + $0x6c8] sm:$0xff]
    %v310 = vld [vmem:[#allocation5 + $0x6d0] sm:$0xff]
    %v311 = vld [vmem:[#allocation5 + $0x6d8] sm:$0xff]
    %v312 = vld [vmem:[#allocation5 + $0x6e0] sm:$0xff]
    %v313 = vld [vmem:[#allocation5 + $0x6e8] sm:$0xff]
    %v314 = vld [vmem:[#allocation5 + $0x6f0] sm:$0xff]
    %v315 = vld [vmem:[#allocation5 + $0x6f8] sm:$0xff]
    %v316 = vld [vmem:[#allocation5 + $0x700] sm:$0xff]
    %v317 = vld [vmem:[#allocation5 + $0x708] sm:$0xff]
    %v318 = vld [vmem:[#allocation5 + $0x710] sm:$0xff]
    %v319 = vld [vmem:[#allocation5 + $0x718] sm:$0xff]
    %v320 = vld [vmem:[#allocation5 + $0x720] sm:$0xff]
    %v321 = vld [vmem:[#allocation5 + $0x728] sm:$0xff]
    %v322 = vld [vmem:[#allocation5 + $0x730] sm:$0xff]
    %v323 = vld [vmem:[#allocation5 + $0x738] sm:$0xff]
    %v324 = vld [vmem:[#allocation5 + $0x740] sm:$0xff]
    %v325 = vld [vmem:[#allocation5 + $0x748] sm:$0xff]
    %v326 = vld [vmem:[#allocation5 + $0x750] sm:$0xff]
    %v327 = vld [vmem:[#allocation5 + $0x758] sm:$0xff]
    %v328 = vld [vmem:[#allocation5 + $0x760] sm:$0xff]
    %v329 = vld [vmem:[#allocation5 + $0x768] sm:$0xff]
    %v330 = vld [vmem:[#allocation5 + $0x770] sm:$0xff]
    %v331 = vld [vmem:[#allocation5 + $0x778] sm:$0xff]
    %v332 = vld [vmem:[#allocation5 + $0x780] sm:$0xff]
    %v333 = vld [vmem:[#allocation5 + $0x788] sm:$0xff]
    %v334 = vld [vmem:[#allocation5 + $0x790] sm:$0xff]
    %v335 = vld [vmem:[#allocation5 + $0x798] sm:$0xff]
    %v336 = vld [vmem:[#allocation5 + $0x7a0] sm:$0xff]
    %v337 = vld [vmem:[#allocation5 + $0x7a8] sm:$0xff]
    %v338 = vld [vmem:[#allocation5 + $0x7b0] sm:$0xff]
    %v339 = vld [vmem:[#allocation5 + $0x7b8] sm:$0xff]
    %v340 = vld [vmem:[#allocation5 + $0x7c0] sm:$0xff]
    %v341 = vld [vmem:[#allocation5 + $0x7c8] sm:$0xff]
    %v342 = vld [vmem:[#allocation5 + $0x7d0] sm:$0xff]
    %v343 = vld [vmem:[#allocation5 + $0x7d8] sm:$0xff]
    %v344 = vld [vmem:[#allocation5 + $0x7e0] sm:$0xff]
    %v345 = vld [vmem:[#allocation5 + $0x7e8] sm:$0xff]
    %v346 = vld [vmem:[#allocation5 + $0x7f0] sm:$0xff]
    %v347 = vld [vmem:[#allocation5 + $0x7f8] sm:$0xff]
    %v348 = vld [vmem:[#allocation5 + $0x800] sm:$0xff]
    %v349 = vld [vmem:[#allocation5 + $0x808] sm:$0xff]
    %v350 = vld [vmem:[#allocation5 + $0x810] sm:$0xff]
    %v351 = vld [vmem:[#allocation5 + $0x818] sm:$0xff]
    %v352 = vld [vmem:[#allocation5 + $0x820] sm:$0xff]
    %v353 = vld [vmem:[#allocation5 + $0x828] sm:$0xff]
    %v354 = vld [vmem:[#allocation5 + $0x830] sm:$0xff]
    %v355 = vld [vmem:[#allocation5 + $0x838] sm:$0xff]
    %v356 = vld [vmem:[#allocation5 + $0x840] sm:$0xff]
    %v357 = vld [vmem:[#allocation5 + $0x848] sm:$0xff]
    %v358 = vld [vmem:[#allocation5 + $0x850] sm:$0xff]
    %v359 = vld [vmem:[#allocation5 + $0x858] sm:$0xff]
    %v360 = vld [vmem:[#allocation5 + $0x860] sm:$0xff]
    %v361 = vld [vmem:[#allocation5 + $0x868] sm:$0xff]
    %v362 = vld [vmem:[#allocation5 + $0x870] sm:$0xff]
    %v363 = vld [vmem:[#allocation5 + $0x878] sm:$0xff]
    %v364 = vld [vmem:[#allocation5 + $0x880] sm:$0xff]
    %v365 = vld [vmem:[#allocation5 + $0x888] sm:$0xff]
    %v366 = vld [vmem:[#allocation5 + $0x890] sm:$0xff]
    %v367 = vld [vmem:[#allocation5 + $0x898] sm:$0xff]
    %v368 = vld [vmem:[#allocation5 + $0x8a0] sm:$0xff]
    %v369 = vld [vmem:[#allocation5 + $0x8a8] sm:$0xff]
    %v370 = vld [vmem:[#allocation5 + $0x8b0] sm:$0xff]
    %v371 = vld [vmem:[#allocation5 + $0x8b8] sm:$0xff]
    %v372 = vld [vmem:[#allocation5 + $0x8c0] sm:$0xff]
    %v373 = vld [vmem:[#allocation5 + $0x8c8] sm:$0xff]
    %v374 = vld [vmem:[#allocation5 + $0x8d0] sm:$0xff]
    %v375 = vld [vmem:[#allocation5 + $0x8d8] sm:$0xff]
    %v376 = vld [vmem:[#allocation5 + $0x8e0] sm:$0xff]
    %v377 = vld [vmem:[#allocation5 + $0x8e8] sm:$0xff]
    %v378 = vld [vmem:[#allocation5 + $0x8f0] sm:$0xff]
    %v379 = vld [vmem:[#allocation5 + $0x8f8] sm:$0xff]
    %v380 = vld [vmem:[#allocation5 + $0x900] sm:$0xff]
    %v381 = vld [vmem:[#allocation5 + $0x908] sm:$0xff]
    %v382 = vld [vmem:[#allocation5 + $0x910] sm:$0xff]
    %v383 = vld [vmem:[#allocation5 + $0x918] sm:$0xff]
    %v384 = vld [vmem:[#allocation5 + $0x920] sm:$0xff]
    %v385 = vld [vmem:[#allocation5 + $0x928] sm:$0xff]
    %v386 = vld [vmem:[#allocation5 + $0x930] sm:$0xff]
    %v387 = vld [vmem:[#allocation5 + $0x938] sm:$0xff]
    %v388 = vld [vmem:[#allocation5 + $0x940] sm:$0xff]
    %v389 = vld [vmem:[#allocation5 + $0x948] sm:$0xff]
    %v390 = vld [vmem:[#allocation5 + $0x950] sm:$0xff]
    %v391 = vld [vmem:[#allocation5 + $0x958] sm:$0xff]
    %v392 = vld [vmem:[#allocation5 + $0x960] sm:$0xff]
    %v393 = vld [vmem:[#allocation5 + $0x968] sm:$0xff]
    %v394 = vld [vmem:[#allocation5 + $0x970] sm:$0xff]
    %v395 = vld [vmem:[#allocation5 + $0x978] sm:$0xff]
    %v396 = vld [vmem:[#allocation5 + $0x980] sm:$0xff]
    %v397 = vld [vmem:[#allocation5 + $0x988] sm:$0xff]
    %v398 = vld [vmem:[#allocation5 + $0x990] sm:$0xff]
    %v399 = vld [vmem:[#allocation5 + $0x998] sm:$0xff]
    %v400 = vld [vmem:[#allocation5 + $0x9a0] sm:$0xff]
    %v401 = vld [vmem:[#allocation5 + $0x9a8] sm:$0xff]
    %v402 = vld [vmem:[#allocation5 + $0x9b0] sm:$0xff]
    %v403 = vld [vmem:[#allocation5 + $0x9b8] sm:$0xff]
    %v404 = vld [vmem:[#allocation5 + $0x9c0] sm:$0xff]
    %v405 = vld [vmem:[#allocation5 + $0x9c8] sm:$0xff]
    %v406 = vld [vmem:[#allocation5 + $0x9d0] sm:$0xff]
    %v407 = vld [vmem:[#allocation5 + $0x9d8] sm:$0xff]
    %v408 = vld [vmem:[#allocation5 + $0x9e0] sm:$0xff]
    %v409 = vld [vmem:[#allocation5 + $0x9e8] sm:$0xff]
    %v410 = vld [vmem:[#allocation5 + $0x9f0] sm:$0xff]
    %v411 = vld [vmem:[#allocation5 + $0x9f8] sm:$0xff]
    %v412 = vld [vmem:[#allocation5 + $0xa00] sm:$0xff]
    %v413 = vld [vmem:[#allocation5 + $0xa08] sm:$0xff]
    %v414 = vld [vmem:[#allocation5 + $0xa10] sm:$0xff]
    %v415 = vld [vmem:[#allocation5 + $0xa18] sm:$0xff]
    %v416 = vld [vmem:[#allocation5 + $0xa20] sm:$0xff]
    %v417 = vld [vmem:[#allocation5 + $0xa28] sm:$0xff]
    %v418 = vld [vmem:[#allocation5 + $0xa30] sm:$0xff]
    %v419 = vld [vmem:[#allocation5 + $0xa38] sm:$0xff]
    %v420 = vld [vmem:[#allocation5 + $0xa40] sm:$0xff]
    %v421 = vld [vmem:[#allocation5 + $0xa48] sm:$0xff]
    %v422 = vld [vmem:[#allocation5 + $0xa50] sm:$0xff]
    %v423 = vld [vmem:[#allocation5 + $0xa58] sm:$0xff]
    %v424 = vld [vmem:[#allocation5 + $0xa60] sm:$0xff]
    %v425 = vld [vmem:[#allocation5 + $0xa68] sm:$0xff]
    %v426 = vld [vmem:[#allocation5 + $0xa70] sm:$0xff]
    %v427 = vld [vmem:[#allocation5 + $0xa78] sm:$0xff]
    %v428 = vld [vmem:[#allocation5 + $0xa80] sm:$0xff]
    %v429 = vld [vmem:[#allocation5 + $0xa88] sm:$0xff]
    %v430 = vld [vmem:[#allocation5 + $0xa90] sm:$0xff]
    %v431 = vld [vmem:[#allocation5 + $0xa98] sm:$0xff]
    %v432 = vld [vmem:[#allocation5 + $0xaa0] sm:$0xff]
    %v433 = vld [vmem:[#allocation5 + $0xaa8] sm:$0xff]
    %v434 = vld [vmem:[#allocation5 + $0xab0] sm:$0xff]
    %v435 = vld [vmem:[#allocation5 + $0xab8] sm:$0xff]
    %v436 = vld [vmem:[#allocation5 + $0xac0] sm:$0xff]
    %v437 = vld [vmem:[#allocation5 + $0xac8] sm:$0xff]
    %v438 = vld [vmem:[#allocation5 + $0xad0] sm:$0xff]
    %v439 = vld [vmem:[#allocation5 + $0xad8] sm:$0xff]
    %v440 = vld [vmem:[#allocation5 + $0xae0] sm:$0xff]
    %v441 = vld [vmem:[#allocation5 + $0xae8] sm:$0xff]
    %v442 = vld [vmem:[#allocation5 + $0xaf0] sm:$0xff]
    %v443 = vld [vmem:[#allocation5 + $0xaf8] sm:$0xff]
    %v444 = vld [vmem:[#allocation5 + $0xb00] sm:$0xff]
    %v445 = vld [vmem:[#allocation5 + $0xb08] sm:$0xff]
    %v446 = vld [vmem:[#allocation5 + $0xb10] sm:$0xff]
    %v447 = vld [vmem:[#allocation5 + $0xb18] sm:$0xff]
    %v448 = vld [vmem:[#allocation5 + $0xb20] sm:$0xff]
    %v449 = vld [vmem:[#allocation5 + $0xb28] sm:$0xff]
    %v450 = vld [vmem:[#allocation5 + $0xb30] sm:$0xff]
    %v451 = vld [vmem:[#allocation5 + $0xb38] sm:$0xff]
    %v452 = vld [vmem:[#allocation5 + $0xb40] sm:$0xff]
    %v453 = vld [vmem:[#allocation5 + $0xb48] sm:$0xff]
    %v454 = vld [vmem:[#allocation5 + $0xb50] sm:$0xff]
    %v455 = vld [vmem:[#allocation5 + $0xb58] sm:$0xff]
    %v456 = vld [vmem:[#allocation5 + $0xb60] sm:$0xff]
    %v457 = vld [vmem:[#allocation5 + $0xb68] sm:$0xff]
    %v458 = vld [vmem:[#allocation5 + $0xb70] sm:$0xff]
    %v459 = vld [vmem:[#allocation5 + $0xb78] sm:$0xff]
    %v460 = vld [vmem:[#allocation5 + $0xb80] sm:$0xff]
    %v461 = vld [vmem:[#allocation5 + $0xb88] sm:$0xff]
    %v462 = vld [vmem:[#allocation5 + $0xb90] sm:$0xff]
    %v463 = vld [vmem:[#allocation5 + $0xb98] sm:$0xff]
    %v464 = vld [vmem:[#allocation5 + $0xba0] sm:$0xff]
    %v465 = vld [vmem:[#allocation5 + $0xba8] sm:$0xff]
    %v466 = vld [vmem:[#allocation5 + $0xbb0] sm:$0xff]
    %v467 = vld [vmem:[#allocation5 + $0xbb8] sm:$0xff]
    %v468 = vld [vmem:[#allocation5 + $0xbc0] sm:$0xff]
    %v469 = vld [vmem:[#allocation5 + $0xbc8] sm:$0xff]
    %v470 = vld [vmem:[#allocation5 + $0xbd0] sm:$0xff]
    %v471 = vld [vmem:[#allocation5 + $0xbd8] sm:$0xff]
    %v472 = vld [vmem:[#allocation5 + $0xbe0] sm:$0xff]
    %v473 = vld [vmem:[#allocation5 + $0xbe8] sm:$0xff]
    %v474 = vld [vmem:[#allocation5 + $0xbf0] sm:$0xff]
    %v475 = vld [vmem:[#allocation5 + $0xbf8] sm:$0xff]
    %v476 = vld [vmem:[#allocation5 + $0xc00] sm:$0xff]
    %v477 = vld [vmem:[#allocation5 + $0xc08] sm:$0xff]
    %v478 = vld [vmem:[#allocation5 + $0xc10] sm:$0xff]
    %v479 = vld [vmem:[#allocation5 + $0xc18] sm:$0xff]
    %v480 = vld [vmem:[#allocation5 + $0xc20] sm:$0xff]
    %v481 = vld [vmem:[#allocation5 + $0xc28] sm:$0xff]
    %v482 = vld [vmem:[#allocation5 + $0xc30] sm:$0xff]
    %v483 = vld [vmem:[#allocation5 + $0xc38] sm:$0xff]
    %v484 = vld [vmem:[#allocation5 + $0xc40] sm:$0xff]
    %v485 = vld [vmem:[#allocation5 + $0xc48] sm:$0xff]
    %v486 = vld [vmem:[#allocation5 + $0xc50] sm:$0xff]
    %v487 = vld [vmem:[#allocation5 + $0xc58] sm:$0xff]
    %v488 = vld [vmem:[#allocation5 + $0xc60] sm:$0xff]
    %v489 = vld [vmem:[#allocation5 + $0xc68] sm:$0xff]
    %v490 = vld [vmem:[#allocation5 + $0xc70] sm:$0xff]
    %v491 = vld [vmem:[#allocation5 + $0xc78] sm:$0xff]
    %v492 = vld [vmem:[#allocation5 + $0xc80] sm:$0xff]
    %v493 = vld [vmem:[#allocation5 + $0xc88] sm:$0xff]
    %v494 = vld [vmem:[#allocation5 + $0xc90] sm:$0xff]
    %v495 = vld [vmem:[#allocation5 + $0xc98] sm:$0xff]
    %v496 = vld [vmem:[#allocation5 + $0xca0] sm:$0xff]
    %v497 = vld [vmem:[#allocation5 + $0xca8] sm:$0xff]
    %v498 = vld [vmem:[#allocation5 + $0xcb0] sm:$0xff]
    %v499 = vld [vmem:[#allocation5 + $0xcb8] sm:$0xff]
    %v500 = vld [vmem:[#allocation5 + $0xcc0] sm:$0xff]
    %v501 = vld [vmem:[#allocation5 + $0xcc8] sm:$0xff]
    %v502 = vld [vmem:[#allocation5 + $0xcd0] sm:$0xff]
    %v503 = vld [vmem:[#allocation5 + $0xcd8] sm:$0xff]
    %v504 = vld [vmem:[#allocation5 + $0xce0] sm:$0xff]
    %v505 = vld [vmem:[#allocation5 + $0xce8] sm:$0xff]
    %v506 = vld [vmem:[#allocation5 + $0xcf0] sm:$0xff]
    %v507 = vld [vmem:[#allocation5 + $0xcf8] sm:$0xff]
    %v508 = vld [vmem:[#allocation5 + $0xd00] sm:$0xff]
    %v509 = vld [vmem:[#allocation5 + $0xd08] sm:$0xff]
    %v510 = vld [vmem:[#allocation5 + $0xd10] sm:$0xff]
    %v511 = vld [vmem:[#allocation5 + $0xd18] sm:$0xff]
    %v512 = vld [vmem:[#allocation5 + $0xd20] sm:$0xff]
    %v513 = vld [vmem:[#allocation5 + $0xd28] sm:$0xff]
    %v514 = vld [vmem:[#allocation5 + $0xd30] sm:$0xff]
    %v515 = vld [vmem:[#allocation5 + $0xd38] sm:$0xff]
    %v516 = vld [vmem:[#allocation5 + $0xd40] sm:$0xff]
    %v517 = vld [vmem:[#allocation5 + $0xd48] sm:$0xff]
    %v518 = vld [vmem:[#allocation5 + $0xd50] sm:$0xff]
    %v519 = vld [vmem:[#allocation5 + $0xd58] sm:$0xff]
    %v520 = vld [vmem:[#allocation5 + $0xd60] sm:$0xff]
    %v521 = vld [vmem:[#allocation5 + $0xd68] sm:$0xff]
    %v522 = vld [vmem:[#allocation5 + $0xd70] sm:$0xff]
    %v523 = vld [vmem:[#allocation5 + $0xd78] sm:$0xff]
    %v524 = vld [vmem:[#allocation5 + $0xd80] sm:$0xff]
    %v525 = vld [vmem:[#allocation5 + $0xd88] sm:$0xff]
    %v526 = vld [vmem:[#allocation5 + $0xd90] sm:$0xff]
    %v527 = vld [vmem:[#allocation5 + $0xd98] sm:$0xff]
    %v528 = vld [vmem:[#allocation5 + $0xda0] sm:$0xff]
    %v529 = vld [vmem:[#allocation5 + $0xda8] sm:$0xff]
    %v530 = vld [vmem:[#allocation5 + $0xdb0] sm:$0xff]
    %v531 = vld [vmem:[#allocation5 + $0xdb8] sm:$0xff]
    %v532 = vld [vmem:[#allocation5 + $0xdc0] sm:$0xff]
    %v533 = vld [vmem:[#allocation5 + $0xdc8] sm:$0xff]
    %v534 = vld [vmem:[#allocation5 + $0xdd0] sm:$0xff]
    %v535 = vld [vmem:[#allocation5 + $0xdd8] sm:$0xff]
    %v536 = vld [vmem:[#allocation5 + $0xde0] sm:$0xff]
    %v537 = vld [vmem:[#allocation5 + $0xde8] sm:$0xff]
    %v538 = vld [vmem:[#allocation5 + $0xdf0] sm:$0xff]
    %v539 = vld [vmem:[#allocation5 + $0xdf8] sm:$0xff]
    %v540 = vld [vmem:[#allocation5 + $0xe00] sm:$0xff]
    %v541 = vld [vmem:[#allocation5 + $0xe08] sm:$0xff]
    %v542 = vld [vmem:[#allocation5 + $0xe10] sm:$0xff]
    %v543 = vld [vmem:[#allocation5 + $0xe18] sm:$0xff]
    %v544 = vld [vmem:[#allocation5 + $0xe20] sm:$0xff]
    %v545 = vld [vmem:[#allocation5 + $0xe28] sm:$0xff]
    %v546 = vld [vmem:[#allocation5 + $0xe30] sm:$0xff]
    %v547 = vld [vmem:[#allocation5 + $0xe38] sm:$0xff]
    %v548 = vld [vmem:[#allocation5 + $0xe40] sm:$0xff]
    %v549 = vld [vmem:[#allocation5 + $0xe48] sm:$0xff]
    %v550 = vld [vmem:[#allocation5 + $0xe50] sm:$0xff]
    %v551 = vld [vmem:[#allocation5 + $0xe58] sm:$0xff]
    %v552 = vld [vmem:[#allocation5 + $0xe60] sm:$0xff]
    %v553 = vld [vmem:[#allocation5 + $0xe68] sm:$0xff]
    %v554 = vld [vmem:[#allocation5 + $0xe70] sm:$0xff]
    %v555 = vld [vmem:[#allocation5 + $0xe78] sm:$0xff]
    %v556 = vld [vmem:[#allocation5 + $0xe80] sm:$0xff]
    %v557 = vld [vmem:[#allocation5 + $0xe88] sm:$0xff]
    %v558 = vld [vmem:[#allocation5 + $0xe90] sm:$0xff]
    %v559 = vld [vmem:[#allocation5 + $0xe98] sm:$0xff]
    %v560 = vld [vmem:[#allocation5 + $0xea0] sm:$0xff]
    %v561 = vld [vmem:[#allocation5 + $0xea8] sm:$0xff]
    %v562 = vld [vmem:[#allocation5 + $0xeb0] sm:$0xff]
    %v563 = vld [vmem:[#allocation5 + $0xeb8] sm:$0xff]
    %v564 = vld [vmem:[#allocation5 + $0xec0] sm:$0xff]
    %v565 = vld [vmem:[#allocation5 + $0xec8] sm:$0xff]
    %v566 = vld [vmem:[#allocation5 + $0xed0] sm:$0xff]
    %v567 = vld [vmem:[#allocation5 + $0xed8] sm:$0xff]
    %v568 = vld [vmem:[#allocation5 + $0xee0] sm:$0xff]
    %v569 = vld [vmem:[#allocation5 + $0xee8] sm:$0xff]
    %v570 = vld [vmem:[#allocation5 + $0xef0] sm:$0xff]
    %v571 = vld [vmem:[#allocation5 + $0xef8] sm:$0xff]
    %v572 = vld [vmem:[#allocation7] sm:$0xf]
    %v574 = vlaneseq
    %v575 = vshrl.u32 %v574, 7
    %v576 = vsub.s32 0, %v575
    %v577 = vrot.slane %v572, %v576
    %v578 = vlaneseq
    %v579 = vshrl.u32 %v578, 7
    %v580 = vsub.s32 1, %v579
    %v581 = vrot.slane %v572, %v580
    %v582 = vlaneseq
    %v583 = vshrl.u32 %v582, 7
    %v584 = vsub.s32 2, %v583
    %v585 = vrot.slane %v572, %v584
    %v586 = vlaneseq
    %v587 = vshrl.u32 %v586, 7
    %v588 = vsub.s32 3, %v587
    %v589 = vrot.slane %v572, %v588
    %v602 = vunpack.c.l.b16 %v84
    %v603 = vunpack.c.h.b16 %v84
    %v604 = vunpack.c.l.b16 %v85
    %v605 = vunpack.c.h.b16 %v85
    %v606 = vunpack.c.l.b16 %v86
    %v607 = vunpack.c.h.b16 %v86
    %v608 = vunpack.c.l.b16 %v87
    %v609 = vunpack.c.h.b16 %v87
    %v610 = vunpack.c.l.b16 %v88
    %v611 = vunpack.c.h.b16 %v88
    %v612 = vunpack.c.l.b16 %v89
    %v613 = vunpack.c.h.b16 %v89
    %v614 = vunpack.c.l.b16 %v90
    %v615 = vunpack.c.h.b16 %v90
    %v616 = vunpack.c.l.b16 %v91
    %v617 = vpack.c.b16 %v602, %v602
    %v618 = vpack.c.b16 %v603, %v603
    %v619 = vpack.c.b16 %v604, %v604
    %v620 = vpack.c.b16 %v605, %v605
    %v621 = vpack.c.b16 %v606, %v606
    %v622 = vpack.c.b16 %v607, %v607
    %v623 = vpack.c.b16 %v608, %v608
    %v624 = vpack.c.b16 %v609, %v609
    %v625 = vpack.c.b16 %v610, %v610
    %v626 = vpack.c.b16 %v611, %v611
    %v627 = vpack.c.b16 %v612, %v612
    %v628 = vpack.c.b16 %v613, %v613
    %v629 = vpack.c.b16 %v614, %v614
    %v630 = vpack.c.b16 %v615, %v615
    %v631 = vpack.c.b16 %v616, %v616
    %v1127 = vunpack.c.l.b16 %v92
    %v1128 = vunpack.c.h.b16 %v92
    %v1129 = vunpack.c.l.b16 %v93
    %v1130 = vunpack.c.h.b16 %v93
    %v1131 = vunpack.c.l.b16 %v94
    %v1132 = vunpack.c.h.b16 %v94
    %v1133 = vunpack.c.l.b16 %v95
    %v1134 = vunpack.c.h.b16 %v95
    %v1135 = vunpack.c.l.b16 %v96
    %v1136 = vunpack.c.h.b16 %v96
    %v1137 = vunpack.c.l.b16 %v97
    %v1138 = vunpack.c.h.b16 %v97
    %v1139 = vunpack.c.l.b16 %v98
    %v1140 = vunpack.c.h.b16 %v98
    %v1141 = vunpack.c.l.b16 %v99
    %v1142 = vunpack.c.h.b16 %v99
    %v1143 = vunpack.c.l.b16 %v100
    %v1144 = vunpack.c.h.b16 %v100
    %v1145 = vunpack.c.l.b16 %v101
    %v1146 = vunpack.c.h.b16 %v101
    %v1147 = vunpack.c.l.b16 %v102
    %v1148 = vunpack.c.h.b16 %v102
    %v1149 = vunpack.c.l.b16 %v103
    %v1150 = vunpack.c.h.b16 %v103
    %v1151 = vunpack.c.l.b16 %v104
    %v1152 = vunpack.c.h.b16 %v104
    %v1153 = vunpack.c.l.b16 %v105
    %v1154 = vunpack.c.h.b16 %v105
    %v1155 = vunpack.c.l.b16 %v106
    %v1156 = vunpack.c.h.b16 %v106
    %v1157 = vunpack.c.l.b16 %v107
    %v1158 = vunpack.c.h.b16 %v107
    %v1159 = vunpack.c.l.b16 %v108
    %v1160 = vunpack.c.h.b16 %v108
    %v1161 = vunpack.c.l.b16 %v109
    %v1162 = vunpack.c.h.b16 %v109
    %v1163 = vunpack.c.l.b16 %v110
    %v1164 = vunpack.c.h.b16 %v110
    %v1165 = vunpack.c.l.b16 %v111
    %v1166 = vunpack.c.h.b16 %v111
    %v1167 = vunpack.c.l.b16 %v112
    %v1168 = vunpack.c.h.b16 %v112
    %v1169 = vunpack.c.l.b16 %v113
    %v1170 = vunpack.c.h.b16 %v113
    %v1171 = vunpack.c.l.b16 %v114
    %v1172 = vunpack.c.h.b16 %v114
    %v1173 = vunpack.c.l.b16 %v115
    %v1174 = vunpack.c.h.b16 %v115
    %v1175 = vunpack.c.l.b16 %v116
    %v1176 = vunpack.c.h.b16 %v116
    %v1177 = vunpack.c.l.b16 %v117
    %v1178 = vunpack.c.h.b16 %v117
    %v1179 = vunpack.c.l.b16 %v118
    %v1180 = vunpack.c.h.b16 %v118
    %v1181 = vunpack.c.l.b16 %v119
    %v1182 = vunpack.c.h.b16 %v119
    %v1183 = vunpack.c.l.b16 %v120
    %v1184 = vunpack.c.h.b16 %v120
    %v1185 = vunpack.c.l.b16 %v121
    %v1186 = vunpack.c.h.b16 %v121
    %v1187 = vunpack.c.l.b16 %v122
    %v1188 = vunpack.c.h.b16 %v122
    %v1189 = vunpack.c.l.b16 %v123
    %v1190 = vunpack.c.h.b16 %v123
    %v1191 = vunpack.c.l.b16 %v124
    %v1192 = vunpack.c.h.b16 %v124
    %v1193 = vunpack.c.l.b16 %v125
    %v1194 = vunpack.c.h.b16 %v125
    %v1195 = vunpack.c.l.b16 %v126
    %v1196 = vunpack.c.h.b16 %v126
    %v1197 = vunpack.c.l.b16 %v127
    %v1198 = vunpack.c.h.b16 %v127
    %v1199 = vunpack.c.l.b16 %v128
    %v1200 = vunpack.c.h.b16 %v128
    %v1201 = vunpack.c.l.b16 %v129
    %v1202 = vunpack.c.h.b16 %v129
    %v1203 = vunpack.c.l.b16 %v130
    %v1204 = vunpack.c.h.b16 %v130
    %v1205 = vunpack.c.l.b16 %v131
    %v1206 = vunpack.c.h.b16 %v131
    %v1207 = vunpack.c.l.b16 %v132
    %v1208 = vunpack.c.h.b16 %v132
    %v1209 = vunpack.c.l.b16 %v133
    %v1210 = vunpack.c.h.b16 %v133
    %v1211 = vunpack.c.l.b16 %v134
    %v1212 = vunpack.c.h.b16 %v134
    %v1213 = vunpack.c.l.b16 %v135
    %v1214 = vunpack.c.h.b16 %v135
    %v1215 = vunpack.c.l.b16 %v136
    %v1216 = vunpack.c.h.b16 %v136
    %v1217 = vunpack.c.l.b16 %v137
    %v1218 = vunpack.c.h.b16 %v137
    %v1219 = vunpack.c.l.b16 %v138
    %v1220 = vunpack.c.h.b16 %v138
    %v1221 = vunpack.c.l.b16 %v139
    %v1222 = vunpack.c.h.b16 %v139
    %v1223 = vunpack.c.l.b16 %v140
    %v1224 = vunpack.c.h.b16 %v140
    %v1225 = vunpack.c.l.b16 %v141
    %v1226 = vunpack.c.h.b16 %v141
    %v1227 = vunpack.c.l.b16 %v142
    %v1228 = vunpack.c.h.b16 %v142
    %v1229 = vunpack.c.l.b16 %v143
    %v1230 = vunpack.c.h.b16 %v143
    %v1231 = vunpack.c.l.b16 %v144
    %v1232 = vunpack.c.h.b16 %v144
    %v1233 = vunpack.c.l.b16 %v145
    %v1234 = vunpack.c.h.b16 %v145
    %v1235 = vunpack.c.l.b16 %v146
    %v1236 = vunpack.c.h.b16 %v146
    %v1237 = vunpack.c.l.b16 %v147
    %v1238 = vunpack.c.h.b16 %v147
    %v1239 = vunpack.c.l.b16 %v148
    %v1240 = vunpack.c.h.b16 %v148
    %v1241 = vunpack.c.l.b16 %v149
    %v1242 = vunpack.c.h.b16 %v149
    %v1243 = vunpack.c.l.b16 %v150
    %v1244 = vunpack.c.h.b16 %v150
    %v1245 = vunpack.c.l.b16 %v151
    %v1246 = vunpack.c.h.b16 %v151
    %v1247 = vunpack.c.l.b16 %v152
    %v1248 = vunpack.c.h.b16 %v152
    %v1249 = vunpack.c.l.b16 %v153
    %v1250 = vunpack.c.h.b16 %v153
    %v1251 = vunpack.c.l.b16 %v154
    %v1252 = vunpack.c.h.b16 %v154
    %v1253 = vunpack.c.l.b16 %v155
    %v1254 = vunpack.c.h.b16 %v155
    %v1255 = vunpack.c.l.b16 %v156
    %v1256 = vunpack.c.h.b16 %v156
    %v1257 = vunpack.c.l.b16 %v157
    %v1258 = vunpack.c.h.b16 %v157
    %v1259 = vunpack.c.l.b16 %v158
    %v1260 = vunpack.c.h.b16 %v158
    %v1261 = vunpack.c.l.b16 %v159
    %v1262 = vunpack.c.h.b16 %v159
    %v1263 = vunpack.c.l.b16 %v160
    %v1264 = vunpack.c.h.b16 %v160
    %v1265 = vunpack.c.l.b16 %v161
    %v1266 = vunpack.c.h.b16 %v161
    %v1267 = vunpack.c.l.b16 %v162
    %v1268 = vunpack.c.h.b16 %v162
    %v1269 = vunpack.c.l.b16 %v163
    %v1270 = vunpack.c.h.b16 %v163
    %v1271 = vunpack.c.l.b16 %v164
    %v1272 = vunpack.c.h.b16 %v164
    %v1273 = vunpack.c.l.b16 %v165
    %v1274 = vunpack.c.h.b16 %v165
    %v1275 = vunpack.c.l.b16 %v166
    %v1276 = vunpack.c.h.b16 %v166
    %v1277 = vunpack.c.l.b16 %v167
    %v1278 = vunpack.c.h.b16 %v167
    %v1279 = vunpack.c.l.b16 %v168
    %v1280 = vunpack.c.h.b16 %v168
    %v1281 = vunpack.c.l.b16 %v169
    %v1282 = vunpack.c.h.b16 %v169
    %v1283 = vunpack.c.l.b16 %v170
    %v1284 = vunpack.c.h.b16 %v170
    %v1285 = vunpack.c.l.b16 %v171
    %v1286 = vunpack.c.h.b16 %v171
    %v1287 = vunpack.c.l.b16 %v172
    %v1288 = vunpack.c.h.b16 %v172
    %v1289 = vunpack.c.l.b16 %v173
    %v1290 = vunpack.c.h.b16 %v173
    %v1291 = vunpack.c.l.b16 %v174
    %v1292 = vunpack.c.h.b16 %v174
    %v1293 = vunpack.c.l.b16 %v175
    %v1294 = vunpack.c.h.b16 %v175
    %v1295 = vunpack.c.l.b16 %v176
    %v1296 = vunpack.c.h.b16 %v176
    %v1297 = vunpack.c.l.b16 %v177
    %v1298 = vunpack.c.h.b16 %v177
    %v1299 = vunpack.c.l.b16 %v178
    %v1300 = vunpack.c.h.b16 %v178
    %v1301 = vunpack.c.l.b16 %v179
    %v1302 = vunpack.c.h.b16 %v179
    %v1303 = vunpack.c.l.b16 %v180
    %v1304 = vunpack.c.h.b16 %v180
    %v1305 = vunpack.c.l.b16 %v181
    %v1306 = vunpack.c.h.b16 %v181
    %v1307 = vunpack.c.l.b16 %v182
    %v1308 = vunpack.c.h.b16 %v182
    %v1309 = vunpack.c.l.b16 %v183
    %v1310 = vunpack.c.h.b16 %v183
    %v1311 = vunpack.c.l.b16 %v184
    %v1312 = vunpack.c.h.b16 %v184
    %v1313 = vunpack.c.l.b16 %v185
    %v1314 = vunpack.c.h.b16 %v185
    %v1315 = vunpack.c.l.b16 %v186
    %v1316 = vunpack.c.h.b16 %v186
    %v1317 = vunpack.c.l.b16 %v187
    %v1318 = vunpack.c.h.b16 %v187
    %v1319 = vunpack.c.l.b16 %v188
    %v1320 = vunpack.c.h.b16 %v188
    %v1321 = vunpack.c.l.b16 %v189
    %v1322 = vunpack.c.h.b16 %v189
    %v1323 = vunpack.c.l.b16 %v190
    %v1324 = vunpack.c.h.b16 %v190
    %v1325 = vunpack.c.l.b16 %v191
    %v1326 = vunpack.c.h.b16 %v191
    %v1327 = vunpack.c.l.b16 %v192
    %v1328 = vunpack.c.h.b16 %v192
    %v1329 = vunpack.c.l.b16 %v193
    %v1330 = vunpack.c.h.b16 %v193
    %v1331 = vunpack.c.l.b16 %v194
    %v1332 = vunpack.c.h.b16 %v194
    %v1333 = vunpack.c.l.b16 %v195
    %v1334 = vunpack.c.h.b16 %v195
    %v1335 = vunpack.c.l.b16 %v196
    %v1336 = vunpack.c.h.b16 %v196
    %v1337 = vunpack.c.l.b16 %v197
    %v1338 = vunpack.c.h.b16 %v197
    %v1339 = vunpack.c.l.b16 %v198
    %v1340 = vunpack.c.h.b16 %v198
    %v1341 = vunpack.c.l.b16 %v199
    %v1342 = vunpack.c.h.b16 %v199
    %v1343 = vunpack.c.l.b16 %v200
    %v1344 = vunpack.c.h.b16 %v200
    %v1345 = vunpack.c.l.b16 %v201
    %v1346 = vunpack.c.h.b16 %v201
    %v1347 = vunpack.c.l.b16 %v202
    %v1348 = vunpack.c.h.b16 %v202
    %v1349 = vunpack.c.l.b16 %v203
    %v1350 = vunpack.c.h.b16 %v203
    %v1351 = vunpack.c.l.b16 %v204
    %v1352 = vunpack.c.h.b16 %v204
    %v1353 = vunpack.c.l.b16 %v205
    %v1354 = vunpack.c.h.b16 %v205
    %v1355 = vunpack.c.l.b16 %v206
    %v1356 = vunpack.c.h.b16 %v206
    %v1357 = vunpack.c.l.b16 %v207
    %v1358 = vunpack.c.h.b16 %v207
    %v1359 = vunpack.c.l.b16 %v208
    %v1360 = vunpack.c.h.b16 %v208
    %v1361 = vunpack.c.l.b16 %v209
    %v1362 = vunpack.c.h.b16 %v209
    %v1363 = vunpack.c.l.b16 %v210
    %v1364 = vunpack.c.h.b16 %v210
    %v1365 = vunpack.c.l.b16 %v211
    %v1366 = vunpack.c.h.b16 %v211
    %v1367 = vunpack.c.l.b16 %v212
    %v1368 = vunpack.c.h.b16 %v212
    %v1369 = vunpack.c.l.b16 %v213
    %v1370 = vunpack.c.h.b16 %v213
    %v1371 = vunpack.c.l.b16 %v214
    %v1372 = vunpack.c.h.b16 %v214
    %v1373 = vunpack.c.l.b16 %v215
    %v1374 = vunpack.c.h.b16 %v215
    %v1375 = vunpack.c.l.b16 %v216
    %v1376 = vunpack.c.h.b16 %v216
    %v1377 = vunpack.c.l.b16 %v217
    %v1378 = vunpack.c.h.b16 %v217
    %v1379 = vunpack.c.l.b16 %v218
    %v1380 = vunpack.c.h.b16 %v218
    %v1381 = vunpack.c.l.b16 %v219
    %v1382 = vunpack.c.h.b16 %v219
    %v1383 = vunpack.c.l.b16 %v220
    %v1384 = vunpack.c.h.b16 %v220
    %v1385 = vunpack.c.l.b16 %v221
    %v1386 = vunpack.c.h.b16 %v221
    %v1387 = vunpack.c.l.b16 %v222
    %v1388 = vunpack.c.h.b16 %v222
    %v1389 = vunpack.c.l.b16 %v223
    %v1390 = vunpack.c.h.b16 %v223
    %v1391 = vunpack.c.l.b16 %v224
    %v1392 = vunpack.c.h.b16 %v224
    %v1393 = vunpack.c.l.b16 %v225
    %v1394 = vunpack.c.h.b16 %v225
    %v1395 = vunpack.c.l.b16 %v226
    %v1396 = vunpack.c.h.b16 %v226
    %v1397 = vunpack.c.l.b16 %v227
    %v1398 = vunpack.c.h.b16 %v227
    %v1399 = vunpack.c.l.b16 %v228
    %v1400 = vunpack.c.h.b16 %v228
    %v1401 = vunpack.c.l.b16 %v229
    %v1402 = vunpack.c.h.b16 %v229
    %v1403 = vunpack.c.l.b16 %v230
    %v1404 = vunpack.c.h.b16 %v230
    %v1405 = vunpack.c.l.b16 %v231
    %v1406 = vunpack.c.h.b16 %v231
    %v1407 = vunpack.c.l.b16 %v232
    %v1408 = vunpack.c.h.b16 %v232
    %v1409 = vunpack.c.l.b16 %v233
    %v1410 = vunpack.c.h.b16 %v233
    %v1411 = vunpack.c.l.b16 %v234
    %v1412 = vunpack.c.h.b16 %v234
    %v1413 = vunpack.c.l.b16 %v235
    %v1414 = vunpack.c.h.b16 %v235
    %v1415 = vunpack.c.l.b16 %v236
    %v1416 = vunpack.c.h.b16 %v236
    %v1417 = vunpack.c.l.b16 %v237
    %v1418 = vunpack.c.h.b16 %v237
    %v1419 = vunpack.c.l.b16 %v238
    %v1420 = vunpack.c.h.b16 %v238
    %v1421 = vunpack.c.l.b16 %v239
    %v1422 = vunpack.c.h.b16 %v239
    %v1423 = vunpack.c.l.b16 %v240
    %v1424 = vunpack.c.h.b16 %v240
    %v1425 = vunpack.c.l.b16 %v241
    %v1426 = vunpack.c.h.b16 %v241
    %v1427 = vunpack.c.l.b16 %v242
    %v1428 = vunpack.c.h.b16 %v242
    %v1429 = vunpack.c.l.b16 %v243
    %v1430 = vunpack.c.h.b16 %v243
    %v1431 = vunpack.c.l.b16 %v244
    %v1432 = vunpack.c.h.b16 %v244
    %v1433 = vunpack.c.l.b16 %v245
    %v1434 = vunpack.c.h.b16 %v245
    %v1435 = vunpack.c.l.b16 %v246
    %v1436 = vunpack.c.h.b16 %v246
    %v1437 = vunpack.c.l.b16 %v247
    %v1438 = vunpack.c.h.b16 %v247
    %v1439 = vunpack.c.l.b16 %v248
    %v1440 = vunpack.c.h.b16 %v248
    %v1441 = vunpack.c.l.b16 %v249
    %v1442 = vunpack.c.h.b16 %v249
    %v1443 = vunpack.c.l.b16 %v250
    %v1444 = vunpack.c.h.b16 %v250
    %v1445 = vunpack.c.l.b16 %v251
    %v1446 = vunpack.c.h.b16 %v251
    %v1447 = vunpack.c.l.b16 %v252
    %v1448 = vunpack.c.h.b16 %v252
    %v1449 = vunpack.c.l.b16 %v253
    %v1450 = vunpack.c.h.b16 %v253
    %v1451 = vunpack.c.l.b16 %v254
    %v1452 = vunpack.c.h.b16 %v254
    %v1453 = vunpack.c.l.b16 %v255
    %v1454 = vunpack.c.h.b16 %v255
    %v1455 = vunpack.c.l.b16 %v256
    %v1456 = vunpack.c.h.b16 %v256
    %v1457 = vunpack.c.l.b16 %v257
    %v1458 = vunpack.c.h.b16 %v257
    %v1459 = vunpack.c.l.b16 %v258
    %v1460 = vunpack.c.h.b16 %v258
    %v1461 = vunpack.c.l.b16 %v259
    %v1462 = vunpack.c.h.b16 %v259
    %v1463 = vunpack.c.l.b16 %v260
    %v1464 = vunpack.c.h.b16 %v260
    %v1465 = vunpack.c.l.b16 %v261
    %v1466 = vunpack.c.h.b16 %v261
    %v1467 = vunpack.c.l.b16 %v262
    %v1468 = vunpack.c.h.b16 %v262
    %v1469 = vunpack.c.l.b16 %v263
    %v1470 = vunpack.c.h.b16 %v263
    %v1471 = vunpack.c.l.b16 %v264
    %v1472 = vunpack.c.h.b16 %v264
    %v1473 = vunpack.c.l.b16 %v265
    %v1474 = vunpack.c.h.b16 %v265
    %v1475 = vunpack.c.l.b16 %v266
    %v1476 = vunpack.c.h.b16 %v266
    %v1477 = vunpack.c.l.b16 %v267
    %v1478 = vunpack.c.h.b16 %v267
    %v1479 = vunpack.c.l.b16 %v268
    %v1480 = vunpack.c.h.b16 %v268
    %v1481 = vunpack.c.l.b16 %v269
    %v1482 = vunpack.c.h.b16 %v269
    %v1483 = vunpack.c.l.b16 %v270
    %v1484 = vunpack.c.h.b16 %v270
    %v1485 = vunpack.c.l.b16 %v271
    %v1486 = vunpack.c.h.b16 %v271
    %v1487 = vunpack.c.l.b16 %v272
    %v1488 = vunpack.c.h.b16 %v272
    %v1489 = vunpack.c.l.b16 %v273
    %v1490 = vunpack.c.h.b16 %v273
    %v1491 = vunpack.c.l.b16 %v274
    %v1492 = vunpack.c.h.b16 %v274
    %v1493 = vunpack.c.l.b16 %v275
    %v1494 = vunpack.c.h.b16 %v275
    %v1495 = vunpack.c.l.b16 %v276
    %v1496 = vunpack.c.h.b16 %v276
    %v1497 = vunpack.c.l.b16 %v277
    %v1498 = vunpack.c.h.b16 %v277
    %v1499 = vunpack.c.l.b16 %v278
    %v1500 = vunpack.c.h.b16 %v278
    %v1501 = vunpack.c.l.b16 %v279
    %v1502 = vunpack.c.h.b16 %v279
    %v1503 = vunpack.c.l.b16 %v280
    %v1504 = vunpack.c.h.b16 %v280
    %v1505 = vunpack.c.l.b16 %v281
    %v1506 = vunpack.c.h.b16 %v281
    %v1507 = vunpack.c.l.b16 %v282
    %v1508 = vunpack.c.h.b16 %v282
    %v1509 = vunpack.c.l.b16 %v283
    %v1510 = vunpack.c.h.b16 %v283
    %v1511 = vunpack.c.l.b16 %v284
    %v1512 = vunpack.c.h.b16 %v284
    %v1513 = vunpack.c.l.b16 %v285
    %v1514 = vunpack.c.h.b16 %v285
    %v1515 = vunpack.c.l.b16 %v286
    %v1516 = vunpack.c.h.b16 %v286
    %v1517 = vunpack.c.l.b16 %v287
    %v1518 = vunpack.c.h.b16 %v287
    %v1519 = vunpack.c.l.b16 %v288
    %v1520 = vunpack.c.h.b16 %v288
    %v1521 = vunpack.c.l.b16 %v289
    %v1522 = vunpack.c.h.b16 %v289
    %v1523 = vunpack.c.l.b16 %v290
    %v1524 = vunpack.c.h.b16 %v290
    %v1525 = vunpack.c.l.b16 %v291
    %v1526 = vunpack.c.h.b16 %v291
    %v1527 = vunpack.c.l.b16 %v292
    %v1528 = vunpack.c.h.b16 %v292
    %v1529 = vunpack.c.l.b16 %v293
    %v1530 = vunpack.c.h.b16 %v293
    %v1531 = vunpack.c.l.b16 %v294
    %v1532 = vunpack.c.h.b16 %v294
    %v1533 = vunpack.c.l.b16 %v295
    %v1534 = vunpack.c.h.b16 %v295
    %v1535 = vunpack.c.l.b16 %v296
    %v1536 = vunpack.c.h.b16 %v296
    %v1537 = vunpack.c.l.b16 %v297
    %v1538 = vunpack.c.h.b16 %v297
    %v1539 = vunpack.c.l.b16 %v298
    %v1540 = vunpack.c.h.b16 %v298
    %v1541 = vunpack.c.l.b16 %v299
    %v1542 = vunpack.c.h.b16 %v299
    %v1543 = vunpack.c.l.b16 %v300
    %v1544 = vunpack.c.h.b16 %v300
    %v1545 = vunpack.c.l.b16 %v301
    %v1546 = vunpack.c.h.b16 %v301
    %v1547 = vunpack.c.l.b16 %v302
    %v1548 = vunpack.c.h.b16 %v302
    %v1549 = vunpack.c.l.b16 %v303
    %v1550 = vunpack.c.h.b16 %v303
    %v1551 = vunpack.c.l.b16 %v304
    %v1552 = vunpack.c.h.b16 %v304
    %v1553 = vunpack.c.l.b16 %v305
    %v1554 = vunpack.c.h.b16 %v305
    %v1555 = vunpack.c.l.b16 %v306
    %v1556 = vunpack.c.h.b16 %v306
    %v1557 = vunpack.c.l.b16 %v307
    %v1558 = vunpack.c.h.b16 %v307
    %v1559 = vunpack.c.l.b16 %v308
    %v1560 = vunpack.c.h.b16 %v308
    %v1561 = vunpack.c.l.b16 %v309
    %v1562 = vunpack.c.h.b16 %v309
    %v1563 = vunpack.c.l.b16 %v310
    %v1564 = vunpack.c.h.b16 %v310
    %v1565 = vunpack.c.l.b16 %v311
    %v1566 = vunpack.c.h.b16 %v311
    %v1567 = vunpack.c.l.b16 %v312
    %v1568 = vunpack.c.h.b16 %v312
    %v1569 = vunpack.c.l.b16 %v313
    %v1570 = vunpack.c.h.b16 %v313
    %v1571 = vunpack.c.l.b16 %v314
    %v1572 = vunpack.c.h.b16 %v314
    %v1573 = vunpack.c.l.b16 %v315
    %v1574 = vunpack.c.h.b16 %v315
    %v1575 = vunpack.c.l.b16 %v316
    %v1576 = vunpack.c.h.b16 %v316
    %v1577 = vunpack.c.l.b16 %v317
    %v1578 = vunpack.c.h.b16 %v317
    %v1579 = vunpack.c.l.b16 %v318
    %v1580 = vunpack.c.h.b16 %v318
    %v1581 = vunpack.c.l.b16 %v319
    %v1582 = vunpack.c.h.b16 %v319
    %v1583 = vunpack.c.l.b16 %v320
    %v1584 = vunpack.c.h.b16 %v320
    %v1585 = vunpack.c.l.b16 %v321
    %v1586 = vunpack.c.h.b16 %v321
    %v1587 = vunpack.c.l.b16 %v322
    %v1588 = vunpack.c.h.b16 %v322
    %v1589 = vunpack.c.l.b16 %v323
    %v1590 = vunpack.c.h.b16 %v323
    %v1591 = vunpack.c.l.b16 %v324
    %v1592 = vunpack.c.h.b16 %v324
    %v1593 = vunpack.c.l.b16 %v325
    %v1594 = vunpack.c.h.b16 %v325
    %v1595 = vunpack.c.l.b16 %v326
    %v1596 = vunpack.c.h.b16 %v326
    %v1597 = vunpack.c.l.b16 %v327
    %v1598 = vunpack.c.h.b16 %v327
    %v1599 = vunpack.c.l.b16 %v328
    %v1600 = vunpack.c.h.b16 %v328
    %v1601 = vunpack.c.l.b16 %v329
    %v1602 = vunpack.c.h.b16 %v329
    %v1603 = vunpack.c.l.b16 %v330
    %v1604 = vunpack.c.h.b16 %v330
    %v1605 = vunpack.c.l.b16 %v331
    %v1606 = vunpack.c.h.b16 %v331
    %v1607 = vunpack.c.l.b16 %v332
    %v1608 = vunpack.c.h.b16 %v332
    %v1609 = vunpack.c.l.b16 %v333
    %v1610 = vunpack.c.h.b16 %v333
    %v1611 = vunpack.c.l.b16 %v334
    %v1612 = vunpack.c.h.b16 %v334
    %v1613 = vunpack.c.l.b16 %v335
    %v1614 = vunpack.c.h.b16 %v335
    %v1615 = vunpack.c.l.b16 %v336
    %v1616 = vunpack.c.h.b16 %v336
    %v1617 = vunpack.c.l.b16 %v337
    %v1618 = vunpack.c.h.b16 %v337
    %v1619 = vunpack.c.l.b16 %v338
    %v1620 = vunpack.c.h.b16 %v338
    %v1621 = vunpack.c.l.b16 %v339
    %v1622 = vunpack.c.h.b16 %v339
    %v1623 = vunpack.c.l.b16 %v340
    %v1624 = vunpack.c.h.b16 %v340
    %v1625 = vunpack.c.l.b16 %v341
    %v1626 = vunpack.c.h.b16 %v341
    %v1627 = vunpack.c.l.b16 %v342
    %v1628 = vunpack.c.h.b16 %v342
    %v1629 = vunpack.c.l.b16 %v343
    %v1630 = vunpack.c.h.b16 %v343
    %v1631 = vunpack.c.l.b16 %v344
    %v1632 = vunpack.c.h.b16 %v344
    %v1633 = vunpack.c.l.b16 %v345
    %v1634 = vunpack.c.h.b16 %v345
    %v1635 = vunpack.c.l.b16 %v346
    %v1636 = vunpack.c.h.b16 %v346
    %v1637 = vunpack.c.l.b16 %v347
    %v1638 = vunpack.c.h.b16 %v347
    %v1639 = vunpack.c.l.b16 %v348
    %v1640 = vunpack.c.h.b16 %v348
    %v1641 = vunpack.c.l.b16 %v349
    %v1642 = vunpack.c.h.b16 %v349
    %v1643 = vunpack.c.l.b16 %v350
    %v1644 = vunpack.c.h.b16 %v350
    %v1645 = vunpack.c.l.b16 %v351
    %v1646 = vunpack.c.h.b16 %v351
    %v1647 = vunpack.c.l.b16 %v352
    %v1648 = vunpack.c.h.b16 %v352
    %v1649 = vunpack.c.l.b16 %v353
    %v1650 = vunpack.c.h.b16 %v353
    %v1651 = vunpack.c.l.b16 %v354
    %v1652 = vunpack.c.h.b16 %v354
    %v1653 = vunpack.c.l.b16 %v355
    %v1654 = vunpack.c.h.b16 %v355
    %v1655 = vunpack.c.l.b16 %v356
    %v1656 = vunpack.c.h.b16 %v356
    %v1657 = vunpack.c.l.b16 %v357
    %v1658 = vunpack.c.h.b16 %v357
    %v1659 = vunpack.c.l.b16 %v358
    %v1660 = vunpack.c.h.b16 %v358
    %v1661 = vunpack.c.l.b16 %v359
    %v1662 = vunpack.c.h.b16 %v359
    %v1663 = vunpack.c.l.b16 %v360
    %v1664 = vunpack.c.h.b16 %v360
    %v1665 = vunpack.c.l.b16 %v361
    %v1666 = vunpack.c.h.b16 %v361
    %v1667 = vunpack.c.l.b16 %v362
    %v1668 = vunpack.c.h.b16 %v362
    %v1669 = vunpack.c.l.b16 %v363
    %v1670 = vunpack.c.h.b16 %v363
    %v1671 = vunpack.c.l.b16 %v364
    %v1672 = vunpack.c.h.b16 %v364
    %v1673 = vunpack.c.l.b16 %v365
    %v1674 = vunpack.c.h.b16 %v365
    %v1675 = vunpack.c.l.b16 %v366
    %v1676 = vunpack.c.h.b16 %v366
    %v1677 = vunpack.c.l.b16 %v367
    %v1678 = vunpack.c.h.b16 %v367
    %v1679 = vunpack.c.l.b16 %v368
    %v1680 = vunpack.c.h.b16 %v368
    %v1681 = vunpack.c.l.b16 %v369
    %v1682 = vunpack.c.h.b16 %v369
    %v1683 = vunpack.c.l.b16 %v370
    %v1684 = vunpack.c.h.b16 %v370
    %v1685 = vunpack.c.l.b16 %v371
    %v1686 = vunpack.c.h.b16 %v371
    %v1687 = vunpack.c.l.b16 %v372
    %v1688 = vunpack.c.h.b16 %v372
    %v1689 = vunpack.c.l.b16 %v373
    %v1690 = vunpack.c.h.b16 %v373
    %v1691 = vunpack.c.l.b16 %v374
    %v1692 = vunpack.c.h.b16 %v374
    %v1693 = vunpack.c.l.b16 %v375
    %v1694 = vunpack.c.h.b16 %v375
    %v1695 = vunpack.c.l.b16 %v376
    %v1696 = vunpack.c.h.b16 %v376
    %v1697 = vunpack.c.l.b16 %v377
    %v1698 = vunpack.c.h.b16 %v377
    %v1699 = vunpack.c.l.b16 %v378
    %v1700 = vunpack.c.h.b16 %v378
    %v1701 = vunpack.c.l.b16 %v379
    %v1702 = vunpack.c.h.b16 %v379
    %v1703 = vunpack.c.l.b16 %v380
    %v1704 = vunpack.c.h.b16 %v380
    %v1705 = vunpack.c.l.b16 %v381
    %v1706 = vunpack.c.h.b16 %v381
    %v1707 = vunpack.c.l.b16 %v382
    %v1708 = vunpack.c.h.b16 %v382
    %v1709 = vunpack.c.l.b16 %v383
    %v1710 = vunpack.c.h.b16 %v383
    %v1711 = vunpack.c.l.b16 %v384
    %v1712 = vunpack.c.h.b16 %v384
    %v1713 = vunpack.c.l.b16 %v385
    %v1714 = vunpack.c.h.b16 %v385
    %v1715 = vunpack.c.l.b16 %v386
    %v1716 = vunpack.c.h.b16 %v386
    %v1717 = vunpack.c.l.b16 %v387
    %v1718 = vunpack.c.h.b16 %v387
    %v1719 = vunpack.c.l.b16 %v388
    %v1720 = vunpack.c.h.b16 %v388
    %v1721 = vunpack.c.l.b16 %v389
    %v1722 = vunpack.c.h.b16 %v389
    %v1723 = vunpack.c.l.b16 %v390
    %v1724 = vunpack.c.h.b16 %v390
    %v1725 = vunpack.c.l.b16 %v391
    %v1726 = vunpack.c.h.b16 %v391
    %v1727 = vunpack.c.l.b16 %v392
    %v1728 = vunpack.c.h.b16 %v392
    %v1729 = vunpack.c.l.b16 %v393
    %v1730 = vunpack.c.h.b16 %v393
    %v1731 = vunpack.c.l.b16 %v394
    %v1732 = vunpack.c.h.b16 %v394
    %v1733 = vunpack.c.l.b16 %v395
    %v1734 = vunpack.c.h.b16 %v395
    %v1735 = vunpack.c.l.b16 %v396
    %v1736 = vunpack.c.h.b16 %v396
    %v1737 = vunpack.c.l.b16 %v397
    %v1738 = vunpack.c.h.b16 %v397
    %v1739 = vunpack.c.l.b16 %v398
    %v1740 = vunpack.c.h.b16 %v398
    %v1741 = vunpack.c.l.b16 %v399
    %v1742 = vunpack.c.h.b16 %v399
    %v1743 = vunpack.c.l.b16 %v400
    %v1744 = vunpack.c.h.b16 %v400
    %v1745 = vunpack.c.l.b16 %v401
    %v1746 = vunpack.c.h.b16 %v401
    %v1747 = vunpack.c.l.b16 %v402
    %v1748 = vunpack.c.h.b16 %v402
    %v1749 = vunpack.c.l.b16 %v403
    %v1750 = vunpack.c.h.b16 %v403
    %v1751 = vunpack.c.l.b16 %v404
    %v1752 = vunpack.c.h.b16 %v404
    %v1753 = vunpack.c.l.b16 %v405
    %v1754 = vunpack.c.h.b16 %v405
    %v1755 = vunpack.c.l.b16 %v406
    %v1756 = vunpack.c.h.b16 %v406
    %v1757 = vunpack.c.l.b16 %v407
    %v1758 = vunpack.c.h.b16 %v407
    %v1759 = vunpack.c.l.b16 %v408
    %v1760 = vunpack.c.h.b16 %v408
    %v1761 = vunpack.c.l.b16 %v409
    %v1762 = vunpack.c.h.b16 %v409
    %v1763 = vunpack.c.l.b16 %v410
    %v1764 = vunpack.c.h.b16 %v410
    %v1765 = vunpack.c.l.b16 %v411
    %v1766 = vunpack.c.h.b16 %v411
    %v1767 = vunpack.c.l.b16 %v412
    %v1768 = vunpack.c.h.b16 %v412
    %v1769 = vunpack.c.l.b16 %v413
    %v1770 = vunpack.c.h.b16 %v413
    %v1771 = vunpack.c.l.b16 %v414
    %v1772 = vunpack.c.h.b16 %v414
    %v1773 = vunpack.c.l.b16 %v415
    %v1774 = vunpack.c.h.b16 %v415
    %v1775 = vunpack.c.l.b16 %v416
    %v1776 = vunpack.c.h.b16 %v416
    %v1777 = vunpack.c.l.b16 %v417
    %v1778 = vunpack.c.h.b16 %v417
    %v1779 = vunpack.c.l.b16 %v418
    %v1780 = vunpack.c.h.b16 %v418
    %v1781 = vunpack.c.l.b16 %v419
    %v1782 = vunpack.c.h.b16 %v419
    %v1783 = vunpack.c.l.b16 %v420
    %v1784 = vunpack.c.h.b16 %v420
    %v1785 = vunpack.c.l.b16 %v421
    %v1786 = vunpack.c.h.b16 %v421
    %v1787 = vunpack.c.l.b16 %v422
    %v1788 = vunpack.c.h.b16 %v422
    %v1789 = vunpack.c.l.b16 %v423
    %v1790 = vunpack.c.h.b16 %v423
    %v1791 = vunpack.c.l.b16 %v424
    %v1792 = vunpack.c.h.b16 %v424
    %v1793 = vunpack.c.l.b16 %v425
    %v1794 = vunpack.c.h.b16 %v425
    %v1795 = vunpack.c.l.b16 %v426
    %v1796 = vunpack.c.h.b16 %v426
    %v1797 = vunpack.c.l.b16 %v427
    %v1798 = vunpack.c.h.b16 %v427
    %v1799 = vunpack.c.l.b16 %v428
    %v1800 = vunpack.c.h.b16 %v428
    %v1801 = vunpack.c.l.b16 %v429
    %v1802 = vunpack.c.h.b16 %v429
    %v1803 = vunpack.c.l.b16 %v430
    %v1804 = vunpack.c.h.b16 %v430
    %v1805 = vunpack.c.l.b16 %v431
    %v1806 = vunpack.c.h.b16 %v431
    %v1807 = vunpack.c.l.b16 %v432
    %v1808 = vunpack.c.h.b16 %v432
    %v1809 = vunpack.c.l.b16 %v433
    %v1810 = vunpack.c.h.b16 %v433
    %v1811 = vunpack.c.l.b16 %v434
    %v1812 = vunpack.c.h.b16 %v434
    %v1813 = vunpack.c.l.b16 %v435
    %v1814 = vunpack.c.h.b16 %v435
    %v1815 = vunpack.c.l.b16 %v436
    %v1816 = vunpack.c.h.b16 %v436
    %v1817 = vunpack.c.l.b16 %v437
    %v1818 = vunpack.c.h.b16 %v437
    %v1819 = vunpack.c.l.b16 %v438
    %v1820 = vunpack.c.h.b16 %v438
    %v1821 = vunpack.c.l.b16 %v439
    %v1822 = vunpack.c.h.b16 %v439
    %v1823 = vunpack.c.l.b16 %v440
    %v1824 = vunpack.c.h.b16 %v440
    %v1825 = vunpack.c.l.b16 %v441
    %v1826 = vunpack.c.h.b16 %v441
    %v1827 = vunpack.c.l.b16 %v442
    %v1828 = vunpack.c.h.b16 %v442
    %v1829 = vunpack.c.l.b16 %v443
    %v1830 = vunpack.c.h.b16 %v443
    %v1831 = vunpack.c.l.b16 %v444
    %v1832 = vunpack.c.h.b16 %v444
    %v1833 = vunpack.c.l.b16 %v445
    %v1834 = vunpack.c.h.b16 %v445
    %v1835 = vunpack.c.l.b16 %v446
    %v1836 = vunpack.c.h.b16 %v446
    %v1837 = vunpack.c.l.b16 %v447
    %v1838 = vunpack.c.h.b16 %v447
    %v1839 = vunpack.c.l.b16 %v448
    %v1840 = vunpack.c.h.b16 %v448
    %v1841 = vunpack.c.l.b16 %v449
    %v1842 = vunpack.c.h.b16 %v449
    %v1843 = vunpack.c.l.b16 %v450
    %v1844 = vunpack.c.h.b16 %v450
    %v1845 = vunpack.c.l.b16 %v451
    %v1846 = vunpack.c.h.b16 %v451
    %v1847 = vunpack.c.l.b16 %v452
    %v1848 = vunpack.c.h.b16 %v452
    %v1849 = vunpack.c.l.b16 %v453
    %v1850 = vunpack.c.h.b16 %v453
    %v1851 = vunpack.c.l.b16 %v454
    %v1852 = vunpack.c.h.b16 %v454
    %v1853 = vunpack.c.l.b16 %v455
    %v1854 = vunpack.c.h.b16 %v455
    %v1855 = vunpack.c.l.b16 %v456
    %v1856 = vunpack.c.h.b16 %v456
    %v1857 = vunpack.c.l.b16 %v457
    %v1858 = vunpack.c.h.b16 %v457
    %v1859 = vunpack.c.l.b16 %v458
    %v1860 = vunpack.c.h.b16 %v458
    %v1861 = vunpack.c.l.b16 %v459
    %v1862 = vunpack.c.h.b16 %v459
    %v1863 = vunpack.c.l.b16 %v460
    %v1864 = vunpack.c.h.b16 %v460
    %v1865 = vunpack.c.l.b16 %v461
    %v1866 = vunpack.c.h.b16 %v461
    %v1867 = vunpack.c.l.b16 %v462
    %v1868 = vunpack.c.h.b16 %v462
    %v1869 = vunpack.c.l.b16 %v463
    %v1870 = vunpack.c.h.b16 %v463
    %v1871 = vunpack.c.l.b16 %v464
    %v1872 = vunpack.c.h.b16 %v464
    %v1873 = vunpack.c.l.b16 %v465
    %v1874 = vunpack.c.h.b16 %v465
    %v1875 = vunpack.c.l.b16 %v466
    %v1876 = vunpack.c.h.b16 %v466
    %v1877 = vunpack.c.l.b16 %v467
    %v1878 = vunpack.c.h.b16 %v467
    %v1879 = vunpack.c.l.b16 %v468
    %v1880 = vunpack.c.h.b16 %v468
    %v1881 = vunpack.c.l.b16 %v469
    %v1882 = vunpack.c.h.b16 %v469
    %v1883 = vunpack.c.l.b16 %v470
    %v1884 = vunpack.c.h.b16 %v470
    %v1885 = vunpack.c.l.b16 %v471
    %v1886 = vunpack.c.h.b16 %v471
    %v1887 = vunpack.c.l.b16 %v472
    %v1888 = vunpack.c.h.b16 %v472
    %v1889 = vunpack.c.l.b16 %v473
    %v1890 = vunpack.c.h.b16 %v473
    %v1891 = vunpack.c.l.b16 %v474
    %v1892 = vunpack.c.h.b16 %v474
    %v1893 = vunpack.c.l.b16 %v475
    %v1894 = vunpack.c.h.b16 %v475
    %v1895 = vunpack.c.l.b16 %v476
    %v1896 = vunpack.c.h.b16 %v476
    %v1897 = vunpack.c.l.b16 %v477
    %v1898 = vunpack.c.h.b16 %v477
    %v1899 = vunpack.c.l.b16 %v478
    %v1900 = vunpack.c.h.b16 %v478
    %v1901 = vunpack.c.l.b16 %v479
    %v1902 = vunpack.c.h.b16 %v479
    %v1903 = vunpack.c.l.b16 %v480
    %v1904 = vunpack.c.h.b16 %v480
    %v1905 = vunpack.c.l.b16 %v481
    %v1906 = vunpack.c.h.b16 %v481
    %v1907 = vunpack.c.l.b16 %v482
    %v1908 = vunpack.c.h.b16 %v482
    %v1909 = vunpack.c.l.b16 %v483
    %v1910 = vunpack.c.h.b16 %v483
    %v1911 = vunpack.c.l.b16 %v484
    %v1912 = vunpack.c.h.b16 %v484
    %v1913 = vunpack.c.l.b16 %v485
    %v1914 = vunpack.c.h.b16 %v485
    %v1915 = vunpack.c.l.b16 %v486
    %v1916 = vunpack.c.h.b16 %v486
    %v1917 = vunpack.c.l.b16 %v487
    %v1918 = vunpack.c.h.b16 %v487
    %v1919 = vunpack.c.l.b16 %v488
    %v1920 = vunpack.c.h.b16 %v488
    %v1921 = vunpack.c.l.b16 %v489
    %v1922 = vunpack.c.h.b16 %v489
    %v1923 = vunpack.c.l.b16 %v490
    %v1924 = vunpack.c.h.b16 %v490
    %v1925 = vunpack.c.l.b16 %v491
    %v1926 = vunpack.c.h.b16 %v491
    %v1927 = vunpack.c.l.b16 %v492
    %v1928 = vunpack.c.h.b16 %v492
    %v1929 = vunpack.c.l.b16 %v493
    %v1930 = vunpack.c.h.b16 %v493
    %v1931 = vunpack.c.l.b16 %v494
    %v1932 = vunpack.c.h.b16 %v494
    %v1933 = vunpack.c.l.b16 %v495
    %v1934 = vunpack.c.h.b16 %v495
    %v1935 = vunpack.c.l.b16 %v496
    %v1936 = vunpack.c.h.b16 %v496
    %v1937 = vunpack.c.l.b16 %v497
    %v1938 = vunpack.c.h.b16 %v497
    %v1939 = vunpack.c.l.b16 %v498
    %v1940 = vunpack.c.h.b16 %v498
    %v1941 = vunpack.c.l.b16 %v499
    %v1942 = vunpack.c.h.b16 %v499
    %v1943 = vunpack.c.l.b16 %v500
    %v1944 = vunpack.c.h.b16 %v500
    %v1945 = vunpack.c.l.b16 %v501
    %v1946 = vunpack.c.h.b16 %v501
    %v1947 = vunpack.c.l.b16 %v502
    %v1948 = vunpack.c.h.b16 %v502
    %v1949 = vunpack.c.l.b16 %v503
    %v1950 = vunpack.c.h.b16 %v503
    %v1951 = vunpack.c.l.b16 %v504
    %v1952 = vunpack.c.h.b16 %v504
    %v1953 = vunpack.c.l.b16 %v505
    %v1954 = vunpack.c.h.b16 %v505
    %v1955 = vunpack.c.l.b16 %v506
    %v1956 = vunpack.c.h.b16 %v506
    %v1957 = vunpack.c.l.b16 %v507
    %v1958 = vunpack.c.h.b16 %v507
    %v1959 = vunpack.c.l.b16 %v508
    %v1960 = vunpack.c.h.b16 %v508
    %v1961 = vunpack.c.l.b16 %v509
    %v1962 = vunpack.c.h.b16 %v509
    %v1963 = vunpack.c.l.b16 %v510
    %v1964 = vunpack.c.h.b16 %v510
    %v1965 = vunpack.c.l.b16 %v511
    %v1966 = vunpack.c.h.b16 %v511
    %v1967 = vunpack.c.l.b16 %v512
    %v1968 = vunpack.c.h.b16 %v512
    %v1969 = vunpack.c.l.b16 %v513
    %v1970 = vunpack.c.h.b16 %v513
    %v1971 = vunpack.c.l.b16 %v514
    %v1972 = vunpack.c.h.b16 %v514
    %v1973 = vunpack.c.l.b16 %v515
    %v1974 = vunpack.c.h.b16 %v515
    %v1975 = vunpack.c.l.b16 %v516
    %v1976 = vunpack.c.h.b16 %v516
    %v1977 = vunpack.c.l.b16 %v517
    %v1978 = vunpack.c.h.b16 %v517
    %v1979 = vunpack.c.l.b16 %v518
    %v1980 = vunpack.c.h.b16 %v518
    %v1981 = vunpack.c.l.b16 %v519
    %v1982 = vunpack.c.h.b16 %v519
    %v1983 = vunpack.c.l.b16 %v520
    %v1984 = vunpack.c.h.b16 %v520
    %v1985 = vunpack.c.l.b16 %v521
    %v1986 = vunpack.c.h.b16 %v521
    %v1987 = vunpack.c.l.b16 %v522
    %v1988 = vunpack.c.h.b16 %v522
    %v1989 = vunpack.c.l.b16 %v523
    %v1990 = vunpack.c.h.b16 %v523
    %v1991 = vunpack.c.l.b16 %v524
    %v1992 = vunpack.c.h.b16 %v524
    %v1993 = vunpack.c.l.b16 %v525
    %v1994 = vunpack.c.h.b16 %v525
    %v1995 = vunpack.c.l.b16 %v526
    %v1996 = vunpack.c.h.b16 %v526
    %v1997 = vunpack.c.l.b16 %v527
    %v1998 = vunpack.c.h.b16 %v527
    %v1999 = vunpack.c.l.b16 %v528
    %v2000 = vunpack.c.h.b16 %v528
    %v2001 = vunpack.c.l.b16 %v529
    %v2002 = vunpack.c.h.b16 %v529
    %v2003 = vunpack.c.l.b16 %v530
    %v2004 = vunpack.c.h.b16 %v530
    %v2005 = vunpack.c.l.b16 %v531
    %v2006 = vunpack.c.h.b16 %v531
    %v2007 = vunpack.c.l.b16 %v532
    %v2008 = vunpack.c.h.b16 %v532
    %v2009 = vunpack.c.l.b16 %v533
    %v2010 = vunpack.c.h.b16 %v533
    %v2011 = vunpack.c.l.b16 %v534
    %v2012 = vunpack.c.h.b16 %v534
    %v2013 = vunpack.c.l.b16 %v535
    %v2014 = vunpack.c.h.b16 %v535
    %v2015 = vunpack.c.l.b16 %v536
    %v2016 = vunpack.c.h.b16 %v536
    %v2017 = vunpack.c.l.b16 %v537
    %v2018 = vunpack.c.h.b16 %v537
    %v2019 = vunpack.c.l.b16 %v538
    %v2020 = vunpack.c.h.b16 %v538
    %v2021 = vunpack.c.l.b16 %v539
    %v2022 = vunpack.c.h.b16 %v539
    %v2023 = vunpack.c.l.b16 %v540
    %v2024 = vunpack.c.h.b16 %v540
    %v2025 = vunpack.c.l.b16 %v541
    %v2026 = vunpack.c.h.b16 %v541
    %v2027 = vunpack.c.l.b16 %v542
    %v2028 = vunpack.c.h.b16 %v542
    %v2029 = vunpack.c.l.b16 %v543
    %v2030 = vunpack.c.h.b16 %v543
    %v2031 = vunpack.c.l.b16 %v544
    %v2032 = vunpack.c.h.b16 %v544
    %v2033 = vunpack.c.l.b16 %v545
    %v2034 = vunpack.c.h.b16 %v545
    %v2035 = vunpack.c.l.b16 %v546
    %v2036 = vunpack.c.h.b16 %v546
    %v2037 = vunpack.c.l.b16 %v547
    %v2038 = vunpack.c.h.b16 %v547
    %v2039 = vunpack.c.l.b16 %v548
    %v2040 = vunpack.c.h.b16 %v548
    %v2041 = vunpack.c.l.b16 %v549
    %v2042 = vunpack.c.h.b16 %v549
    %v2043 = vunpack.c.l.b16 %v550
    %v2044 = vunpack.c.h.b16 %v550
    %v2045 = vunpack.c.l.b16 %v551
    %v2046 = vunpack.c.h.b16 %v551
    %v2047 = vunpack.c.l.b16 %v552
    %v2048 = vunpack.c.h.b16 %v552
    %v2049 = vunpack.c.l.b16 %v553
    %v2050 = vunpack.c.h.b16 %v553
    %v2051 = vunpack.c.l.b16 %v554
    %v2052 = vunpack.c.h.b16 %v554
    %v2053 = vunpack.c.l.b16 %v555
    %v2054 = vunpack.c.h.b16 %v555
    %v2055 = vunpack.c.l.b16 %v556
    %v2056 = vunpack.c.h.b16 %v556
    %v2057 = vunpack.c.l.b16 %v557
    %v2058 = vunpack.c.h.b16 %v557
    %v2059 = vunpack.c.l.b16 %v558
    %v2060 = vunpack.c.h.b16 %v558
    %v2061 = vunpack.c.l.b16 %v559
    %v2062 = vunpack.c.h.b16 %v559
    %v2063 = vunpack.c.l.b16 %v560
    %v2064 = vunpack.c.h.b16 %v560
    %v2065 = vunpack.c.l.b16 %v561
    %v2066 = vunpack.c.h.b16 %v561
    %v2067 = vunpack.c.l.b16 %v562
    %v2068 = vunpack.c.h.b16 %v562
    %v2069 = vunpack.c.l.b16 %v563
    %v2070 = vunpack.c.h.b16 %v563
    %v2071 = vunpack.c.l.b16 %v564
    %v2072 = vunpack.c.h.b16 %v564
    %v2073 = vunpack.c.l.b16 %v565
    %v2074 = vunpack.c.h.b16 %v565
    %v2075 = vunpack.c.l.b16 %v566
    %v2076 = vunpack.c.h.b16 %v566
    %v2077 = vunpack.c.l.b16 %v567
    %v2078 = vunpack.c.h.b16 %v567
    %v2079 = vunpack.c.l.b16 %v568
    %v2080 = vunpack.c.h.b16 %v568
    %v2081 = vunpack.c.l.b16 %v569
    %v2082 = vunpack.c.h.b16 %v569
    %v2083 = vunpack.c.l.b16 %v570
    %v2084 = vunpack.c.h.b16 %v570
    %v2085 = vunpack.c.l.b16 %v571
    %v2086 = vunpack.c.h.b16 %v571
    %v2087 = vpack.c.b16 %v1131, %v1127
    %v2088 = vpack.c.b16 %v1132, %v1128
    %v2089 = vpack.c.b16 %v1133, %v1129
    %v2090 = vpack.c.b16 %v1134, %v1130
    %v2091 = vpack.c.b16 %v1139, %v1135
    %v2092 = vpack.c.b16 %v1140, %v1136
    %v2093 = vpack.c.b16 %v1141, %v1137
    %v2094 = vpack.c.b16 %v1142, %v1138
    %v2095 = vpack.c.b16 %v1147, %v1143
    %v2096 = vpack.c.b16 %v1148, %v1144
    %v2097 = vpack.c.b16 %v1149, %v1145
    %v2098 = vpack.c.b16 %v1150, %v1146
    %v2099 = vpack.c.b16 %v1155, %v1151
    %v2100 = vpack.c.b16 %v1156, %v1152
    %v2101 = vpack.c.b16 %v1157, %v1153
    %v2102 = vpack.c.b16 %v1158, %v1154
    %v2103 = vpack.c.b16 %v1163, %v1159
    %v2104 = vpack.c.b16 %v1164, %v1160
    %v2105 = vpack.c.b16 %v1165, %v1161
    %v2106 = vpack.c.b16 %v1166, %v1162
    %v2107 = vpack.c.b16 %v1171, %v1167
    %v2108 = vpack.c.b16 %v1172, %v1168
    %v2109 = vpack.c.b16 %v1173, %v1169
    %v2110 = vpack.c.b16 %v1174, %v1170
    %v2111 = vpack.c.b16 %v1179, %v1175
    %v2112 = vpack.c.b16 %v1180, %v1176
    %v2113 = vpack.c.b16 %v1181, %v1177
    %v2114 = vpack.c.b16 %v1182, %v1178
    %v2115 = vpack.c.b16 %v1187, %v1183
    %v2116 = vpack.c.b16 %v1188, %v1184
    %v2117 = vpack.c.b16 %v1189, %v1185
    %v2118 = vpack.c.b16 %v1190, %v1186
    %v2119 = vpack.c.b16 %v1195, %v1191
    %v2120 = vpack.c.b16 %v1196, %v1192
    %v2121 = vpack.c.b16 %v1197, %v1193
    %v2122 = vpack.c.b16 %v1198, %v1194
    %v2123 = vpack.c.b16 %v1203, %v1199
    %v2124 = vpack.c.b16 %v1204, %v1200
    %v2125 = vpack.c.b16 %v1205, %v1201
    %v2126 = vpack.c.b16 %v1206, %v1202
    %v2127 = vpack.c.b16 %v1211, %v1207
    %v2128 = vpack.c.b16 %v1212, %v1208
    %v2129 = vpack.c.b16 %v1213, %v1209
    %v2130 = vpack.c.b16 %v1214, %v1210
    %v2131 = vpack.c.b16 %v1219, %v1215
    %v2132 = vpack.c.b16 %v1220, %v1216
    %v2133 = vpack.c.b16 %v1221, %v1217
    %v2134 = vpack.c.b16 %v1222, %v1218
    %v2135 = vpack.c.b16 %v1227, %v1223
    %v2136 = vpack.c.b16 %v1228, %v1224
    %v2137 = vpack.c.b16 %v1229, %v1225
    %v2138 = vpack.c.b16 %v1230, %v1226
    %v2139 = vpack.c.b16 %v1235, %v1231
    %v2140 = vpack.c.b16 %v1236, %v1232
    %v2141 = vpack.c.b16 %v1237, %v1233
    %v2142 = vpack.c.b16 %v1238, %v1234
    %v2143 = vpack.c.b16 %v1243, %v1239
    %v2144 = vpack.c.b16 %v1244, %v1240
    %v2145 = vpack.c.b16 %v1245, %v1241
    %v2146 = vpack.c.b16 %v1246, %v1242
    %v2147 = vpack.c.b16 %v1251, %v1247
    %v2148 = vpack.c.b16 %v1252, %v1248
    %v2149 = vpack.c.b16 %v1253, %v1249
    %v2150 = vpack.c.b16 %v1254, %v1250
    %v2151 = vpack.c.b16 %v1259, %v1255
    %v2152 = vpack.c.b16 %v1260, %v1256
    %v2153 = vpack.c.b16 %v1261, %v1257
    %v2154 = vpack.c.b16 %v1262, %v1258
    %v2155 = vpack.c.b16 %v1267, %v1263
    %v2156 = vpack.c.b16 %v1268, %v1264
    %v2157 = vpack.c.b16 %v1269, %v1265
    %v2158 = vpack.c.b16 %v1270, %v1266
    %v2159 = vpack.c.b16 %v1275, %v1271
    %v2160 = vpack.c.b16 %v1276, %v1272
    %v2161 = vpack.c.b16 %v1277, %v1273
    %v2162 = vpack.c.b16 %v1278, %v1274
    %v2163 = vpack.c.b16 %v1283, %v1279
    %v2164 = vpack.c.b16 %v1284, %v1280
    %v2165 = vpack.c.b16 %v1285, %v1281
    %v2166 = vpack.c.b16 %v1286, %v1282
    %v2167 = vpack.c.b16 %v1291, %v1287
    %v2168 = vpack.c.b16 %v1292, %v1288
    %v2169 = vpack.c.b16 %v1293, %v1289
    %v2170 = vpack.c.b16 %v1294, %v1290
    %v2171 = vpack.c.b16 %v1299, %v1295
    %v2172 = vpack.c.b16 %v1300, %v1296
    %v2173 = vpack.c.b16 %v1301, %v1297
    %v2174 = vpack.c.b16 %v1302, %v1298
    %v2175 = vpack.c.b16 %v1307, %v1303
    %v2176 = vpack.c.b16 %v1308, %v1304
    %v2177 = vpack.c.b16 %v1309, %v1305
    %v2178 = vpack.c.b16 %v1310, %v1306
    %v2179 = vpack.c.b16 %v1315, %v1311
    %v2180 = vpack.c.b16 %v1316, %v1312
    %v2181 = vpack.c.b16 %v1317, %v1313
    %v2182 = vpack.c.b16 %v1318, %v1314
    %v2183 = vpack.c.b16 %v1323, %v1319
    %v2184 = vpack.c.b16 %v1324, %v1320
    %v2185 = vpack.c.b16 %v1325, %v1321
    %v2186 = vpack.c.b16 %v1326, %v1322
    %v2187 = vpack.c.b16 %v1331, %v1327
    %v2188 = vpack.c.b16 %v1332, %v1328
    %v2189 = vpack.c.b16 %v1333, %v1329
    %v2190 = vpack.c.b16 %v1334, %v1330
    %v2191 = vpack.c.b16 %v1339, %v1335
    %v2192 = vpack.c.b16 %v1340, %v1336
    %v2193 = vpack.c.b16 %v1341, %v1337
    %v2194 = vpack.c.b16 %v1342, %v1338
    %v2195 = vpack.c.b16 %v1347, %v1343
    %v2196 = vpack.c.b16 %v1348, %v1344
    %v2197 = vpack.c.b16 %v1349, %v1345
    %v2198 = vpack.c.b16 %v1350, %v1346
    %v2199 = vpack.c.b16 %v1355, %v1351
    %v2200 = vpack.c.b16 %v1356, %v1352
    %v2201 = vpack.c.b16 %v1357, %v1353
    %v2202 = vpack.c.b16 %v1358, %v1354
    %v2203 = vpack.c.b16 %v1363, %v1359
    %v2204 = vpack.c.b16 %v1364, %v1360
    %v2205 = vpack.c.b16 %v1365, %v1361
    %v2206 = vpack.c.b16 %v1366, %v1362
    %v2207 = vpack.c.b16 %v1371, %v1367
    %v2208 = vpack.c.b16 %v1372, %v1368
    %v2209 = vpack.c.b16 %v1373, %v1369
    %v2210 = vpack.c.b16 %v1374, %v1370
    %v2211 = vpack.c.b16 %v1379, %v1375
    %v2212 = vpack.c.b16 %v1380, %v1376
    %v2213 = vpack.c.b16 %v1381, %v1377
    %v2214 = vpack.c.b16 %v1382, %v1378
    %v2215 = vpack.c.b16 %v1387, %v1383
    %v2216 = vpack.c.b16 %v1388, %v1384
    %v2217 = vpack.c.b16 %v1389, %v1385
    %v2218 = vpack.c.b16 %v1390, %v1386
    %v2219 = vpack.c.b16 %v1395, %v1391
    %v2220 = vpack.c.b16 %v1396, %v1392
    %v2221 = vpack.c.b16 %v1397, %v1393
    %v2222 = vpack.c.b16 %v1398, %v1394
    %v2223 = vpack.c.b16 %v1403, %v1399
    %v2224 = vpack.c.b16 %v1404, %v1400
    %v2225 = vpack.c.b16 %v1405, %v1401
    %v2226 = vpack.c.b16 %v1406, %v1402
    %v2227 = vpack.c.b16 %v1411, %v1407
    %v2228 = vpack.c.b16 %v1412, %v1408
    %v2229 = vpack.c.b16 %v1413, %v1409
    %v2230 = vpack.c.b16 %v1414, %v1410
    %v2231 = vpack.c.b16 %v1419, %v1415
    %v2232 = vpack.c.b16 %v1420, %v1416
    %v2233 = vpack.c.b16 %v1421, %v1417
    %v2234 = vpack.c.b16 %v1422, %v1418
    %v2235 = vpack.c.b16 %v1427, %v1423
    %v2236 = vpack.c.b16 %v1428, %v1424
    %v2237 = vpack.c.b16 %v1429, %v1425
    %v2238 = vpack.c.b16 %v1430, %v1426
    %v2239 = vpack.c.b16 %v1435, %v1431
    %v2240 = vpack.c.b16 %v1436, %v1432
    %v2241 = vpack.c.b16 %v1437, %v1433
    %v2242 = vpack.c.b16 %v1438, %v1434
    %v2243 = vpack.c.b16 %v1443, %v1439
    %v2244 = vpack.c.b16 %v1444, %v1440
    %v2245 = vpack.c.b16 %v1445, %v1441
    %v2246 = vpack.c.b16 %v1446, %v1442
    %v2247 = vpack.c.b16 %v1451, %v1447
    %v2248 = vpack.c.b16 %v1452, %v1448
    %v2249 = vpack.c.b16 %v1453, %v1449
    %v2250 = vpack.c.b16 %v1454, %v1450
    %v2251 = vpack.c.b16 %v1459, %v1455
    %v2252 = vpack.c.b16 %v1460, %v1456
    %v2253 = vpack.c.b16 %v1461, %v1457
    %v2254 = vpack.c.b16 %v1462, %v1458
    %v2255 = vpack.c.b16 %v1467, %v1463
    %v2256 = vpack.c.b16 %v1468, %v1464
    %v2257 = vpack.c.b16 %v1469, %v1465
    %v2258 = vpack.c.b16 %v1470, %v1466
    %v2259 = vpack.c.b16 %v1475, %v1471
    %v2260 = vpack.c.b16 %v1476, %v1472
    %v2261 = vpack.c.b16 %v1477, %v1473
    %v2262 = vpack.c.b16 %v1478, %v1474
    %v2263 = vpack.c.b16 %v1483, %v1479
    %v2264 = vpack.c.b16 %v1484, %v1480
    %v2265 = vpack.c.b16 %v1485, %v1481
    %v2266 = vpack.c.b16 %v1486, %v1482
    %v2267 = vpack.c.b16 %v1491, %v1487
    %v2268 = vpack.c.b16 %v1492, %v1488
    %v2269 = vpack.c.b16 %v1493, %v1489
    %v2270 = vpack.c.b16 %v1494, %v1490
    %v2271 = vpack.c.b16 %v1499, %v1495
    %v2272 = vpack.c.b16 %v1500, %v1496
    %v2273 = vpack.c.b16 %v1501, %v1497
    %v2274 = vpack.c.b16 %v1502, %v1498
    %v2275 = vpack.c.b16 %v1507, %v1503
    %v2276 = vpack.c.b16 %v1508, %v1504
    %v2277 = vpack.c.b16 %v1509, %v1505
    %v2278 = vpack.c.b16 %v1510, %v1506
    %v2279 = vpack.c.b16 %v1515, %v1511
    %v2280 = vpack.c.b16 %v1516, %v1512
    %v2281 = vpack.c.b16 %v1517, %v1513
    %v2282 = vpack.c.b16 %v1518, %v1514
    %v2283 = vpack.c.b16 %v1523, %v1519
    %v2284 = vpack.c.b16 %v1524, %v1520
    %v2285 = vpack.c.b16 %v1525, %v1521
    %v2286 = vpack.c.b16 %v1526, %v1522
    %v2287 = vpack.c.b16 %v1531, %v1527
    %v2288 = vpack.c.b16 %v1532, %v1528
    %v2289 = vpack.c.b16 %v1533, %v1529
    %v2290 = vpack.c.b16 %v1534, %v1530
    %v2291 = vpack.c.b16 %v1539, %v1535
    %v2292 = vpack.c.b16 %v1540, %v1536
    %v2293 = vpack.c.b16 %v1541, %v1537
    %v2294 = vpack.c.b16 %v1542, %v1538
    %v2295 = vpack.c.b16 %v1547, %v1543
    %v2296 = vpack.c.b16 %v1548, %v1544
    %v2297 = vpack.c.b16 %v1549, %v1545
    %v2298 = vpack.c.b16 %v1550, %v1546
    %v2299 = vpack.c.b16 %v1555, %v1551
    %v2300 = vpack.c.b16 %v1556, %v1552
    %v2301 = vpack.c.b16 %v1557, %v1553
    %v2302 = vpack.c.b16 %v1558, %v1554
    %v2303 = vpack.c.b16 %v1563, %v1559
    %v2304 = vpack.c.b16 %v1564, %v1560
    %v2305 = vpack.c.b16 %v1565, %v1561
    %v2306 = vpack.c.b16 %v1566, %v1562
    %v2307 = vpack.c.b16 %v1571, %v1567
    %v2308 = vpack.c.b16 %v1572, %v1568
    %v2309 = vpack.c.b16 %v1573, %v1569
    %v2310 = vpack.c.b16 %v1574, %v1570
    %v2311 = vpack.c.b16 %v1579, %v1575
    %v2312 = vpack.c.b16 %v1580, %v1576
    %v2313 = vpack.c.b16 %v1581, %v1577
    %v2314 = vpack.c.b16 %v1582, %v1578
    %v2315 = vpack.c.b16 %v1587, %v1583
    %v2316 = vpack.c.b16 %v1588, %v1584
    %v2317 = vpack.c.b16 %v1589, %v1585
    %v2318 = vpack.c.b16 %v1590, %v1586
    %v2319 = vpack.c.b16 %v1595, %v1591
    %v2320 = vpack.c.b16 %v1596, %v1592
    %v2321 = vpack.c.b16 %v1597, %v1593
    %v2322 = vpack.c.b16 %v1598, %v1594
    %v2323 = vpack.c.b16 %v1603, %v1599
    %v2324 = vpack.c.b16 %v1604, %v1600
    %v2325 = vpack.c.b16 %v1605, %v1601
    %v2326 = vpack.c.b16 %v1606, %v1602
    %v2327 = vpack.c.b16 %v1611, %v1607
    %v2328 = vpack.c.b16 %v1612, %v1608
    %v2329 = vpack.c.b16 %v1613, %v1609
    %v2330 = vpack.c.b16 %v1614, %v1610
    %v2331 = vpack.c.b16 %v1619, %v1615
    %v2332 = vpack.c.b16 %v1620, %v1616
    %v2333 = vpack.c.b16 %v1621, %v1617
    %v2334 = vpack.c.b16 %v1622, %v1618
    %v2335 = vpack.c.b16 %v1627, %v1623
    %v2336 = vpack.c.b16 %v1628, %v1624
    %v2337 = vpack.c.b16 %v1629, %v1625
    %v2338 = vpack.c.b16 %v1630, %v1626
    %v2339 = vpack.c.b16 %v1635, %v1631
    %v2340 = vpack.c.b16 %v1636, %v1632
    %v2341 = vpack.c.b16 %v1637, %v1633
    %v2342 = vpack.c.b16 %v1638, %v1634
    %v2343 = vpack.c.b16 %v1643, %v1639
    %v2344 = vpack.c.b16 %v1644, %v1640
    %v2345 = vpack.c.b16 %v1645, %v1641
    %v2346 = vpack.c.b16 %v1646, %v1642
    %v2347 = vpack.c.b16 %v1651, %v1647
    %v2348 = vpack.c.b16 %v1652, %v1648
    %v2349 = vpack.c.b16 %v1653, %v1649
    %v2350 = vpack.c.b16 %v1654, %v1650
    %v2351 = vpack.c.b16 %v1659, %v1655
    %v2352 = vpack.c.b16 %v1660, %v1656
    %v2353 = vpack.c.b16 %v1661, %v1657
    %v2354 = vpack.c.b16 %v1662, %v1658
    %v2355 = vpack.c.b16 %v1667, %v1663
    %v2356 = vpack.c.b16 %v1668, %v1664
    %v2357 = vpack.c.b16 %v1669, %v1665
    %v2358 = vpack.c.b16 %v1670, %v1666
    %v2359 = vpack.c.b16 %v1675, %v1671
    %v2360 = vpack.c.b16 %v1676, %v1672
    %v2361 = vpack.c.b16 %v1677, %v1673
    %v2362 = vpack.c.b16 %v1678, %v1674
    %v2363 = vpack.c.b16 %v1683, %v1679
    %v2364 = vpack.c.b16 %v1684, %v1680
    %v2365 = vpack.c.b16 %v1685, %v1681
    %v2366 = vpack.c.b16 %v1686, %v1682
    %v2367 = vpack.c.b16 %v1691, %v1687
    %v2368 = vpack.c.b16 %v1692, %v1688
    %v2369 = vpack.c.b16 %v1693, %v1689
    %v2370 = vpack.c.b16 %v1694, %v1690
    %v2371 = vpack.c.b16 %v1699, %v1695
    %v2372 = vpack.c.b16 %v1700, %v1696
    %v2373 = vpack.c.b16 %v1701, %v1697
    %v2374 = vpack.c.b16 %v1702, %v1698
    %v2375 = vpack.c.b16 %v1707, %v1703
    %v2376 = vpack.c.b16 %v1708, %v1704
    %v2377 = vpack.c.b16 %v1709, %v1705
    %v2378 = vpack.c.b16 %v1710, %v1706
    %v2379 = vpack.c.b16 %v1715, %v1711
    %v2380 = vpack.c.b16 %v1716, %v1712
    %v2381 = vpack.c.b16 %v1717, %v1713
    %v2382 = vpack.c.b16 %v1718, %v1714
    %v2383 = vpack.c.b16 %v1723, %v1719
    %v2384 = vpack.c.b16 %v1724, %v1720
    %v2385 = vpack.c.b16 %v1725, %v1721
    %v2386 = vpack.c.b16 %v1726, %v1722
    %v2387 = vpack.c.b16 %v1731, %v1727
    %v2388 = vpack.c.b16 %v1732, %v1728
    %v2389 = vpack.c.b16 %v1733, %v1729
    %v2390 = vpack.c.b16 %v1734, %v1730
    %v2391 = vpack.c.b16 %v1739, %v1735
    %v2392 = vpack.c.b16 %v1740, %v1736
    %v2393 = vpack.c.b16 %v1741, %v1737
    %v2394 = vpack.c.b16 %v1742, %v1738
    %v2395 = vpack.c.b16 %v1747, %v1743
    %v2396 = vpack.c.b16 %v1748, %v1744
    %v2397 = vpack.c.b16 %v1749, %v1745
    %v2398 = vpack.c.b16 %v1750, %v1746
    %v2399 = vpack.c.b16 %v1755, %v1751
    %v2400 = vpack.c.b16 %v1756, %v1752
    %v2401 = vpack.c.b16 %v1757, %v1753
    %v2402 = vpack.c.b16 %v1758, %v1754
    %v2403 = vpack.c.b16 %v1763, %v1759
    %v2404 = vpack.c.b16 %v1764, %v1760
    %v2405 = vpack.c.b16 %v1765, %v1761
    %v2406 = vpack.c.b16 %v1766, %v1762
    %v2407 = vpack.c.b16 %v1771, %v1767
    %v2408 = vpack.c.b16 %v1772, %v1768
    %v2409 = vpack.c.b16 %v1773, %v1769
    %v2410 = vpack.c.b16 %v1774, %v1770
    %v2411 = vpack.c.b16 %v1779, %v1775
    %v2412 = vpack.c.b16 %v1780, %v1776
    %v2413 = vpack.c.b16 %v1781, %v1777
    %v2414 = vpack.c.b16 %v1782, %v1778
    %v2415 = vpack.c.b16 %v1787, %v1783
    %v2416 = vpack.c.b16 %v1788, %v1784
    %v2417 = vpack.c.b16 %v1789, %v1785
    %v2418 = vpack.c.b16 %v1790, %v1786
    %v2419 = vpack.c.b16 %v1795, %v1791
    %v2420 = vpack.c.b16 %v1796, %v1792
    %v2421 = vpack.c.b16 %v1797, %v1793
    %v2422 = vpack.c.b16 %v1798, %v1794
    %v2423 = vpack.c.b16 %v1803, %v1799
    %v2424 = vpack.c.b16 %v1804, %v1800
    %v2425 = vpack.c.b16 %v1805, %v1801
    %v2426 = vpack.c.b16 %v1806, %v1802
    %v2427 = vpack.c.b16 %v1811, %v1807
    %v2428 = vpack.c.b16 %v1812, %v1808
    %v2429 = vpack.c.b16 %v1813, %v1809
    %v2430 = vpack.c.b16 %v1814, %v1810
    %v2431 = vpack.c.b16 %v1819, %v1815
    %v2432 = vpack.c.b16 %v1820, %v1816
    %v2433 = vpack.c.b16 %v1821, %v1817
    %v2434 = vpack.c.b16 %v1822, %v1818
    %v2435 = vpack.c.b16 %v1827, %v1823
    %v2436 = vpack.c.b16 %v1828, %v1824
    %v2437 = vpack.c.b16 %v1829, %v1825
    %v2438 = vpack.c.b16 %v1830, %v1826
    %v2439 = vpack.c.b16 %v1835, %v1831
    %v2440 = vpack.c.b16 %v1836, %v1832
    %v2441 = vpack.c.b16 %v1837, %v1833
    %v2442 = vpack.c.b16 %v1838, %v1834
    %v2443 = vpack.c.b16 %v1843, %v1839
    %v2444 = vpack.c.b16 %v1844, %v1840
    %v2445 = vpack.c.b16 %v1845, %v1841
    %v2446 = vpack.c.b16 %v1846, %v1842
    %v2447 = vpack.c.b16 %v1851, %v1847
    %v2448 = vpack.c.b16 %v1852, %v1848
    %v2449 = vpack.c.b16 %v1853, %v1849
    %v2450 = vpack.c.b16 %v1854, %v1850
    %v2451 = vpack.c.b16 %v1859, %v1855
    %v2452 = vpack.c.b16 %v1860, %v1856
    %v2453 = vpack.c.b16 %v1861, %v1857
    %v2454 = vpack.c.b16 %v1862, %v1858
    %v2455 = vpack.c.b16 %v1867, %v1863
    %v2456 = vpack.c.b16 %v1868, %v1864
    %v2457 = vpack.c.b16 %v1869, %v1865
    %v2458 = vpack.c.b16 %v1870, %v1866
    %v2459 = vpack.c.b16 %v1875, %v1871
    %v2460 = vpack.c.b16 %v1876, %v1872
    %v2461 = vpack.c.b16 %v1877, %v1873
    %v2462 = vpack.c.b16 %v1878, %v1874
    %v2463 = vpack.c.b16 %v1883, %v1879
    %v2464 = vpack.c.b16 %v1884, %v1880
    %v2465 = vpack.c.b16 %v1885, %v1881
    %v2466 = vpack.c.b16 %v1886, %v1882
    %v2467 = vpack.c.b16 %v1891, %v1887
    %v2468 = vpack.c.b16 %v1892, %v1888
    %v2469 = vpack.c.b16 %v1893, %v1889
    %v2470 = vpack.c.b16 %v1894, %v1890
    %v2471 = vpack.c.b16 %v1899, %v1895
    %v2472 = vpack.c.b16 %v1900, %v1896
    %v2473 = vpack.c.b16 %v1901, %v1897
    %v2474 = vpack.c.b16 %v1902, %v1898
    %v2475 = vpack.c.b16 %v1907, %v1903
    %v2476 = vpack.c.b16 %v1908, %v1904
    %v2477 = vpack.c.b16 %v1909, %v1905
    %v2478 = vpack.c.b16 %v1910, %v1906
    %v2479 = vpack.c.b16 %v1915, %v1911
    %v2480 = vpack.c.b16 %v1916, %v1912
    %v2481 = vpack.c.b16 %v1917, %v1913
    %v2482 = vpack.c.b16 %v1918, %v1914
    %v2483 = vpack.c.b16 %v1923, %v1919
    %v2484 = vpack.c.b16 %v1924, %v1920
    %v2485 = vpack.c.b16 %v1925, %v1921
    %v2486 = vpack.c.b16 %v1926, %v1922
    %v2487 = vpack.c.b16 %v1931, %v1927
    %v2488 = vpack.c.b16 %v1932, %v1928
    %v2489 = vpack.c.b16 %v1933, %v1929
    %v2490 = vpack.c.b16 %v1934, %v1930
    %v2491 = vpack.c.b16 %v1939, %v1935
    %v2492 = vpack.c.b16 %v1940, %v1936
    %v2493 = vpack.c.b16 %v1941, %v1937
    %v2494 = vpack.c.b16 %v1942, %v1938
    %v2495 = vpack.c.b16 %v1947, %v1943
    %v2496 = vpack.c.b16 %v1948, %v1944
    %v2497 = vpack.c.b16 %v1949, %v1945
    %v2498 = vpack.c.b16 %v1950, %v1946
    %v2499 = vpack.c.b16 %v1955, %v1951
    %v2500 = vpack.c.b16 %v1956, %v1952
    %v2501 = vpack.c.b16 %v1957, %v1953
    %v2502 = vpack.c.b16 %v1958, %v1954
    %v2503 = vpack.c.b16 %v1963, %v1959
    %v2504 = vpack.c.b16 %v1964, %v1960
    %v2505 = vpack.c.b16 %v1965, %v1961
    %v2506 = vpack.c.b16 %v1966, %v1962
    %v2507 = vpack.c.b16 %v1971, %v1967
    %v2508 = vpack.c.b16 %v1972, %v1968
    %v2509 = vpack.c.b16 %v1973, %v1969
    %v2510 = vpack.c.b16 %v1974, %v1970
    %v2511 = vpack.c.b16 %v1979, %v1975
    %v2512 = vpack.c.b16 %v1980, %v1976
    %v2513 = vpack.c.b16 %v1981, %v1977
    %v2514 = vpack.c.b16 %v1982, %v1978
    %v2515 = vpack.c.b16 %v1987, %v1983
    %v2516 = vpack.c.b16 %v1988, %v1984
    %v2517 = vpack.c.b16 %v1989, %v1985
    %v2518 = vpack.c.b16 %v1990, %v1986
    %v2519 = vpack.c.b16 %v1995, %v1991
    %v2520 = vpack.c.b16 %v1996, %v1992
    %v2521 = vpack.c.b16 %v1997, %v1993
    %v2522 = vpack.c.b16 %v1998, %v1994
    %v2523 = vpack.c.b16 %v2003, %v1999
    %v2524 = vpack.c.b16 %v2004, %v2000
    %v2525 = vpack.c.b16 %v2005, %v2001
    %v2526 = vpack.c.b16 %v2006, %v2002
    %v2527 = vpack.c.b16 %v2011, %v2007
    %v2528 = vpack.c.b16 %v2012, %v2008
    %v2529 = vpack.c.b16 %v2013, %v2009
    %v2530 = vpack.c.b16 %v2014, %v2010
    %v2531 = vpack.c.b16 %v2019, %v2015
    %v2532 = vpack.c.b16 %v2020, %v2016
    %v2533 = vpack.c.b16 %v2021, %v2017
    %v2534 = vpack.c.b16 %v2022, %v2018
    %v2535 = vpack.c.b16 %v2027, %v2023
    %v2536 = vpack.c.b16 %v2028, %v2024
    %v2537 = vpack.c.b16 %v2029, %v2025
    %v2538 = vpack.c.b16 %v2030, %v2026
    %v2539 = vpack.c.b16 %v2035, %v2031
    %v2540 = vpack.c.b16 %v2036, %v2032
    %v2541 = vpack.c.b16 %v2037, %v2033
    %v2542 = vpack.c.b16 %v2038, %v2034
    %v2543 = vpack.c.b16 %v2043, %v2039
    %v2544 = vpack.c.b16 %v2044, %v2040
    %v2545 = vpack.c.b16 %v2045, %v2041
    %v2546 = vpack.c.b16 %v2046, %v2042
    %v2547 = vpack.c.b16 %v2051, %v2047
    %v2548 = vpack.c.b16 %v2052, %v2048
    %v2549 = vpack.c.b16 %v2053, %v2049
    %v2550 = vpack.c.b16 %v2054, %v2050
    %v2551 = vpack.c.b16 %v2059, %v2055
    %v2552 = vpack.c.b16 %v2060, %v2056
    %v2553 = vpack.c.b16 %v2061, %v2057
    %v2554 = vpack.c.b16 %v2062, %v2058
    %v2555 = vpack.c.b16 %v2067, %v2063
    %v2556 = vpack.c.b16 %v2068, %v2064
    %v2557 = vpack.c.b16 %v2069, %v2065
    %v2558 = vpack.c.b16 %v2070, %v2066
    %v2559 = vpack.c.b16 %v2075, %v2071
    %v2560 = vpack.c.b16 %v2076, %v2072
    %v2561 = vpack.c.b16 %v2077, %v2073
    %v2562 = vpack.c.b16 %v2078, %v2074
    %v2563 = vpack.c.b16 %v2083, %v2079
    %v2564 = vpack.c.b16 %v2084, %v2080
    %v2565 = vpack.c.b16 %v2085, %v2081
    %v2566 = vpack.c.b16 %v2086, %v2082
    %3047 = vmatprep.subr.bf16.mxu0 %v2088
    %3048 = vmatpush1.bf16.msra.mxu0 %v2087
    %3049 = vmatprep.subr.bf16.mxu0 %v2092
    %3050 = vmatpush1.bf16.msra.mxu0 %v2091
    %3051 = vmatprep.subr.bf16.mxu0 %v2096
    %3052 = vmatpush1.bf16.msra.mxu0 %v2095
    %3053 = vmatprep.subr.bf16.mxu0 %v2100
    %3054 = vmatpush1.bf16.msra.mxu0 %v2099
    %3055 = vmatprep.subr.bf16.mxu0 %v2104
    %3056 = vmatpush1.bf16.msra.mxu0 %v2103
    %3057 = vmatprep.subr.bf16.mxu0 %v2108
    %3058 = vmatpush1.bf16.msra.mxu0 %v2107
    %3059 = vmatprep.subr.bf16.mxu0 %v2112
    %3060 = vmatpush1.bf16.msra.mxu0 %v2111
    %3061 = vmatprep.subr.bf16.mxu0 %v2116
    %3062 = vmatpush1.bf16.msra.mxu0 %v2115
    %3063 = vmatprep.subr.bf16.mxu0 %v2120
    %3064 = vmatpush1.bf16.msra.mxu0 %v2119
    %3065 = vmatprep.subr.bf16.mxu0 %v2124
    %3066 = vmatpush1.bf16.msra.mxu0 %v2123
    %3067 = vmatprep.subr.bf16.mxu0 %v2128
    %3068 = vmatpush1.bf16.msra.mxu0 %v2127
    %3069 = vmatprep.subr.bf16.mxu0 %v2132
    %3070 = vmatpush1.bf16.msra.mxu0 %v2131
    %3071 = vmatprep.subr.bf16.mxu0 %v2136
    %3072 = vmatpush1.bf16.msra.mxu0 %v2135
    %3073 = vmatprep.subr.bf16.mxu0 %v2140
    %3074 = vmatpush1.bf16.msra.mxu0 %v2139
    %3075 = vmatprep.subr.bf16.mxu0 %v2144
    %3076 = vmatpush1.bf16.msra.mxu0 %v2143
    %3077 = vmatprep.subr.bf16.mxu0 %v2148
    %3078 = vmatpush1.bf16.msra.mxu0 %v2147
    %3079 = vmatprep.mubr.bf16.mxu0 %v618
    %3080 = vmatmul.mubr.bf16.gmra.mrb[0].mxu0 %v617
    %v3081 = vpop.f32.mrb[0].mxu0
    %v3082 = vadd.f32 %v577, %v3081
    %v3083 = vpop.f32.mrb[0].mxu0
    %v3084 = vadd.f32 %v581, %v3083
    %v3085 = vpop.f32.mrb[0].mxu0
    %v3086 = vpop.f32.mrb[0].mxu0
    %3087 = vdwg.mxu0
    %3088 = vmatprep.subr.bf16.mxu0 %v2152
    %3089 = vmatpush1.bf16.msra.mxu0 %v2151
    %3090 = vmatprep.subr.bf16.mxu0 %v2156
    %3091 = vmatpush1.bf16.msra.mxu0 %v2155
    %3092 = vmatprep.subr.bf16.mxu0 %v2160
    %3093 = vmatpush1.bf16.msra.mxu0 %v2159
    %3094 = vmatprep.subr.bf16.mxu0 %v2164
    %3095 = vmatpush1.bf16.msra.mxu0 %v2163
    %3096 = vmatprep.subr.bf16.mxu0 %v2168
    %3097 = vmatpush1.bf16.msra.mxu0 %v2167
    %3098 = vmatprep.subr.bf16.mxu0 %v2172
    %3099 = vmatpush1.bf16.msra.mxu0 %v2171
    %3100 = vmatprep.subr.bf16.mxu0 %v2176
    %3101 = vmatpush1.bf16.msra.mxu0 %v2175
    %3102 = vmatprep.subr.bf16.mxu0 %v2180
    %3103 = vmatpush1.bf16.msra.mxu0 %v2179
    %3104 = vmatprep.subr.bf16.mxu0 %v2184
    %3105 = vmatpush1.bf16.msra.mxu0 %v2183
    %3106 = vmatprep.subr.bf16.mxu0 %v2188
    %3107 = vmatpush1.bf16.msra.mxu0 %v2187
    %3108 = vmatprep.subr.bf16.mxu0 %v2192
    %3109 = vmatpush1.bf16.msra.mxu0 %v2191
    %3110 = vmatprep.subr.bf16.mxu0 %v2196
    %3111 = vmatpush1.bf16.msra.mxu0 %v2195
    %3112 = vmatprep.subr.bf16.mxu0 %v2200
    %3113 = vmatpush1.bf16.msra.mxu0 %v2199
    %3114 = vmatprep.subr.bf16.mxu0 %v2204
    %3115 = vmatpush1.bf16.msra.mxu0 %v2203
    %3116 = vmatprep.subr.bf16.mxu0 %v2208
    %3117 = vmatpush1.bf16.msra.mxu0 %v2207
    %3118 = vmatprep.subr.bf16.mxu0 %v2212
    %3119 = vmatpush1.bf16.msra.mxu0 %v2211
    %3120 = vmatprep.mubr.bf16.mxu0 %v620
    %3121 = vmatmul.mubr.bf16.gmra.mrb[0].mxu0 %v619
    %v3122 = vpop.f32.mrb[0].mxu0
    %v3123 = vadd.f32 %v3082, %v3122
    %v3124 = vpop.f32.mrb[0].mxu0
    %v3125 = vadd.f32 %v3084, %v3124
    %v3126 = vpop.f32.mrb[0].mxu0
    %v3127 = vpop.f32.mrb[0].mxu0
    %3128 = vdwg.mxu0
    %3129 = vmatprep.subr.bf16.mxu0 %v2216
    %3130 = vmatpush1.bf16.msra.mxu0 %v2215
    %3131 = vmatprep.subr.bf16.mxu0 %v2220
    %3132 = vmatpush1.bf16.msra.mxu0 %v2219
    %3133 = vmatprep.subr.bf16.mxu0 %v2224
    %3134 = vmatpush1.bf16.msra.mxu0 %v2223
    %3135 = vmatprep.subr.bf16.mxu0 %v2228
    %3136 = vmatpush1.bf16.msra.mxu0 %v2227
    %3137 = vmatprep.subr.bf16.mxu0 %v2232
    %3138 = vmatpush1.bf16.msra.mxu0 %v2231
    %3139 = vmatprep.subr.bf16.mxu0 %v2236
    %3140 = vmatpush1.bf16.msra.mxu0 %v2235
    %3141 = vmatprep.subr.bf16.mxu0 %v2240
    %3142 = vmatpush1.bf16.msra.mxu0 %v2239
    %3143 = vmatprep.subr.bf16.mxu0 %v2244
    %3144 = vmatpush1.bf16.msra.mxu0 %v2243
    %3145 = vmatprep.subr.bf16.mxu0 %v2248
    %3146 = vmatpush1.bf16.msra.mxu0 %v2247
    %3147 = vmatprep.subr.bf16.mxu0 %v2252
    %3148 = vmatpush1.bf16.msra.mxu0 %v2251
    %3149 = vmatprep.subr.bf16.mxu0 %v2256
    %3150 = vmatpush1.bf16.msra.mxu0 %v2255
    %3151 = vmatprep.subr.bf16.mxu0 %v2260
    %3152 = vmatpush1.bf16.msra.mxu0 %v2259
    %3153 = vmatprep.subr.bf16.mxu0 %v2264
    %3154 = vmatpush1.bf16.msra.mxu0 %v2263
    %3155 = vmatprep.subr.bf16.mxu0 %v2268
    %3156 = vmatpush1.bf16.msra.mxu0 %v2267
    %3157 = vmatprep.subr.bf16.mxu0 %v2272
    %3158 = vmatpush1.bf16.msra.mxu0 %v2271
    %3159 = vmatprep.subr.bf16.mxu0 %v2276
    %3160 = vmatpush1.bf16.msra.mxu0 %v2275
    %3161 = vmatprep.mubr.bf16.mxu0 %v622
    %3162 = vmatmul.mubr.bf16.gmra.mrb[0].mxu0 %v621
    %v3163 = vpop.f32.mrb[0].mxu0
    %v3164 = vadd.f32 %v3123, %v3163
    %v3165 = vpop.f32.mrb[0].mxu0
    %v3166 = vadd.f32 %v3125, %v3165
    %v3167 = vpop.f32.mrb[0].mxu0
    %v3168 = vpop.f32.mrb[0].mxu0
    %3169 = vdwg.mxu0
    %3170 = vmatprep.subr.bf16.mxu0 %v2280
    %3171 = vmatpush1.bf16.msra.mxu0 %v2279
    %3172 = vmatprep.subr.bf16.mxu0 %v2284
    %3173 = vmatpush1.bf16.msra.mxu0 %v2283
    %3174 = vmatprep.subr.bf16.mxu0 %v2288
    %3175 = vmatpush1.bf16.msra.mxu0 %v2287
    %3176 = vmatprep.subr.bf16.mxu0 %v2292
    %3177 = vmatpush1.bf16.msra.mxu0 %v2291
    %3178 = vmatprep.subr.bf16.mxu0 %v2296
    %3179 = vmatpush1.bf16.msra.mxu0 %v2295
    %3180 = vmatprep.subr.bf16.mxu0 %v2300
    %3181 = vmatpush1.bf16.msra.mxu0 %v2299
    %3182 = vmatprep.subr.bf16.mxu0 %v2304
    %3183 = vmatpush1.bf16.msra.mxu0 %v2303
    %3184 = vmatprep.subr.bf16.mxu0 %v2308
    %3185 = vmatpush1.bf16.msra.mxu0 %v2307
    %3186 = vmatprep.subr.bf16.mxu0 %v2312
    %3187 = vmatpush1.bf16.msra.mxu0 %v2311
    %3188 = vmatprep.subr.bf16.mxu0 %v2316
    %3189 = vmatpush1.bf16.msra.mxu0 %v2315
    %3190 = vmatprep.subr.bf16.mxu0 %v2320
    %3191 = vmatpush1.bf16.msra.mxu0 %v2319
    %3192 = vmatprep.subr.bf16.mxu0 %v2324
    %3193 = vmatpush1.bf16.msra.mxu0 %v2323
    %3194 = vmatprep.subr.bf16.mxu0 %v2328
    %3195 = vmatpush1.bf16.msra.mxu0 %v2327
    %3196 = vmatprep.subr.bf16.mxu0 %v2332
    %3197 = vmatpush1.bf16.msra.mxu0 %v2331
    %3198 = vmatprep.subr.bf16.mxu0 %v2336
    %3199 = vmatpush1.bf16.msra.mxu0 %v2335
    %3200 = vmatprep.subr.bf16.mxu0 %v2340
    %3201 = vmatpush1.bf16.msra.mxu0 %v2339
    %3202 = vmatprep.mubr.bf16.mxu0 %v624
    %3203 = vmatmul.mubr.bf16.gmra.mrb[0].mxu0 %v623
    %v3204 = vpop.f32.mrb[0].mxu0
    %v3205 = vadd.f32 %v3164, %v3204
    %v3206 = vpop.f32.mrb[0].mxu0
    %v3207 = vadd.f32 %v3166, %v3206
    %v3208 = vpop.f32.mrb[0].mxu0
    %v3209 = vpop.f32.mrb[0].mxu0
    %3210 = vdwg.mxu0
    %3211 = vmatprep.subr.bf16.mxu0 %v2344
    %3212 = vmatpush1.bf16.msra.mxu0 %v2343
    %3213 = vmatprep.subr.bf16.mxu0 %v2348
    %3214 = vmatpush1.bf16.msra.mxu0 %v2347
    %3215 = vmatprep.subr.bf16.mxu0 %v2352
    %3216 = vmatpush1.bf16.msra.mxu0 %v2351
    %3217 = vmatprep.subr.bf16.mxu0 %v2356
    %3218 = vmatpush1.bf16.msra.mxu0 %v2355
    %3219 = vmatprep.subr.bf16.mxu0 %v2360
    %3220 = vmatpush1.bf16.msra.mxu0 %v2359
    %3221 = vmatprep.subr.bf16.mxu0 %v2364
    %3222 = vmatpush1.bf16.msra.mxu0 %v2363
    %3223 = vmatprep.subr.bf16.mxu0 %v2368
    %3224 = vmatpush1.bf16.msra.mxu0 %v2367
    %3225 = vmatprep.subr.bf16.mxu0 %v2372
    %3226 = vmatpush1.bf16.msra.mxu0 %v2371
    %3227 = vmatprep.subr.bf16.mxu0 %v2376
    %3228 = vmatpush1.bf16.msra.mxu0 %v2375
    %3229 = vmatprep.subr.bf16.mxu0 %v2380
    %3230 = vmatpush1.bf16.msra.mxu0 %v2379
    %3231 = vmatprep.subr.bf16.mxu0 %v2384
    %3232 = vmatpush1.bf16.msra.mxu0 %v2383
    %3233 = vmatprep.subr.bf16.mxu0 %v2388
    %3234 = vmatpush1.bf16.msra.mxu0 %v2387
    %3235 = vmatprep.subr.bf16.mxu0 %v2392
    %3236 = vmatpush1.bf16.msra.mxu0 %v2391
    %3237 = vmatprep.subr.bf16.mxu0 %v2396
    %3238 = vmatpush1.bf16.msra.mxu0 %v2395
    %3239 = vmatprep.subr.bf16.mxu0 %v2400
    %3240 = vmatpush1.bf16.msra.mxu0 %v2399
    %3241 = vmatprep.subr.bf16.mxu0 %v2404
    %3242 = vmatpush1.bf16.msra.mxu0 %v2403
    %3243 = vmatprep.mubr.bf16.mxu0 %v626
    %3244 = vmatmul.mubr.bf16.gmra.mrb[0].mxu0 %v625
    %v3245 = vpop.f32.mrb[0].mxu0
    %v3246 = vadd.f32 %v3205, %v3245
    %v3247 = vpop.f32.mrb[0].mxu0
    %v3248 = vadd.f32 %v3207, %v3247
    %v3249 = vpop.f32.mrb[0].mxu0
    %v3250 = vpop.f32.mrb[0].mxu0
    %3251 = vdwg.mxu0
    %3252 = vmatprep.subr.bf16.mxu0 %v2408
    %3253 = vmatpush1.bf16.msra.mxu0 %v2407
    %3254 = vmatprep.subr.bf16.mxu0 %v2412
    %3255 = vmatpush1.bf16.msra.mxu0 %v2411
    %3256 = vmatprep.subr.bf16.mxu0 %v2416
    %3257 = vmatpush1.bf16.msra.mxu0 %v2415
    %3258 = vmatprep.subr.bf16.mxu0 %v2420
    %3259 = vmatpush1.bf16.msra.mxu0 %v2419
    %3260 = vmatprep.subr.bf16.mxu0 %v2424
    %3261 = vmatpush1.bf16.msra.mxu0 %v2423
    %3262 = vmatprep.subr.bf16.mxu0 %v2428
    %3263 = vmatpush1.bf16.msra.mxu0 %v2427
    %3264 = vmatprep.subr.bf16.mxu0 %v2432
    %3265 = vmatpush1.bf16.msra.mxu0 %v2431
    %3266 = vmatprep.subr.bf16.mxu0 %v2436
    %3267 = vmatpush1.bf16.msra.mxu0 %v2435
    %3268 = vmatprep.subr.bf16.mxu0 %v2440
    %3269 = vmatpush1.bf16.msra.mxu0 %v2439
    %3270 = vmatprep.subr.bf16.mxu0 %v2444
    %3271 = vmatpush1.bf16.msra.mxu0 %v2443
    %3272 = vmatprep.subr.bf16.mxu0 %v2448
    %3273 = vmatpush1.bf16.msra.mxu0 %v2447
    %3274 = vmatprep.subr.bf16.mxu0 %v2452
    %3275 = vmatpush1.bf16.msra.mxu0 %v2451
    %3276 = vmatprep.subr.bf16.mxu0 %v2456
    %3277 = vmatpush1.bf16.msra.mxu0 %v2455
    %3278 = vmatprep.subr.bf16.mxu0 %v2460
    %3279 = vmatpush1.bf16.msra.mxu0 %v2459
    %3280 = vmatprep.subr.bf16.mxu0 %v2464
    %3281 = vmatpush1.bf16.msra.mxu0 %v2463
    %3282 = vmatprep.subr.bf16.mxu0 %v2468
    %3283 = vmatpush1.bf16.msra.mxu0 %v2467
    %3284 = vmatprep.mubr.bf16.mxu0 %v628
    %3285 = vmatmul.mubr.bf16.gmra.mrb[0].mxu0 %v627
    %v3286 = vpop.f32.mrb[0].mxu0
    %v3287 = vadd.f32 %v3246, %v3286
    %v3288 = vpop.f32.mrb[0].mxu0
    %v3289 = vadd.f32 %v3248, %v3288
    %v3290 = vpop.f32.mrb[0].mxu0
    %v3291 = vpop.f32.mrb[0].mxu0
    %3292 = vdwg.mxu0
    %3293 = vmatprep.subr.bf16.mxu0 %v2472
    %3294 = vmatpush1.bf16.msra.mxu0 %v2471
    %3295 = vmatprep.subr.bf16.mxu0 %v2476
    %3296 = vmatpush1.bf16.msra.mxu0 %v2475
    %3297 = vmatprep.subr.bf16.mxu0 %v2480
    %3298 = vmatpush1.bf16.msra.mxu0 %v2479
    %3299 = vmatprep.subr.bf16.mxu0 %v2484
    %3300 = vmatpush1.bf16.msra.mxu0 %v2483
    %3301 = vmatprep.subr.bf16.mxu0 %v2488
    %3302 = vmatpush1.bf16.msra.mxu0 %v2487
    %3303 = vmatprep.subr.bf16.mxu0 %v2492
    %3304 = vmatpush1.bf16.msra.mxu0 %v2491
    %3305 = vmatprep.subr.bf16.mxu0 %v2496
    %3306 = vmatpush1.bf16.msra.mxu0 %v2495
    %3307 = vmatprep.subr.bf16.mxu0 %v2500
    %3308 = vmatpush1.bf16.msra.mxu0 %v2499
    %3309 = vmatprep.subr.bf16.mxu0 %v2504
    %3310 = vmatpush1.bf16.msra.mxu0 %v2503
    %3311 = vmatprep.subr.bf16.mxu0 %v2508
    %3312 = vmatpush1.bf16.msra.mxu0 %v2507
    %3313 = vmatprep.subr.bf16.mxu0 %v2512
    %3314 = vmatpush1.bf16.msra.mxu0 %v2511
    %3315 = vmatprep.subr.bf16.mxu0 %v2516
    %3316 = vmatpush1.bf16.msra.mxu0 %v2515
    %3317 = vmatprep.subr.bf16.mxu0 %v2520
    %3318 = vmatpush1.bf16.msra.mxu0 %v2519
    %3319 = vmatprep.subr.bf16.mxu0 %v2524
    %3320 = vmatpush1.bf16.msra.mxu0 %v2523
    %3321 = vmatprep.subr.bf16.mxu0 %v2528
    %3322 = vmatpush1.bf16.msra.mxu0 %v2527
    %3323 = vmatprep.subr.bf16.mxu0 %v2532
    %3324 = vmatpush1.bf16.msra.mxu0 %v2531
    %3325 = vmatprep.mubr.bf16.mxu0 %v630
    %3326 = vmatmul.mubr.bf16.gmra.mrb[0].mxu0 %v629
    %v3327 = vpop.f32.mrb[0].mxu0
    %v3328 = vadd.f32 %v3287, %v3327
    %v3329 = vpop.f32.mrb[0].mxu0
    %v3330 = vadd.f32 %v3289, %v3329
    %v3331 = vpop.f32.mrb[0].mxu0
    %v3332 = vpop.f32.mrb[0].mxu0
    %3333 = vdwg.mxu0
    %3334 = vmatprep.subr.bf16.mxu0 %v2536
    %3335 = vmatpush1.bf16.msra.mxu0 %v2535
    %3336 = vmatprep.subr.bf16.mxu0 %v2540
    %3337 = vmatpush1.bf16.msra.mxu0 %v2539
    %3338 = vmatprep.subr.bf16.mxu0 %v2544
    %3339 = vmatpush1.bf16.msra.mxu0 %v2543
    %3340 = vmatprep.subr.bf16.mxu0 %v2548
    %3341 = vmatpush1.bf16.msra.mxu0 %v2547
    %3342 = vmatprep.subr.bf16.mxu0 %v2552
    %3343 = vmatpush1.bf16.msra.mxu0 %v2551
    %3344 = vmatprep.subr.bf16.mxu0 %v2556
    %3345 = vmatpush1.bf16.msra.mxu0 %v2555
    %3346 = vmatprep.subr.bf16.mxu0 %v2560
    %3347 = vmatpush1.bf16.msra.mxu0 %v2559
    %3348 = vmatprep.subr.bf16.mxu0 %v2564
    %3349 = vmatpush1.bf16.msra.mxu0 %v2563
    %3350 = vmatprep.subr.bf16.mxu0 0
    %3351 = vmatpush1.bf16.msra.mxu0 0
    %3352 = vmatprep.subr.bf16.mxu0 0
    %3353 = vmatpush1.bf16.msra.mxu0 0
    %3354 = vmatprep.subr.bf16.mxu0 0
    %3355 = vmatpush1.bf16.msra.mxu0 0
    %3356 = vmatprep.subr.bf16.mxu0 0
    %3357 = vmatpush1.bf16.msra.mxu0 0
    %3358 = vmatprep.subr.bf16.mxu0 0
    %3359 = vmatpush1.bf16.msra.mxu0 0
    %3360 = vmatprep.subr.bf16.mxu0 0
    %3361 = vmatpush1.bf16.msra.mxu0 0
    %3362 = vmatprep.subr.bf16.mxu0 0
    %3363 = vmatpush1.bf16.msra.mxu0 0
    %3364 = vmatprep.subr.bf16.mxu0 0
    %3365 = vmatpush1.bf16.msra.mxu0 0
    %3366 = vmatprep.mubr.bf16.mxu0 0
    %3367 = vmatmul.mubr.bf16.gmra.mrb[0].mxu0 %v631
    %v3368 = vpop.f32.mrb[0].mxu0
    %v3369 = vadd.f32 %v3328, %v3368
    %v3370 = vpop.f32.mrb[0].mxu0
    %v3371 = vadd.f32 %v3330, %v3370
    %v3372 = vpop.f32.mrb[0].mxu0
    %v3373 = vpop.f32.mrb[0].mxu0
    %3374 = vdwg.mxu0
    %3375 = vmatprep.subr.bf16.mxu0 %v2090
    %3376 = vmatpush1.bf16.msra.mxu0 %v2089
    %3377 = vmatprep.subr.bf16.mxu0 %v2094
    %3378 = vmatpush1.bf16.msra.mxu0 %v2093
    %3379 = vmatprep.subr.bf16.mxu0 %v2098
    %3380 = vmatpush1.bf16.msra.mxu0 %v2097
    %3381 = vmatprep.subr.bf16.mxu0 %v2102
    %3382 = vmatpush1.bf16.msra.mxu0 %v2101
    %3383 = vmatprep.subr.bf16.mxu0 %v2106
    %3384 = vmatpush1.bf16.msra.mxu0 %v2105
    %3385 = vmatprep.subr.bf16.mxu0 %v2110
    %3386 = vmatpush1.bf16.msra.mxu0 %v2109
    %3387 = vmatprep.subr.bf16.mxu0 %v2114
    %3388 = vmatpush1.bf16.msra.mxu0 %v2113
    %3389 = vmatprep.subr.bf16.mxu0 %v2118
    %3390 = vmatpush1.bf16.msra.mxu0 %v2117
    %3391 = vmatprep.subr.bf16.mxu0 %v2122
    %3392 = vmatpush1.bf16.msra.mxu0 %v2121
    %3393 = vmatprep.subr.bf16.mxu0 %v2126
    %3394 = vmatpush1.bf16.msra.mxu0 %v2125
    %3395 = vmatprep.subr.bf16.mxu0 %v2130
    %3396 = vmatpush1.bf16.msra.mxu0 %v2129
    %3397 = vmatprep.subr.bf16.mxu0 %v2134
    %3398 = vmatpush1.bf16.msra.mxu0 %v2133
    %3399 = vmatprep.subr.bf16.mxu0 %v2138
    %3400 = vmatpush1.bf16.msra.mxu0 %v2137
    %3401 = vmatprep.subr.bf16.mxu0 %v2142
    %3402 = vmatpush1.bf16.msra.mxu0 %v2141
    %3403 = vmatprep.subr.bf16.mxu0 %v2146
    %3404 = vmatpush1.bf16.msra.mxu0 %v2145
    %3405 = vmatprep.subr.bf16.mxu0 %v2150
    %3406 = vmatpush1.bf16.msra.mxu0 %v2149
    %3407 = vmatprep.mubr.bf16.mxu0 %v618
    %3408 = vmatmul.mubr.bf16.gmra.mrb[0].mxu0 %v617
    %v3409 = vpop.f32.mrb[0].mxu0
    %v3410 = vadd.f32 %v585, %v3409
    %v3411 = vpop.f32.mrb[0].mxu0
    %v3412 = vadd.f32 %v589, %v3411
    %v3413 = vpop.f32.mrb[0].mxu0
    %v3414 = vpop.f32.mrb[0].mxu0
    %3415 = vdwg.mxu0
    %3416 = vmatprep.subr.bf16.mxu0 %v2154
    %3417 = vmatpush1.bf16.msra.mxu0 %v2153
    %3418 = vmatprep.subr.bf16.mxu0 %v2158
    %3419 = vmatpush1.bf16.msra.mxu0 %v2157
    %3420 = vmatprep.subr.bf16.mxu0 %v2162
    %3421 = vmatpush1.bf16.msra.mxu0 %v2161
    %3422 = vmatprep.subr.bf16.mxu0 %v2166
    %3423 = vmatpush1.bf16.msra.mxu0 %v2165
    %3424 = vmatprep.subr.bf16.mxu0 %v2170
    %3425 = vmatpush1.bf16.msra.mxu0 %v2169
    %3426 = vmatprep.subr.bf16.mxu0 %v2174
    %3427 = vmatpush1.bf16.msra.mxu0 %v2173
    %3428 = vmatprep.subr.bf16.mxu0 %v2178
    %3429 = vmatpush1.bf16.msra.mxu0 %v2177
    %3430 = vmatprep.subr.bf16.mxu0 %v2182
    %3431 = vmatpush1.bf16.msra.mxu0 %v2181
    %3432 = vmatprep.subr.bf16.mxu0 %v2186
    %3433 = vmatpush1.bf16.msra.mxu0 %v2185
    %3434 = vmatprep.subr.bf16.mxu0 %v2190
    %3435 = vmatpush1.bf16.msra.mxu0 %v2189
    %3436 = vmatprep.subr.bf16.mxu0 %v2194
    %3437 = vmatpush1.bf16.msra.mxu0 %v2193
    %3438 = vmatprep.subr.bf16.mxu0 %v2198
    %3439 = vmatpush1.bf16.msra.mxu0 %v2197
    %3440 = vmatprep.subr.bf16.mxu0 %v2202
    %3441 = vmatpush1.bf16.msra.mxu0 %v2201
    %3442 = vmatprep.subr.bf16.mxu0 %v2206
    %3443 = vmatpush1.bf16.msra.mxu0 %v2205
    %3444 = vmatprep.subr.bf16.mxu0 %v2210
    %3445 = vmatpush1.bf16.msra.mxu0 %v2209
    %3446 = vmatprep.subr.bf16.mxu0 %v2214
    %3447 = vmatpush1.bf16.msra.mxu0 %v2213
    %3448 = vmatprep.mubr.bf16.mxu0 %v620
    %3449 = vmatmul.mubr.bf16.gmra.mrb[0].mxu0 %v619
    %v3450 = vpop.f32.mrb[0].mxu0
    %v3451 = vadd.f32 %v3410, %v3450
    %v3452 = vpop.f32.mrb[0].mxu0
    %v3453 = vadd.f32 %v3412, %v3452
    %v3454 = vpop.f32.mrb[0].mxu0
    %v3455 = vpop.f32.mrb[0].mxu0
    %3456 = vdwg.mxu0
    %3457 = vmatprep.subr.bf16.mxu0 %v2218
    %3458 = vmatpush1.bf16.msra.mxu0 %v2217
    %3459 = vmatprep.subr.bf16.mxu0 %v2222
    %3460 = vmatpush1.bf16.msra.mxu0 %v2221
    %3461 = vmatprep.subr.bf16.mxu0 %v2226
    %3462 = vmatpush1.bf16.msra.mxu0 %v2225
    %3463 = vmatprep.subr.bf16.mxu0 %v2230
    %3464 = vmatpush1.bf16.msra.mxu0 %v2229
    %3465 = vmatprep.subr.bf16.mxu0 %v2234
    %3466 = vmatpush1.bf16.msra.mxu0 %v2233
    %3467 = vmatprep.subr.bf16.mxu0 %v2238
    %3468 = vmatpush1.bf16.msra.mxu0 %v2237
    %3469 = vmatprep.subr.bf16.mxu0 %v2242
    %3470 = vmatpush1.bf16.msra.mxu0 %v2241
    %3471 = vmatprep.subr.bf16.mxu0 %v2246
    %3472 = vmatpush1.bf16.msra.mxu0 %v2245
    %3473 = vmatprep.subr.bf16.mxu0 %v2250
    %3474 = vmatpush1.bf16.msra.mxu0 %v2249
    %3475 = vmatprep.subr.bf16.mxu0 %v2254
    %3476 = vmatpush1.bf16.msra.mxu0 %v2253
    %3477 = vmatprep.subr.bf16.mxu0 %v2258
    %3478 = vmatpush1.bf16.msra.mxu0 %v2257
    %3479 = vmatprep.subr.bf16.mxu0 %v2262
    %3480 = vmatpush1.bf16.msra.mxu0 %v2261
    %3481 = vmatprep.subr.bf16.mxu0 %v2266
    %3482 = vmatpush1.bf16.msra.mxu0 %v2265
    %3483 = vmatprep.subr.bf16.mxu0 %v2270
    %3484 = vmatpush1.bf16.msra.mxu0 %v2269
    %3485 = vmatprep.subr.bf16.mxu0 %v2274
    %3486 = vmatpush1.bf16.msra.mxu0 %v2273
    %3487 = vmatprep.subr.bf16.mxu0 %v2278
    %3488 = vmatpush1.bf16.msra.mxu0 %v2277
    %3489 = vmatprep.mubr.bf16.mxu0 %v622
    %3490 = vmatmul.mubr.bf16.gmra.mrb[0].mxu0 %v621
    %v3491 = vpop.f32.mrb[0].mxu0
    %v3492 = vadd.f32 %v3451, %v3491
    %v3493 = vpop.f32.mrb[0].mxu0
    %v3494 = vadd.f32 %v3453, %v3493
    %v3495 = vpop.f32.mrb[0].mxu0
    %v3496 = vpop.f32.mrb[0].mxu0
    %3497 = vdwg.mxu0
    %3498 = vmatprep.subr.bf16.mxu0 %v2282
    %3499 = vmatpush1.bf16.msra.mxu0 %v2281
    %3500 = vmatprep.subr.bf16.mxu0 %v2286
    %3501 = vmatpush1.bf16.msra.mxu0 %v2285
    %3502 = vmatprep.subr.bf16.mxu0 %v2290
    %3503 = vmatpush1.bf16.msra.mxu0 %v2289
    %3504 = vmatprep.subr.bf16.mxu0 %v2294
    %3505 = vmatpush1.bf16.msra.mxu0 %v2293
    %3506 = vmatprep.subr.bf16.mxu0 %v2298
    %3507 = vmatpush1.bf16.msra.mxu0 %v2297
    %3508 = vmatprep.subr.bf16.mxu0 %v2302
    %3509 = vmatpush1.bf16.msra.mxu0 %v2301
    %3510 = vmatprep.subr.bf16.mxu0 %v2306
    %3511 = vmatpush1.bf16.msra.mxu0 %v2305
    %3512 = vmatprep.subr.bf16.mxu0 %v2310
    %3513 = vmatpush1.bf16.msra.mxu0 %v2309
    %3514 = vmatprep.subr.bf16.mxu0 %v2314
    %3515 = vmatpush1.bf16.msra.mxu0 %v2313
    %3516 = vmatprep.subr.bf16.mxu0 %v2318
    %3517 = vmatpush1.bf16.msra.mxu0 %v2317
    %3518 = vmatprep.subr.bf16.mxu0 %v2322
    %3519 = vmatpush1.bf16.msra.mxu0 %v2321
    %3520 = vmatprep.subr.bf16.mxu0 %v2326
    %3521 = vmatpush1.bf16.msra.mxu0 %v2325
    %3522 = vmatprep.subr.bf16.mxu0 %v2330
    %3523 = vmatpush1.bf16.msra.mxu0 %v2329
    %3524 = vmatprep.subr.bf16.mxu0 %v2334
    %3525 = vmatpush1.bf16.msra.mxu0 %v2333
    %3526 = vmatprep.subr.bf16.mxu0 %v2338
    %3527 = vmatpush1.bf16.msra.mxu0 %v2337
    %3528 = vmatprep.subr.bf16.mxu0 %v2342
    %3529 = vmatpush1.bf16.msra.mxu0 %v2341
    %3530 = vmatprep.mubr.bf16.mxu0 %v624
    %3531 = vmatmul.mubr.bf16.gmra.mrb[0].mxu0 %v623
    %v3532 = vpop.f32.mrb[0].mxu0
    %v3533 = vadd.f32 %v3492, %v3532
    %v3534 = vpop.f32.mrb[0].mxu0
    %v3535 = vadd.f32 %v3494, %v3534
    %v3536 = vpop.f32.mrb[0].mxu0
    %v3537 = vpop.f32.mrb[0].mxu0
    %3538 = vdwg.mxu0
    %3539 = vmatprep.subr.bf16.mxu0 %v2346
    %3540 = vmatpush1.bf16.msra.mxu0 %v2345
    %3541 = vmatprep.subr.bf16.mxu0 %v2350
    %3542 = vmatpush1.bf16.msra.mxu0 %v2349
    %3543 = vmatprep.subr.bf16.mxu0 %v2354
    %3544 = vmatpush1.bf16.msra.mxu0 %v2353
    %3545 = vmatprep.subr.bf16.mxu0 %v2358
    %3546 = vmatpush1.bf16.msra.mxu0 %v2357
    %3547 = vmatprep.subr.bf16.mxu0 %v2362
    %3548 = vmatpush1.bf16.msra.mxu0 %v2361
    %3549 = vmatprep.subr.bf16.mxu0 %v2366
    %3550 = vmatpush1.bf16.msra.mxu0 %v2365
    %3551 = vmatprep.subr.bf16.mxu0 %v2370
    %3552 = vmatpush1.bf16.msra.mxu0 %v2369
    %3553 = vmatprep.subr.bf16.mxu0 %v2374
    %3554 = vmatpush1.bf16.msra.mxu0 %v2373
    %3555 = vmatprep.subr.bf16.mxu0 %v2378
    %3556 = vmatpush1.bf16.msra.mxu0 %v2377
    %3557 = vmatprep.subr.bf16.mxu0 %v2382
    %3558 = vmatpush1.bf16.msra.mxu0 %v2381
    %3559 = vmatprep.subr.bf16.mxu0 %v2386
    %3560 = vmatpush1.bf16.msra.mxu0 %v2385
    %3561 = vmatprep.subr.bf16.mxu0 %v2390
    %3562 = vmatpush1.bf16.msra.mxu0 %v2389
    %3563 = vmatprep.subr.bf16.mxu0 %v2394
    %3564 = vmatpush1.bf16.msra.mxu0 %v2393
    %3565 = vmatprep.subr.bf16.mxu0 %v2398
    %3566 = vmatpush1.bf16.msra.mxu0 %v2397
    %3567 = vmatprep.subr.bf16.mxu0 %v2402
    %3568 = vmatpush1.bf16.msra.mxu0 %v2401
    %3569 = vmatprep.subr.bf16.mxu0 %v2406
    %3570 = vmatpush1.bf16.msra.mxu0 %v2405
    %3571 = vmatprep.mubr.bf16.mxu0 %v626
    %3572 = vmatmul.mubr.bf16.gmra.mrb[0].mxu0 %v625
    %v3573 = vpop.f32.mrb[0].mxu0
    %v3574 = vadd.f32 %v3533, %v3573
    %v3575 = vpop.f32.mrb[0].mxu0
    %v3576 = vadd.f32 %v3535, %v3575
    %v3577 = vpop.f32.mrb[0].mxu0
    %v3578 = vpop.f32.mrb[0].mxu0
    %3579 = vdwg.mxu0
    %3580 = vmatprep.subr.bf16.mxu0 %v2410
    %3581 = vmatpush1.bf16.msra.mxu0 %v2409
    %3582 = vmatprep.subr.bf16.mxu0 %v2414
    %3583 = vmatpush1.bf16.msra.mxu0 %v2413
    %3584 = vmatprep.subr.bf16.mxu0 %v2418
    %3585 = vmatpush1.bf16.msra.mxu0 %v2417
    %3586 = vmatprep.subr.bf16.mxu0 %v2422
    %3587 = vmatpush1.bf16.msra.mxu0 %v2421
    %3588 = vmatprep.subr.bf16.mxu0 %v2426
    %3589 = vmatpush1.bf16.msra.mxu0 %v2425
    %3590 = vmatprep.subr.bf16.mxu0 %v2430
    %3591 = vmatpush1.bf16.msra.mxu0 %v2429
    %3592 = vmatprep.subr.bf16.mxu0 %v2434
    %3593 = vmatpush1.bf16.msra.mxu0 %v2433
    %3594 = vmatprep.subr.bf16.mxu0 %v2438
    %3595 = vmatpush1.bf16.msra.mxu0 %v2437
    %3596 = vmatprep.subr.bf16.mxu0 %v2442
    %3597 = vmatpush1.bf16.msra.mxu0 %v2441
    %3598 = vmatprep.subr.bf16.mxu0 %v2446
    %3599 = vmatpush1.bf16.msra.mxu0 %v2445
    %3600 = vmatprep.subr.bf16.mxu0 %v2450
    %3601 = vmatpush1.bf16.msra.mxu0 %v2449
    %3602 = vmatprep.subr.bf16.mxu0 %v2454
    %3603 = vmatpush1.bf16.msra.mxu0 %v2453
    %3604 = vmatprep.subr.bf16.mxu0 %v2458
    %3605 = vmatpush1.bf16.msra.mxu0 %v2457
    %3606 = vmatprep.subr.bf16.mxu0 %v2462
    %3607 = vmatpush1.bf16.msra.mxu0 %v2461
    %3608 = vmatprep.subr.bf16.mxu0 %v2466
    %3609 = vmatpush1.bf16.msra.mxu0 %v2465
    %3610 = vmatprep.subr.bf16.mxu0 %v2470
    %3611 = vmatpush1.bf16.msra.mxu0 %v2469
    %3612 = vmatprep.mubr.bf16.mxu0 %v628
    %3613 = vmatmul.mubr.bf16.gmra.mrb[0].mxu0 %v627
    %v3614 = vpop.f32.mrb[0].mxu0
    %v3615 = vadd.f32 %v3574, %v3614
    %v3616 = vpop.f32.mrb[0].mxu0
    %v3617 = vadd.f32 %v3576, %v3616
    %v3618 = vpop.f32.mrb[0].mxu0
    %v3619 = vpop.f32.mrb[0].mxu0
    %3620 = vdwg.mxu0
    %3621 = vmatprep.subr.bf16.mxu0 %v2474
    %3622 = vmatpush1.bf16.msra.mxu0 %v2473
    %3623 = vmatprep.subr.bf16.mxu0 %v2478
    %3624 = vmatpush1.bf16.msra.mxu0 %v2477
    %3625 = vmatprep.subr.bf16.mxu0 %v2482
    %3626 = vmatpush1.bf16.msra.mxu0 %v2481
    %3627 = vmatprep.subr.bf16.mxu0 %v2486
    %3628 = vmatpush1.bf16.msra.mxu0 %v2485
    %3629 = vmatprep.subr.bf16.mxu0 %v2490
    %3630 = vmatpush1.bf16.msra.mxu0 %v2489
    %3631 = vmatprep.subr.bf16.mxu0 %v2494
    %3632 = vmatpush1.bf16.msra.mxu0 %v2493
    %3633 = vmatprep.subr.bf16.mxu0 %v2498
    %3634 = vmatpush1.bf16.msra.mxu0 %v2497
    %3635 = vmatprep.subr.bf16.mxu0 %v2502
    %3636 = vmatpush1.bf16.msra.mxu0 %v2501
    %3637 = vmatprep.subr.bf16.mxu0 %v2506
    %3638 = vmatpush1.bf16.msra.mxu0 %v2505
    %3639 = vmatprep.subr.bf16.mxu0 %v2510
    %3640 = vmatpush1.bf16.msra.mxu0 %v2509
    %3641 = vmatprep.subr.bf16.mxu0 %v2514
    %3642 = vmatpush1.bf16.msra.mxu0 %v2513
    %3643 = vmatprep.subr.bf16.mxu0 %v2518
    %3644 = vmatpush1.bf16.msra.mxu0 %v2517
    %3645 = vmatprep.subr.bf16.mxu0 %v2522
    %3646 = vmatpush1.bf16.msra.mxu0 %v2521
    %3647 = vmatprep.subr.bf16.mxu0 %v2526
    %3648 = vmatpush1.bf16.msra.mxu0 %v2525
    %3649 = vmatprep.subr.bf16.mxu0 %v2530
    %3650 = vmatpush1.bf16.msra.mxu0 %v2529
    %3651 = vmatprep.subr.bf16.mxu0 %v2534
    %3652 = vmatpush1.bf16.msra.mxu0 %v2533
    %3653 = vmatprep.mubr.bf16.mxu0 %v630
    %3654 = vmatmul.mubr.bf16.gmra.mrb[0].mxu0 %v629
    %v3655 = vpop.f32.mrb[0].mxu0
    %v3656 = vadd.f32 %v3615, %v3655
    %v3657 = vpop.f32.mrb[0].mxu0
    %v3658 = vadd.f32 %v3617, %v3657
    %v3659 = vpop.f32.mrb[0].mxu0
    %v3660 = vpop.f32.mrb[0].mxu0
    %3661 = vdwg.mxu0
    %3662 = vmatprep.subr.bf16.mxu0 %v2538
    %3663 = vmatpush1.bf16.msra.mxu0 %v2537
    %3664 = vmatprep.subr.bf16.mxu0 %v2542
    %3665 = vmatpush1.bf16.msra.mxu0 %v2541
    %3666 = vmatprep.subr.bf16.mxu0 %v2546
    %3667 = vmatpush1.bf16.msra.mxu0 %v2545
    %3668 = vmatprep.subr.bf16.mxu0 %v2550
    %3669 = vmatpush1.bf16.msra.mxu0 %v2549
    %3670 = vmatprep.subr.bf16.mxu0 %v2554
    %3671 = vmatpush1.bf16.msra.mxu0 %v2553
    %3672 = vmatprep.subr.bf16.mxu0 %v2558
    %3673 = vmatpush1.bf16.msra.mxu0 %v2557
    %3674 = vmatprep.subr.bf16.mxu0 %v2562
    %3675 = vmatpush1.bf16.msra.mxu0 %v2561
    %3676 = vmatprep.subr.bf16.mxu0 %v2566
    %3677 = vmatpush1.bf16.msra.mxu0 %v2565
    %3678 = vmatprep.subr.bf16.mxu0 0
    %3679 = vmatpush1.bf16.msra.mxu0 0
    %3680 = vmatprep.subr.bf16.mxu0 0
    %3681 = vmatpush1.bf16.msra.mxu0 0
    %3682 = vmatprep.subr.bf16.mxu0 0
    %3683 = vmatpush1.bf16.msra.mxu0 0
    %3684 = vmatprep.subr.bf16.mxu0 0
    %3685 = vmatpush1.bf16.msra.mxu0 0
    %3686 = vmatprep.subr.bf16.mxu0 0
    %3687 = vmatpush1.bf16.msra.mxu0 0
    %3688 = vmatprep.subr.bf16.mxu0 0
    %3689 = vmatpush1.bf16.msra.mxu0 0
    %3690 = vmatprep.subr.bf16.mxu0 0
    %3691 = vmatpush1.bf16.msra.mxu0 0
    %3692 = vmatprep.subr.bf16.mxu0 0
    %3693 = vmatpush1.bf16.msra.mxu0 0
    %3694 = vmatprep.mubr.bf16.mxu0 0
    %3695 = vmatmul.mubr.bf16.gmra.mrb[0].mxu0 %v631
    %v3696 = vpop.f32.mrb[0].mxu0
    %v3697 = vadd.f32 %v3656, %v3696
    %v3698 = vpop.f32.mrb[0].mxu0
    %v3699 = vadd.f32 %v3658, %v3698
    %v3700 = vpop.f32.mrb[0].mxu0
    %v3701 = vpop.f32.mrb[0].mxu0
    %3702 = vdwg.mxu0
    %v3703 = vmax.f32 %v3369, 0.0
    %v3704 = vmax.f32 %v3371, 0.0
    %v3705 = vmax.f32 %v3697, 0.0
    %v3706 = vmax.f32 %v3699, 0.0
    %v3707 = vld [vmem:[#allocation8] sm:$0xff]
    %v3708 = vld [vmem:[#allocation8 + $0x8] sm:$0xff]
    %v3709 = vld [vmem:[#allocation8 + $0x10] sm:$0xff]
    %v3710 = vld [vmem:[#allocation8 + $0x18] sm:$0xff]
    %v3711 = vld [vmem:[#allocation8 + $0x20] sm:$0xff]
    %v3712 = vld [vmem:[#allocation8 + $0x28] sm:$0xff]
    %v3713 = vld [vmem:[#allocation8 + $0x30] sm:$0xff]
    %v3714 = vld [vmem:[#allocation8 + $0x38] sm:$0xff]
    %v3715 = vld [vmem:[#allocation8 + $0x40] sm:$0xff]
    %v3716 = vld [vmem:[#allocation8 + $0x48] sm:$0xff]
    %v3717 = vld [vmem:[#allocation8 + $0x50] sm:$0xff]
    %v3718 = vld [vmem:[#allocation8 + $0x58] sm:$0xff]
    %v3719 = vld [vmem:[#allocation8 + $0x60] sm:$0xff]
    %v3720 = vld [vmem:[#allocation8 + $0x68] sm:$0xff]
    %v3721 = vld [vmem:[#allocation8 + $0x70] sm:$0xff]
    %v3722 = vld [vmem:[#allocation8 + $0x78] sm:$0xff]
    %v3723 = vld [vmem:[#allocation8 + $0x80] sm:$0xff]
    %v3724 = vld [vmem:[#allocation8 + $0x88] sm:$0xff]
    %v3725 = vld [vmem:[#allocation8 + $0x90] sm:$0xff]
    %v3726 = vld [vmem:[#allocation8 + $0x98] sm:$0xff]
    %v3727 = vld [vmem:[#allocation8 + $0xa0] sm:$0xff]
    %v3728 = vld [vmem:[#allocation8 + $0xa8] sm:$0xff]
    %v3729 = vld [vmem:[#allocation8 + $0xb0] sm:$0xff]
    %v3730 = vld [vmem:[#allocation8 + $0xb8] sm:$0xff]
    %v3731 = vld [vmem:[#allocation8 + $0xc0] sm:$0xff]
    %v3732 = vld [vmem:[#allocation8 + $0xc8] sm:$0xff]
    %v3733 = vld [vmem:[#allocation8 + $0xd0] sm:$0xff]
    %v3734 = vld [vmem:[#allocation8 + $0xd8] sm:$0xff]
    %v3735 = vld [vmem:[#allocation8 + $0xe0] sm:$0xff]
    %v3736 = vld [vmem:[#allocation8 + $0xe8] sm:$0xff]
    %v3737 = vld [vmem:[#allocation8 + $0xf0] sm:$0xff]
    %v3738 = vld [vmem:[#allocation8 + $0xf8] sm:$0xff]
    %v3739 = vld [vmem:[#allocation8 + $0x100] sm:$0xff]
    %v3740 = vld [vmem:[#allocation8 + $0x108] sm:$0xff]
    %v3741 = vld [vmem:[#allocation8 + $0x110] sm:$0xff]
    %v3742 = vld [vmem:[#allocation8 + $0x118] sm:$0xff]
    %v3743 = vld [vmem:[#allocation8 + $0x120] sm:$0xff]
    %v3744 = vld [vmem:[#allocation8 + $0x128] sm:$0xff]
    %v3745 = vld [vmem:[#allocation8 + $0x130] sm:$0xff]
    %v3746 = vld [vmem:[#allocation8 + $0x138] sm:$0xff]
    %v3747 = vld [vmem:[#allocation8 + $0x140] sm:$0xff]
    %v3748 = vld [vmem:[#allocation8 + $0x148] sm:$0xff]
    %v3749 = vld [vmem:[#allocation8 + $0x150] sm:$0xff]
    %v3750 = vld [vmem:[#allocation8 + $0x158] sm:$0xff]
    %v3751 = vld [vmem:[#allocation8 + $0x160] sm:$0xff]
    %v3752 = vld [vmem:[#allocation8 + $0x168] sm:$0xff]
    %v3753 = vld [vmem:[#allocation8 + $0x170] sm:$0xff]
    %v3754 = vld [vmem:[#allocation8 + $0x178] sm:$0xff]
    %v3755 = vld [vmem:[#allocation8 + $0x180] sm:$0xff]
    %v3756 = vld [vmem:[#allocation8 + $0x188] sm:$0xff]
    %v3757 = vld [vmem:[#allocation8 + $0x190] sm:$0xff]
    %v3758 = vld [vmem:[#allocation8 + $0x198] sm:$0xff]
    %v3759 = vld [vmem:[#allocation8 + $0x1a0] sm:$0xff]
    %v3760 = vld [vmem:[#allocation8 + $0x1a8] sm:$0xff]
    %v3761 = vld [vmem:[#allocation8 + $0x1b0] sm:$0xff]
    %v3762 = vld [vmem:[#allocation8 + $0x1b8] sm:$0xff]
    %v3763 = vld [vmem:[#allocation8 + $0x1c0] sm:$0xff]
    %v3764 = vld [vmem:[#allocation8 + $0x1c8] sm:$0xff]
    %v3765 = vld [vmem:[#allocation8 + $0x1d0] sm:$0xff]
    %v3766 = vld [vmem:[#allocation8 + $0x1d8] sm:$0xff]
    %v3767 = vld [vmem:[#allocation8 + $0x1e0] sm:$0xff]
    %v3768 = vld [vmem:[#allocation8 + $0x1e8] sm:$0xff]
    %v3769 = vld [vmem:[#allocation8 + $0x1f0] sm:$0xff]
    %v3770 = vld [vmem:[#allocation8 + $0x1f8] sm:$0xff]
    %v3771 = vld [vmem:[#allocation10] sm:$0x1]
    %v3773 = vlaneseq
    %v3774 = vshrl.u32 %v3773, 7
    %v3775 = vsub.s32 0, %v3774
    %v3776 = vrot.slane %v3771, %v3775
    %3778 = vmatprep.subr.mxu0 0.0
    %3779 = vmatpush1.msra.mxu0 %v3707
    %3780 = vmatprep.subr.mxu0 0.0
    %3781 = vmatpush1.msra.mxu0 %v3708
    %3782 = vmatprep.subr.mxu0 0.0
    %3783 = vmatpush1.msra.mxu0 %v3709
    %3784 = vmatprep.subr.mxu0 0.0
    %3785 = vmatpush1.msra.mxu0 %v3710
    %3786 = vmatprep.subr.mxu0 0.0
    %3787 = vmatpush1.msra.mxu0 %v3711
    %3788 = vmatprep.subr.mxu0 0.0
    %3789 = vmatpush1.msra.mxu0 %v3712
    %3790 = vmatprep.subr.mxu0 0.0
    %3791 = vmatpush1.msra.mxu0 %v3713
    %3792 = vmatprep.subr.mxu0 0.0
    %3793 = vmatpush1.msra.mxu0 %v3714
    %3794 = vmatprep.subr.mxu0 0.0
    %3795 = vmatpush1.msra.mxu0 %v3715
    %3796 = vmatprep.subr.mxu0 0.0
    %3797 = vmatpush1.msra.mxu0 %v3716
    %3798 = vmatprep.subr.mxu0 0.0
    %3799 = vmatpush1.msra.mxu0 %v3717
    %3800 = vmatprep.subr.mxu0 0.0
    %3801 = vmatpush1.msra.mxu0 %v3718
    %3802 = vmatprep.subr.mxu0 0.0
    %3803 = vmatpush1.msra.mxu0 %v3719
    %3804 = vmatprep.subr.mxu0 0.0
    %3805 = vmatpush1.msra.mxu0 %v3720
    %3806 = vmatprep.subr.mxu0 0.0
    %3807 = vmatpush1.msra.mxu0 %v3721
    %3808 = vmatprep.subr.mxu0 0.0
    %3809 = vmatpush1.msra.mxu0 %v3722
    %3810 = vmatprep.subr.mxu0 0.0
    %3811 = vmatpush1.msra.mxu0 %v3723
    %3812 = vmatprep.subr.mxu0 0.0
    %3813 = vmatpush1.msra.mxu0 %v3724
    %3814 = vmatprep.subr.mxu0 0.0
    %3815 = vmatpush1.msra.mxu0 %v3725
    %3816 = vmatprep.subr.mxu0 0.0
    %3817 = vmatpush1.msra.mxu0 %v3726
    %3818 = vmatprep.subr.mxu0 0.0
    %3819 = vmatpush1.msra.mxu0 %v3727
    %3820 = vmatprep.subr.mxu0 0.0
    %3821 = vmatpush1.msra.mxu0 %v3728
    %3822 = vmatprep.subr.mxu0 0.0
    %3823 = vmatpush1.msra.mxu0 %v3729
    %3824 = vmatprep.subr.mxu0 0.0
    %3825 = vmatpush1.msra.mxu0 %v3730
    %3826 = vmatprep.subr.mxu0 0.0
    %3827 = vmatpush1.msra.mxu0 %v3731
    %3828 = vmatprep.subr.mxu0 0.0
    %3829 = vmatpush1.msra.mxu0 %v3732
    %3830 = vmatprep.subr.mxu0 0.0
    %3831 = vmatpush1.msra.mxu0 %v3733
    %3832 = vmatprep.subr.mxu0 0.0
    %3833 = vmatpush1.msra.mxu0 %v3734
    %3834 = vmatprep.subr.mxu0 0.0
    %3835 = vmatpush1.msra.mxu0 %v3735
    %3836 = vmatprep.subr.mxu0 0.0
    %3837 = vmatpush1.msra.mxu0 %v3736
    %3838 = vmatprep.subr.mxu0 0.0
    %3839 = vmatpush1.msra.mxu0 %v3737
    %3840 = vmatprep.subr.mxu0 0.0
    %3841 = vmatpush1.msra.mxu0 %v3738
    %3842 = vmatprep.mubr.f32.mxu0 %v3704
    %3843 = vmatmul.mubr.f32.gmra.mrb[0].mxu0 %v3703
    %v3844 = vpop.f32.mrb[0].mxu0
    %v3845 = vadd.f32 %v3776, %v3844
    %v3846 = vpop.f32.mrb[0].mxu0
    %3847 = vdwg.mxu0
    %3848 = vmatprep.subr.mxu0 0.0
    %3849 = vmatpush1.msra.mxu0 %v3739
    %3850 = vmatprep.subr.mxu0 0.0
    %3851 = vmatpush1.msra.mxu0 %v3740
    %3852 = vmatprep.subr.mxu0 0.0
    %3853 = vmatpush1.msra.mxu0 %v3741
    %3854 = vmatprep.subr.mxu0 0.0
    %3855 = vmatpush1.msra.mxu0 %v3742
    %3856 = vmatprep.subr.mxu0 0.0
    %3857 = vmatpush1.msra.mxu0 %v3743
    %3858 = vmatprep.subr.mxu0 0.0
    %3859 = vmatpush1.msra.mxu0 %v3744
    %3860 = vmatprep.subr.mxu0 0.0
    %3861 = vmatpush1.msra.mxu0 %v3745
    %3862 = vmatprep.subr.mxu0 0.0
    %3863 = vmatpush1.msra.mxu0 %v3746
    %3864 = vmatprep.subr.mxu0 0.0
    %3865 = vmatpush1.msra.mxu0 %v3747
    %3866 = vmatprep.subr.mxu0 0.0
    %3867 = vmatpush1.msra.mxu0 %v3748
    %3868 = vmatprep.subr.mxu0 0.0
    %3869 = vmatpush1.msra.mxu0 %v3749
    %3870 = vmatprep.subr.mxu0 0.0
    %3871 = vmatpush1.msra.mxu0 %v3750
    %3872 = vmatprep.subr.mxu0 0.0
    %3873 = vmatpush1.msra.mxu0 %v3751
    %3874 = vmatprep.subr.mxu0 0.0
    %3875 = vmatpush1.msra.mxu0 %v3752
    %3876 = vmatprep.subr.mxu0 0.0
    %3877 = vmatpush1.msra.mxu0 %v3753
    %3878 = vmatprep.subr.mxu0 0.0
    %3879 = vmatpush1.msra.mxu0 %v3754
    %3880 = vmatprep.subr.mxu0 0.0
    %3881 = vmatpush1.msra.mxu0 %v3755
    %3882 = vmatprep.subr.mxu0 0.0
    %3883 = vmatpush1.msra.mxu0 %v3756
    %3884 = vmatprep.subr.mxu0 0.0
    %3885 = vmatpush1.msra.mxu0 %v3757
    %3886 = vmatprep.subr.mxu0 0.0
    %3887 = vmatpush1.msra.mxu0 %v3758
    %3888 = vmatprep.subr.mxu0 0.0
    %3889 = vmatpush1.msra.mxu0 %v3759
    %3890 = vmatprep.subr.mxu0 0.0
    %3891 = vmatpush1.msra.mxu0 %v3760
    %3892 = vmatprep.subr.mxu0 0.0
    %3893 = vmatpush1.msra.mxu0 %v3761
    %3894 = vmatprep.subr.mxu0 0.0
    %3895 = vmatpush1.msra.mxu0 %v3762
    %3896 = vmatprep.subr.mxu0 0.0
    %3897 = vmatpush1.msra.mxu0 %v3763
    %3898 = vmatprep.subr.mxu0 0.0
    %3899 = vmatpush1.msra.mxu0 %v3764
    %3900 = vmatprep.subr.mxu0 0.0
    %3901 = vmatpush1.msra.mxu0 %v3765
    %3902 = vmatprep.subr.mxu0 0.0
    %3903 = vmatpush1.msra.mxu0 %v3766
    %3904 = vmatprep.subr.mxu0 0.0
    %3905 = vmatpush1.msra.mxu0 %v3767
    %3906 = vmatprep.subr.mxu0 0.0
    %3907 = vmatpush1.msra.mxu0 %v3768
    %3908 = vmatprep.subr.mxu0 0.0
    %3909 = vmatpush1.msra.mxu0 %v3769
    %3910 = vmatprep.subr.mxu0 0.0
    %3911 = vmatpush1.msra.mxu0 %v3770
    %3912 = vmatprep.mubr.f32.mxu0 %v3706
    %3913 = vmatmul.mubr.f32.gmra.mrb[0].mxu0 %v3705
    %v3914 = vpop.f32.mrb[0].mxu0
    %v3915 = vadd.f32 %v3845, %v3914
    %v3916 = vpop.f32.mrb[0].mxu0
    %3917 = vdwg.mxu0
    %3918 = vst [vmem:[#allocation11] sm:$0xff] %v3915
    // Predicated region
    $region42: #{tpu_custom_call.1} parent=1 // pred_check
      _
    $region43: #{tpu_custom_call.1} parent=1 // pred_check_branch
      %3920 = sbr.rel (0) target = $region45
    $region44: #{tpu_custom_call.1} parent=1 // pred_region
      %s3922 = ssub.s32 128, 128
      %3923 = vsyncadd [#allocation4], %s3922
      %s3925 = sshll.u32 [#allocation11], 4
      %s3926 = int_to_ptr.vmem [resolvable:$true] %s3925
      %3928 = dma.vmem_to_hbm [thread:$0]  %s3926, 128, %s5, [#allocation4]
    $region45: #{tpu_custom_call.1} parent=1 // pred_fallthru
      _
    // Predicated region
    $region46: #{tpu_custom_call.1} parent=1 // pred_check
      _
    $region47: #{tpu_custom_call.1} parent=1 // pred_check_branch
      %3930 = sbr.rel (0) target = $region49
    $region48: #{tpu_custom_call.1} parent=1 // pred_region
      %3931 = dma.done [#allocation4], 128
    $region49: #{tpu_custom_call.1} parent=1 // pred_fallthru
      _
    %3932 = vsyncpa [#allocation3], 1
    %3933 = vsyncpa [#allocation6], 1
    %3934 = vsyncpa [#allocation9], 1
    %3935 = vsyncpa [#allocation4], 1

</llo_original>
